<compile_context>
chip_gen: v5e
topology: v5e:2x2
jax: 0.10.0
libtpu: 0.0.40
codegen_flags: <defaults>
</compile_context>

<pallas_src>
import jax
import jax.numpy as jnp
from jax.experimental import pallas as pl
from jax.experimental.pallas import tpu as pltpu


def _round_up(x, m):
    return (x + m - 1) // m * m


def _vmem_capacity_bytes():
    try:
        return int(pltpu.get_tpu_info().vmem_capacity_bytes)
    except Exception:
        return 64 * 1024 * 1024  # conservative (v7x-sized) fallback


def _footprint_bytes(tile_h, w, cin_p, cout_p, dsize, out_dsize, strip):
    """Rough per-core VMEM footprint for one grid step."""
    s = max(1, min(strip, tile_h))
    slab = 2 * (tile_h + 4) * (w + 2) * cin_p * dsize            # 2x: DMA double-buffer
    interm = (tile_h + 2) * (w + 2) * cout_p * dsize
    out_blk = 2 * tile_h * w * cout_p * out_dsize                # 2x: pipeline buffers
    weights = 2 * 9 * (cin_p + cout_p) * cout_p * dsize + 4 * cout_p * 4
    strip_tmp = ((s + 2) * w * 3 * max(cin_p, cout_p) * dsize    # hoisted im2col patch
                 + 2 * s * w * cout_p * 4)                       # f32 acc + relu temp
    return slab + interm + out_blk + weights + strip_tmp


def _auto_tile_h(h, w, cin_p, cout_p, dsize, out_dsize, strip, budget):
    best = 1
    for d in range(1, h + 1):
        if h % d == 0 and _footprint_bytes(d, w, cin_p, cout_p, dsize,
                                           out_dsize, strip) <= budget:
            best = d
    return best


def _double_conv_pallas(x_pad, w1_k, b1_p, w2_k, b2_p, *, tile_h, strip,
                        out_dtype, compute_dtype, vmem_limit_bytes):
    n, hp4, wp2, cin_p = x_pad.shape
    h, w = hp4 - 4, wp2 - 2
    cout_p = w1_k.shape[-1]
    n_h = h // tile_h
    rows1 = tile_h + 2                       # conv1 rows needed (+/-1 halo for conv2)
    n_strips1 = pl.cdiv(rows1, strip)
    n_strips2 = pl.cdiv(tile_h, strip)
    unroll1 = n_strips1 <= 8
    unroll2 = n_strips2 <= 8

    def kernel(x_hbm, w1_ref, b1_ref, w2_ref, b2_ref, o_ref, x_slab, interm, sem):
        # x_hbm : (N, H+4, W+2, Cin_p)        zero-padded input, HBM (pl.ANY)
        # w1_ref: (3, 3*Cin_p, Cout_p)        conv1 weights, kx folded into K
        # b1_ref: (1, Cout_p) f32             conv1 bias
        # w2_ref: (3, 3*Cout_p, Cout_p)       conv2 weights
        # b2_ref: (1, Cout_p) f32             conv2 bias
        # o_ref : (1, TILE_H, W, Cout_p)      output tile
        # x_slab: (2, TILE_H+4, W+2, Cin_p)   double-buffered input slab (VMEM)
        # interm: (TILE_H+2, W+2, Cout_p)     relu(conv1) + halo + zero columns
        # sem   : (2,) DMA semaphores
        n_i = pl.program_id(0)
        ht = pl.program_id(1)
        nh = pl.num_programs(1)
        slot = jax.lax.rem(ht, 2)

        def slab_copy(h_idx, slot_idx):
            row0 = pl.multiple_of(h_idx * tile_h, tile_h)
            return pltpu.make_async_copy(
                x_hbm.at[n_i, pl.ds(row0, tile_h + 4)],
                x_slab.at[slot_idx], sem.at[slot_idx])

        @pl.when(ht == 0)
        def _():                      # first h-tile of this image: not prefetched yet
            slab_copy(0, 0).start()

        @pl.when(ht + 1 < nh)
        def _():                      # prefetch next h-tile; overlaps the convs below
            slab_copy(ht + 1, 1 - slot).start()

        slab_copy(ht, slot).wait()

        b1 = b1_ref[...]
        b2 = b2_ref[...]
        xs = x_slab.at[slot]

        # ---- Stage 1: conv1 (3x3, pad 1) + bias + ReLU -> interm ----
        def strip1(i, carry):
            r0 = jnp.minimum(i * strip, rows1 - strip)     # ragged last strip overlaps
            sl = xs[pl.ds(r0, strip + 2)]                  # (strip+2, W+2, Cin_p)
            patch = jnp.concatenate(                       # im2col built ONCE per strip
                [sl[:, 0:w], sl[:, 1:w + 1], sl[:, 2:w + 2]], axis=-1)
            acc = jnp.zeros((strip * w, cout_p), jnp.float32)
            for ky in range(3):
                pk = patch[ky:ky + strip].reshape(strip * w, 3 * cin_p)
                acc = acc + jnp.dot(pk, w1_ref[ky],
                                    preferred_element_type=jnp.float32)
            out = jnp.maximum(acc + b1, 0.0).reshape(strip, w, cout_p)
            out = out.astype(interm.dtype)
            zc = jnp.zeros((strip, 1, cout_p), interm.dtype)
            # Full-width aligned store (avoids masked sublane-offset stores on
            # packed bf16); the zero columns are conv2's left/right padding.
            interm[pl.ds(r0, strip)] = jnp.concatenate([zc, out, zc], axis=1)
            return carry

        jax.lax.fori_loop(0, n_strips1, strip1, 0, unroll=unroll1)

        # Halo rows falling outside the image are conv2 zero-padding, not conv1
        # output.  Only the first/last h-tile ever has them -> boundary-only
        # zeroing instead of a per-tile iota/where mask.
        @pl.when(ht == 0)
        def _():
            interm[0] = jnp.zeros((w + 2, cout_p), interm.dtype)

        @pl.when(ht == nh - 1)
        def _():
            interm[rows1 - 1] = jnp.zeros((w + 2, cout_p), interm.dtype)

        # ---- Stage 2: conv2 (3x3, pad 1) + bias + ReLU -> output tile ----
        def strip2(i, carry):
            r0 = jnp.minimum(i * strip, tile_h - strip)
            sl = interm[pl.ds(r0, strip + 2)]              # (strip+2, W+2, Cout_p)
            patch = jnp.concatenate(
                [sl[:, 0:w], sl[:, 1:w + 1], sl[:, 2:w + 2]], axis=-1)
            acc = jnp.zeros((strip * w, cout_p), jnp.float32)
            for ky in range(3):
                pk = patch[ky:ky + strip].reshape(strip * w, 3 * cout_p)
                acc = acc + jnp.dot(pk, w2_ref[ky],
                                    preferred_element_type=jnp.float32)
            out = jnp.maximum(acc + b2, 0.0).reshape(1, strip, w, cout_p)
            o_ref[:, pl.ds(r0, strip)] = out.astype(o_ref.dtype)
            return carry

        jax.lax.fori_loop(0, n_strips2, strip2, 0, unroll=unroll2)

    grid_spec = pltpu.PrefetchScalarGridSpec(
        num_scalar_prefetch=0,
        grid=(n, n_h),
        in_specs=[
            pl.BlockSpec(memory_space=pl.ANY),                        # x stays in HBM
            # TODO(synk): weight/bias blocks are grid-constant; on v7x (64 MiB VMEM)
            # drop their second pipeline buffer via pipeline_mode=pl.Buffered(1)
            # once that path is verified on the pinned JAX version.
            pl.BlockSpec((3, 3 * cin_p, cout_p), lambda i, j: (0, 0, 0)),
            pl.BlockSpec((1, cout_p), lambda i, j: (0, 0)),
            pl.BlockSpec((3, 3 * cout_p, cout_p), lambda i, j: (0, 0, 0)),
            pl.BlockSpec((1, cout_p), lambda i, j: (0, 0)),
        ],
        out_specs=pl.BlockSpec((1, tile_h, w, cout_p), lambda i, j: (i, j, 0, 0)),
        scratch_shapes=[
            pltpu.VMEM((2, tile_h + 4, w + 2, cin_p), compute_dtype),  # dbl-buf slab
            pltpu.VMEM((tile_h + 2, w + 2, cout_p), compute_dtype),    # relu(conv1)
            pltpu.SemaphoreType.DMA((2,)),
        ],
    )
    return pl.pallas_call(
        kernel,
        out_shape=jax.ShapeDtypeStruct((n, h, w, cout_p), out_dtype),
        grid_spec=grid_spec,
        compiler_params=pltpu.CompilerParams(
            # Batch axis feeds both v7x TensorCores; the h axis must stay
            # "arbitrary" because the slab double-buffering carries state across
            # consecutive h-tiles.  (For N=1 on v7x one core idles.)
            dimension_semantics=("parallel", "arbitrary"),
            vmem_limit_bytes=vmem_limit_bytes,
        ),
    )(x_pad, w1_k, b1_p, w2_k, b2_p)


def double_conv_forward(x_nchw, params, *, compute_dtype=jnp.bfloat16,
                        out_dtype=None, tile_h=None, strip_h=8,
                        vmem_limit_bytes=None, nhwc_padded_out=False):
    """DoubleConv.forward: relu(conv2(relu(conv1(x)))).

    NCHW in/out like the PyTorch module.  With nhwc_padded_out=True the raw
    (N, H, W, Cout_padded_to_128) kernel output is returned so stacked UNet
    blocks can be chained without per-layer transpose/pad round-trips.
    """
    w1, b1, w2, b2 = params
    n, cin, h, w = x_nchw.shape
    cout = w1.shape[0]
    cin_p = _round_up(cin, 128)
    cout_p = _round_up(cout, 128)
    if out_dtype is None:
        out_dtype = compute_dtype
    dsize = jnp.dtype(compute_dtype).itemsize
    out_dsize = jnp.dtype(out_dtype).itemsize

    cap = _vmem_capacity_bytes()
    if vmem_limit_bytes is None:
        vmem_limit_bytes = int(cap * 0.85)   # ~108 MiB on v5e/v6e, ~54 MiB on v7x
    budget = int(vmem_limit_bytes * 0.9)     # headroom for compiler temporaries

    strip_h = max(1, strip_h)
    if tile_h is None:
        tile_h = _auto_tile_h(h, w, cin_p, cout_p, dsize, out_dsize, strip_h, budget)
    if h % tile_h != 0:
        # TODO(synk): support a ragged last h-tile (or pad H) instead of raising.
        raise ValueError(f"H={h} must be divisible by tile_h={tile_h}")
    strip = max(1, min(strip_h, tile_h))

    # NCHW -> NHWC, 2-row / 1-col zero halo, channels zero-padded to lane width.
    # TODO(synk): accept NHWC channel-padded input directly so stacked
    # DoubleConv blocks also skip this transpose/pad.
    x = jnp.transpose(x_nchw, (0, 2, 3, 1))
    x = jnp.pad(x, ((0, 0), (2, 2), (1, 1), (0, cin_p - cin)))
    x = x.astype(compute_dtype)

    def prep_w(wt, c_in, c_in_p):
        # (Cout, Cin, 3, 3) -> HWIO -> pad channels -> (3, 3*Cin_p, Cout_p)
        w_hwio = jnp.transpose(wt, (2, 3, 1, 0))
        w_hwio = jnp.pad(w_hwio, ((0, 0), (0, 0),
                                  (0, c_in_p - c_in), (0, cout_p - cout)))
        return w_hwio.reshape(3, 3 * c_in_p, cout_p).astype(compute_dtype)

    def prep_b(b):
        return jnp.pad(b, (0, cout_p - cout)).reshape(1, cout_p).astype(jnp.float32)

    y = _double_conv_pallas(x, prep_w(w1, cin, cin_p), prep_b(b1),
                            prep_w(w2, cout, cout_p), prep_b(b2),
                            tile_h=tile_h, strip=strip, out_dtype=out_dtype,
                            compute_dtype=compute_dtype,
                            vmem_limit_bytes=vmem_limit_bytes)
    if nhwc_padded_out:
        return y
    return jnp.transpose(y[..., :cout], (0, 3, 1, 2))


def init_params(key, in_channels, out_channels):
    """Deterministic init matching nn.Conv2d parameter shapes."""
    k1, k2, k3, k4 = jax.random.split(key, 4)
    lim1 = 1.0 / jnp.sqrt(in_channels * 9)
    lim2 = 1.0 / jnp.sqrt(out_channels * 9)
    w1 = jax.random.uniform(k1, (out_channels, in_channels, 3, 3),
                            jnp.float32, -lim1, lim1)
    b1 = jax.random.uniform(k2, (out_channels,), jnp.float32, -lim1, lim1)
    w2 = jax.random.uniform(k3, (out_channels, out_channels, 3, 3),
                            jnp.float32, -lim2, lim2)
    b2 = jax.random.uniform(k4, (out_channels,), jnp.float32, -lim2, lim2)
    return (w1, b1, w2, b2)


def _reference_double_conv(x_nchw, params):
    """Pure-JAX reference using lax.conv_general_dilated (NCHW, OIHW)."""
    w1, b1, w2, b2 = params

    def conv(x, w, b):
        y = jax.lax.conv_general_dilated(
            x, w, window_strides=(1, 1), padding=((1, 1), (1, 1)),
            dimension_numbers=("NCHW", "OIHW", "NCHW"))
        return jnp.maximum(y + b[None, :, None, None], 0.0)

    return conv(conv(x_nchw, w1, b1), w2, b2)


if __name__ == "__main__":
    key = jax.random.PRNGKey(0)
    kx, kp = jax.random.split(key)

    N, Cin, Cout, H, W = 2, 4, 8, 16, 16
    x = jax.random.normal(kx, (N, Cin, H, W), dtype=jnp.float32)
    params = init_params(kp, Cin, Cout)
    ref = _reference_double_conv(x, params)

    # f32 operands, explicit tiling (tile_h=8 -> 2 h-tiles/image): exercises the
    # double-buffered slab DMA, boundary-row zeroing and ragged row strips.
    out_f32 = jax.block_until_ready(
        double_conv_forward(x, params, compute_dtype=jnp.float32,
                            tile_h=8, strip_h=4))
    assert out_f32.shape == (N, Cout, H, W)
    assert jnp.allclose(out_f32, ref, atol=1e-4, rtol=1e-4), "f32 mismatch vs reference"

    # Default path: bf16 operands/output, auto tile_h / VMEM sizing.
    out_bf16 = jax.block_until_ready(double_conv_forward(x, params))
    assert out_bf16.shape == (N, Cout, H, W)
    assert jnp.allclose(out_bf16.astype(jnp.float32), ref,
                        atol=5e-2, rtol=5e-2), "bf16 mismatch vs reference"

    # NHWC channel-padded bf16 output for chaining UNet blocks (no transposes).
    out_nhwc = jax.block_until_ready(
        double_conv_forward(x, params, nhwc_padded_out=True))
    assert out_nhwc.shape[0] == N and out_nhwc.shape[-1] % 128 == 0
    assert jnp.allclose(
        jnp.transpose(out_nhwc[..., :Cout], (0, 3, 1, 2)).astype(jnp.float32),
        ref, atol=5e-2, rtol=5e-2), "nhwc mismatch vs reference"

    print("KERNEL_OK")
</pallas_src>

<mosaic_0001>
module attributes {stable_mosaic.version = 11 : i64} {
  func.func @kernel(%arg0: i32, %arg1: i32, %arg2: memref<2x20x18x128xf32, #tpu.memory_space<any>>, %arg3: memref<3x384x128xf32, #tpu.memory_space<vmem>>, %arg4: memref<1x128xf32, #tpu.memory_space<vmem>>, %arg5: memref<3x384x128xf32, #tpu.memory_space<vmem>>, %arg6: memref<1x128xf32, #tpu.memory_space<vmem>>, %arg7: memref<1x8x16x128xf32, #tpu.memory_space<vmem>>, %arg8: memref<2x12x18x128xf32, #tpu.memory_space<vmem>>, %arg9: memref<10x18x128xf32, #tpu.memory_space<vmem>>, %arg10: memref<2x!tpu.dma_semaphore, #tpu.memory_space<semaphore_mem>>) attributes {dimension_semantics = [#tpu.dimension_semantics<parallel>, #tpu.dimension_semantics<arbitrary>], iteration_bounds = array<i64: 2, 2>, scalar_prefetch = 0 : i64, scratch_operands = 3 : i64, tpu.core_type = #tpu.core_type<tc>, window_params = [{}, {pipeline_mode = #tpu.pipeline_mode<synchronous>, transform_indices = @transform_1, window_bounds = array<i64: 3, 384, 128>}, {pipeline_mode = #tpu.pipeline_mode<synchronous>, transform_indices = @transform_2, window_bounds = array<i64: 1, 128>}, {pipeline_mode = #tpu.pipeline_mode<synchronous>, transform_indices = @transform_3, window_bounds = array<i64: 3, 384, 128>}, {pipeline_mode = #tpu.pipeline_mode<synchronous>, transform_indices = @transform_4, window_bounds = array<i64: 1, 128>}, {transform_indices = @transform_5, window_bounds = array<i64: 1, 8, 16, 128>}]} {
    %c2_i32 = arith.constant 2 : i32
    %0 = arith.remsi %arg1, %c2_i32 : i32
    %c0_i32 = arith.constant 0 : i32
    %1 = arith.cmpi eq, %arg1, %c0_i32 : i32
    %2 = arith.extui %1 : i1 to i32
    %c0_i32_0 = arith.constant 0 : i32
    %3 = arith.cmpi ne, %2, %c0_i32_0 : i32
    scf.if %3 {
      %c0_i32_130 = arith.constant 0 : i32
      %206 = tpu.assume_multiple %c0_i32_130, 8 : i32
      %c0_i32_131 = arith.constant 0 : i32
      %c0_i32_132 = arith.constant 0 : i32
      %c0_i32_133 = arith.constant 0 : i32
      %c0_i32_134 = arith.constant 0 : i32
      %207 = tpu.memref_slice %arg2[%arg0, %206, %c0_i32_133, %c0_i32_134] : memref<2x20x18x128xf32, #tpu.memory_space<any>> -> memref<1x12x18x128xf32, #tpu.memory_space<any>>
      %208 = tpu.memref_squeeze %207 : memref<1x12x18x128xf32, #tpu.memory_space<any>> -> memref<12x18x128xf32, #tpu.memory_space<any>>
      %c0_i32_135 = arith.constant 0 : i32
      %c0_i32_136 = arith.constant 0 : i32
      %c0_i32_137 = arith.constant 0 : i32
      %209 = tpu.memref_slice %arg8[%c0_i32_131, %c0_i32_135, %c0_i32_136, %c0_i32_137] : memref<2x12x18x128xf32, #tpu.memory_space<vmem>> -> memref<1x12x18x128xf32, #tpu.memory_space<vmem>>
      %210 = tpu.memref_squeeze %209 : memref<1x12x18x128xf32, #tpu.memory_space<vmem>> -> memref<12x18x128xf32, #tpu.memory_space<vmem>>
      %211 = tpu.memref_slice %arg10[%c0_i32_132] : memref<2x!tpu.dma_semaphore, #tpu.memory_space<semaphore_mem>> -> memref<1x!tpu.dma_semaphore, #tpu.memory_space<semaphore_mem>>
      %212 = tpu.memref_squeeze %211 : memref<1x!tpu.dma_semaphore, #tpu.memory_space<semaphore_mem>> -> memref<!tpu.dma_semaphore, #tpu.memory_space<semaphore_mem>>
      tpu.enqueue_dma source(%208 : memref<12x18x128xf32, #tpu.memory_space<any>>) target(%210 : memref<12x18x128xf32, #tpu.memory_space<vmem>>) target_semaphore(%212 : memref<!tpu.dma_semaphore, #tpu.memory_space<semaphore_mem>>)
    } else {
    }
    %c1_i32 = arith.constant 1 : i32
    %4 = arith.addi %arg1, %c1_i32 : i32
    %c2_i32_1 = arith.constant 2 : i32
    %5 = arith.cmpi slt, %4, %c2_i32_1 : i32
    %6 = arith.extui %5 : i1 to i32
    %c0_i32_2 = arith.constant 0 : i32
    %7 = arith.cmpi ne, %6, %c0_i32_2 : i32
    scf.if %7 {
      %c1_i32_130 = arith.constant 1 : i32
      %206 = arith.addi %arg1, %c1_i32_130 : i32
      %c1_i32_131 = arith.constant 1 : i32
      %207 = arith.subi %c1_i32_131, %0 : i32
      %c8_i32_132 = arith.constant 8 : i32
      %208 = arith.muli %206, %c8_i32_132 : i32
      %209 = tpu.assume_multiple %208, 8 : i32
      %c0_i32_133 = arith.constant 0 : i32
      %c0_i32_134 = arith.constant 0 : i32
      %210 = tpu.memref_slice %arg2[%arg0, %209, %c0_i32_133, %c0_i32_134] : memref<2x20x18x128xf32, #tpu.memory_space<any>> -> memref<1x12x18x128xf32, #tpu.memory_space<any>>
      %211 = tpu.memref_squeeze %210 : memref<1x12x18x128xf32, #tpu.memory_space<any>> -> memref<12x18x128xf32, #tpu.memory_space<any>>
      %c0_i32_135 = arith.constant 0 : i32
      %c0_i32_136 = arith.constant 0 : i32
      %c0_i32_137 = arith.constant 0 : i32
      %212 = tpu.memref_slice %arg8[%207, %c0_i32_135, %c0_i32_136, %c0_i32_137] : memref<2x12x18x128xf32, #tpu.memory_space<vmem>> -> memref<1x12x18x128xf32, #tpu.memory_space<vmem>>
      %213 = tpu.memref_squeeze %212 : memref<1x12x18x128xf32, #tpu.memory_space<vmem>> -> memref<12x18x128xf32, #tpu.memory_space<vmem>>
      %214 = tpu.memref_slice %arg10[%207] : memref<2x!tpu.dma_semaphore, #tpu.memory_space<semaphore_mem>> -> memref<1x!tpu.dma_semaphore, #tpu.memory_space<semaphore_mem>>
      %215 = tpu.memref_squeeze %214 : memref<1x!tpu.dma_semaphore, #tpu.memory_space<semaphore_mem>> -> memref<!tpu.dma_semaphore, #tpu.memory_space<semaphore_mem>>
      tpu.enqueue_dma source(%211 : memref<12x18x128xf32, #tpu.memory_space<any>>) target(%213 : memref<12x18x128xf32, #tpu.memory_space<vmem>>) target_semaphore(%215 : memref<!tpu.dma_semaphore, #tpu.memory_space<semaphore_mem>>)
    } else {
    }
    %c8_i32 = arith.constant 8 : i32
    %8 = arith.muli %arg1, %c8_i32 : i32
    %9 = tpu.assume_multiple %8, 8 : i32
    %c0_i32_3 = arith.constant 0 : i32
    %c0_i32_4 = arith.constant 0 : i32
    %10 = tpu.memref_slice %arg2[%arg0, %9, %c0_i32_3, %c0_i32_4] : memref<2x20x18x128xf32, #tpu.memory_space<any>> -> memref<1x12x18x128xf32, #tpu.memory_space<any>>
    %11 = tpu.memref_squeeze %10 : memref<1x12x18x128xf32, #tpu.memory_space<any>> -> memref<12x18x128xf32, #tpu.memory_space<any>>
    %c0_i32_5 = arith.constant 0 : i32
    %c0_i32_6 = arith.constant 0 : i32
    %c0_i32_7 = arith.constant 0 : i32
    %12 = tpu.memref_slice %arg8[%0, %c0_i32_5, %c0_i32_6, %c0_i32_7] : memref<2x12x18x128xf32, #tpu.memory_space<vmem>> -> memref<1x12x18x128xf32, #tpu.memory_space<vmem>>
    %13 = tpu.memref_squeeze %12 : memref<1x12x18x128xf32, #tpu.memory_space<vmem>> -> memref<12x18x128xf32, #tpu.memory_space<vmem>>
    %14 = tpu.memref_slice %arg10[%0] : memref<2x!tpu.dma_semaphore, #tpu.memory_space<semaphore_mem>> -> memref<1x!tpu.dma_semaphore, #tpu.memory_space<semaphore_mem>>
    %15 = tpu.memref_squeeze %14 : memref<1x!tpu.dma_semaphore, #tpu.memory_space<semaphore_mem>> -> memref<!tpu.dma_semaphore, #tpu.memory_space<semaphore_mem>>
    tpu.wait_dma2 semaphore(%15 : memref<!tpu.dma_semaphore, #tpu.memory_space<semaphore_mem>>) src(%11 : memref<12x18x128xf32, #tpu.memory_space<any>>) dst(%13 : memref<12x18x128xf32, #tpu.memory_space<vmem>>)
    %c0 = arith.constant 0 : index
    %c0_8 = arith.constant 0 : index
    %16 = vector.load %arg4[%c0, %c0_8] : memref<1x128xf32, #tpu.memory_space<vmem>>, vector<1x128xf32>
    %c0_9 = arith.constant 0 : index
    %c0_10 = arith.constant 0 : index
    %17 = vector.load %arg6[%c0_9, %c0_10] : memref<1x128xf32, #tpu.memory_space<vmem>>, vector<1x128xf32>
    %c0_i32_11 = arith.constant 0 : i32
    %c4_i32 = arith.constant 4 : i32
    %18 = arith.muli %c0_i32_11, %c4_i32 : i32
    %c6_i32 = arith.constant 6 : i32
    %19 = arith.minsi %18, %c6_i32 : i32
    %c0_i32_12 = arith.constant 0 : i32
    %c0_i32_13 = arith.constant 0 : i32
    %c0_i32_14 = arith.constant 0 : i32
    %20 = tpu.memref_slice %arg8[%0, %c0_i32_12, %c0_i32_13, %c0_i32_14] : memref<2x12x18x128xf32, #tpu.memory_space<vmem>> -> memref<1x12x18x128xf32, #tpu.memory_space<vmem>>
    %21 = tpu.memref_squeeze %20 : memref<1x12x18x128xf32, #tpu.memory_space<vmem>> -> memref<12x18x128xf32, #tpu.memory_space<vmem>>
    %22 = arith.index_cast %19 : i32 to index
    %c0_15 = arith.constant 0 : index
    %c0_16 = arith.constant 0 : index
    %23 = vector.load %21[%22, %c0_15, %c0_16] : memref<12x18x128xf32, #tpu.memory_space<vmem>>, vector<6x18x128xf32>
    %24 = vector.extract_strided_slice %23 {offsets = [0, 0, 0], sizes = [6, 16, 128], strides = [1, 1, 1]} : vector<6x18x128xf32> to vector<6x16x128xf32>
    %25 = vector.extract_strided_slice %23 {offsets = [0, 1, 0], sizes = [6, 16, 128], strides = [1, 1, 1]} : vector<6x18x128xf32> to vector<6x16x128xf32>
    %26 = vector.extract_strided_slice %23 {offsets = [0, 2, 0], sizes = [6, 16, 128], strides = [1, 1, 1]} : vector<6x18x128xf32> to vector<6x16x128xf32>
    %27 = tpu.concatenate %24, %25, %26 in 2 : vector<6x16x128xf32>, vector<6x16x128xf32>, vector<6x16x128xf32> -> vector<6x16x384xf32>
    %cst = arith.constant 0.000000e+00 : f32
    %28 = vector.broadcast %cst : f32 to vector<64x128xf32>
    %29 = vector.extract_strided_slice %27 {offsets = [0, 0, 0], sizes = [4, 16, 384], strides = [1, 1, 1]} : vector<6x16x384xf32> to vector<4x16x384xf32>
    %30 = vector.shape_cast %29 : vector<4x16x384xf32> to vector<64x384xf32>
    %c0_17 = arith.constant 0 : index
    %c0_18 = arith.constant 0 : index
    %c0_19 = arith.constant 0 : index
    %31 = vector.load %arg3[%c0_17, %c0_18, %c0_19] : memref<3x384x128xf32, #tpu.memory_space<vmem>>, vector<1x384x128xf32>
    %32 = vector.shape_cast %31 : vector<1x384x128xf32> to vector<384x128xf32>
    %cst_20 = arith.constant dense<0.000000e+00> : vector<64x128xf32>
    %33 = tpu.matmul %30, %32, %cst_20 {dimension_numbers = #tpu.dot_dimension_numbers<[1], [0], [0], [1], [0, 0, 1, 1], [], []>} : vector<64x384xf32>, vector<384x128xf32>, vector<64x128xf32> -> vector<64x128xf32>
    %34 = arith.addf %28, %33 : vector<64x128xf32>
    %35 = vector.extract_strided_slice %27 {offsets = [1, 0, 0], sizes = [4, 16, 384], strides = [1, 1, 1]} : vector<6x16x384xf32> to vector<4x16x384xf32>
    %36 = vector.shape_cast %35 : vector<4x16x384xf32> to vector<64x384xf32>
    %c1 = arith.constant 1 : index
    %c0_21 = arith.constant 0 : index
    %c0_22 = arith.constant 0 : index
    %37 = vector.load %arg3[%c1, %c0_21, %c0_22] : memref<3x384x128xf32, #tpu.memory_space<vmem>>, vector<1x384x128xf32>
    %38 = vector.shape_cast %37 : vector<1x384x128xf32> to vector<384x128xf32>
    %cst_23 = arith.constant dense<0.000000e+00> : vector<64x128xf32>
    %39 = tpu.matmul %36, %38, %cst_23 {dimension_numbers = #tpu.dot_dimension_numbers<[1], [0], [0], [1], [0, 0, 1, 1], [], []>} : vector<64x384xf32>, vector<384x128xf32>, vector<64x128xf32> -> vector<64x128xf32>
    %40 = arith.addf %34, %39 : vector<64x128xf32>
    %41 = vector.extract_strided_slice %27 {offsets = [2, 0, 0], sizes = [4, 16, 384], strides = [1, 1, 1]} : vector<6x16x384xf32> to vector<4x16x384xf32>
    %42 = vector.shape_cast %41 : vector<4x16x384xf32> to vector<64x384xf32>
    %c2 = arith.constant 2 : index
    %c0_24 = arith.constant 0 : index
    %c0_25 = arith.constant 0 : index
    %43 = vector.load %arg3[%c2, %c0_24, %c0_25] : memref<3x384x128xf32, #tpu.memory_space<vmem>>, vector<1x384x128xf32>
    %44 = vector.shape_cast %43 : vector<1x384x128xf32> to vector<384x128xf32>
    %cst_26 = arith.constant dense<0.000000e+00> : vector<64x128xf32>
    %45 = tpu.matmul %42, %44, %cst_26 {dimension_numbers = #tpu.dot_dimension_numbers<[1], [0], [0], [1], [0, 0, 1, 1], [], []>} : vector<64x384xf32>, vector<384x128xf32>, vector<64x128xf32> -> vector<64x128xf32>
    %46 = arith.addf %40, %45 : vector<64x128xf32>
    %47 = vector.broadcast %16 : vector<1x128xf32> to vector<64x128xf32>
    %48 = arith.addf %46, %47 : vector<64x128xf32>
    %cst_27 = arith.constant 0.000000e+00 : f32
    %49 = vector.broadcast %cst_27 : f32 to vector<64x128xf32>
    %50 = arith.maximumf %48, %49 : vector<64x128xf32>
    %51 = vector.shape_cast %50 : vector<64x128xf32> to vector<4x16x128xf32>
    %cst_28 = arith.constant 0.000000e+00 : f32
    %52 = vector.broadcast %cst_28 : f32 to vector<4x1x128xf32>
    %53 = tpu.concatenate %52, %51, %52 in 1 : vector<4x1x128xf32>, vector<4x16x128xf32>, vector<4x1x128xf32> -> vector<4x18x128xf32>
    %54 = arith.index_cast %19 : i32 to index
    %c0_29 = arith.constant 0 : index
    %c0_30 = arith.constant 0 : index
    %55 = vector.load %arg9[%54, %c0_29, %c0_30] : memref<10x18x128xf32, #tpu.memory_space<vmem>>, vector<4x18x128xf32>
    tpu.vector_store %arg9[%54, %c0_29, %c0_30], %53 {strides = array<i32>} : memref<10x18x128xf32, #tpu.memory_space<vmem>>, vector<4x18x128xf32>,
    %c1_i32_31 = arith.constant 1 : i32
    %c4_i32_32 = arith.constant 4 : i32
    %56 = arith.muli %c1_i32_31, %c4_i32_32 : i32
    %c6_i32_33 = arith.constant 6 : i32
    %57 = arith.minsi %56, %c6_i32_33 : i32
    %c0_i32_34 = arith.constant 0 : i32
    %c0_i32_35 = arith.constant 0 : i32
    %c0_i32_36 = arith.constant 0 : i32
    %58 = tpu.memref_slice %arg8[%0, %c0_i32_34, %c0_i32_35, %c0_i32_36] : memref<2x12x18x128xf32, #tpu.memory_space<vmem>> -> memref<1x12x18x128xf32, #tpu.memory_space<vmem>>
    %59 = tpu.memref_squeeze %58 : memref<1x12x18x128xf32, #tpu.memory_space<vmem>> -> memref<12x18x128xf32, #tpu.memory_space<vmem>>
    %60 = arith.index_cast %57 : i32 to index
    %c0_37 = arith.constant 0 : index
    %c0_38 = arith.constant 0 : index
    %61 = vector.load %59[%60, %c0_37, %c0_38] : memref<12x18x128xf32, #tpu.memory_space<vmem>>, vector<6x18x128xf32>
    %62 = vector.extract_strided_slice %61 {offsets = [0, 0, 0], sizes = [6, 16, 128], strides = [1, 1, 1]} : vector<6x18x128xf32> to vector<6x16x128xf32>
    %63 = vector.extract_strided_slice %61 {offsets = [0, 1, 0], sizes = [6, 16, 128], strides = [1, 1, 1]} : vector<6x18x128xf32> to vector<6x16x128xf32>
    %64 = vector.extract_strided_slice %61 {offsets = [0, 2, 0], sizes = [6, 16, 128], strides = [1, 1, 1]} : vector<6x18x128xf32> to vector<6x16x128xf32>
    %65 = tpu.concatenate %62, %63, %64 in 2 : vector<6x16x128xf32>, vector<6x16x128xf32>, vector<6x16x128xf32> -> vector<6x16x384xf32>
    %cst_39 = arith.constant 0.000000e+00 : f32
    %66 = vector.broadcast %cst_39 : f32 to vector<64x128xf32>
    %67 = vector.extract_strided_slice %65 {offsets = [0, 0, 0], sizes = [4, 16, 384], strides = [1, 1, 1]} : vector<6x16x384xf32> to vector<4x16x384xf32>
    %68 = vector.shape_cast %67 : vector<4x16x384xf32> to vector<64x384xf32>
    %c0_40 = arith.constant 0 : index
    %c0_41 = arith.constant 0 : index
    %c0_42 = arith.constant 0 : index
    %69 = vector.load %arg3[%c0_40, %c0_41, %c0_42] : memref<3x384x128xf32, #tpu.memory_space<vmem>>, vector<1x384x128xf32>
    %70 = vector.shape_cast %69 : vector<1x384x128xf32> to vector<384x128xf32>
    %cst_43 = arith.constant dense<0.000000e+00> : vector<64x128xf32>
    %71 = tpu.matmul %68, %70, %cst_43 {dimension_numbers = #tpu.dot_dimension_numbers<[1], [0], [0], [1], [0, 0, 1, 1], [], []>} : vector<64x384xf32>, vector<384x128xf32>, vector<64x128xf32> -> vector<64x128xf32>
    %72 = arith.addf %66, %71 : vector<64x128xf32>
    %73 = vector.extract_strided_slice %65 {offsets = [1, 0, 0], sizes = [4, 16, 384], strides = [1, 1, 1]} : vector<6x16x384xf32> to vector<4x16x384xf32>
    %74 = vector.shape_cast %73 : vector<4x16x384xf32> to vector<64x384xf32>
    %c1_44 = arith.constant 1 : index
    %c0_45 = arith.constant 0 : index
    %c0_46 = arith.constant 0 : index
    %75 = vector.load %arg3[%c1_44, %c0_45, %c0_46] : memref<3x384x128xf32, #tpu.memory_space<vmem>>, vector<1x384x128xf32>
    %76 = vector.shape_cast %75 : vector<1x384x128xf32> to vector<384x128xf32>
    %cst_47 = arith.constant dense<0.000000e+00> : vector<64x128xf32>
    %77 = tpu.matmul %74, %76, %cst_47 {dimension_numbers = #tpu.dot_dimension_numbers<[1], [0], [0], [1], [0, 0, 1, 1], [], []>} : vector<64x384xf32>, vector<384x128xf32>, vector<64x128xf32> -> vector<64x128xf32>
    %78 = arith.addf %72, %77 : vector<64x128xf32>
    %79 = vector.extract_strided_slice %65 {offsets = [2, 0, 0], sizes = [4, 16, 384], strides = [1, 1, 1]} : vector<6x16x384xf32> to vector<4x16x384xf32>
    %80 = vector.shape_cast %79 : vector<4x16x384xf32> to vector<64x384xf32>
    %c2_48 = arith.constant 2 : index
    %c0_49 = arith.constant 0 : index
    %c0_50 = arith.constant 0 : index
    %81 = vector.load %arg3[%c2_48, %c0_49, %c0_50] : memref<3x384x128xf32, #tpu.memory_space<vmem>>, vector<1x384x128xf32>
    %82 = vector.shape_cast %81 : vector<1x384x128xf32> to vector<384x128xf32>
    %cst_51 = arith.constant dense<0.000000e+00> : vector<64x128xf32>
    %83 = tpu.matmul %80, %82, %cst_51 {dimension_numbers = #tpu.dot_dimension_numbers<[1], [0], [0], [1], [0, 0, 1, 1], [], []>} : vector<64x384xf32>, vector<384x128xf32>, vector<64x128xf32> -> vector<64x128xf32>
    %84 = arith.addf %78, %83 : vector<64x128xf32>
    %85 = vector.broadcast %16 : vector<1x128xf32> to vector<64x128xf32>
    %86 = arith.addf %84, %85 : vector<64x128xf32>
    %cst_52 = arith.constant 0.000000e+00 : f32
    %87 = vector.broadcast %cst_52 : f32 to vector<64x128xf32>
    %88 = arith.maximumf %86, %87 : vector<64x128xf32>
    %89 = vector.shape_cast %88 : vector<64x128xf32> to vector<4x16x128xf32>
    %cst_53 = arith.constant 0.000000e+00 : f32
    %90 = vector.broadcast %cst_53 : f32 to vector<4x1x128xf32>
    %91 = tpu.concatenate %90, %89, %90 in 1 : vector<4x1x128xf32>, vector<4x16x128xf32>, vector<4x1x128xf32> -> vector<4x18x128xf32>
    %92 = arith.index_cast %57 : i32 to index
    %c0_54 = arith.constant 0 : index
    %c0_55 = arith.constant 0 : index
    %93 = vector.load %arg9[%92, %c0_54, %c0_55] : memref<10x18x128xf32, #tpu.memory_space<vmem>>, vector<4x18x128xf32>
    tpu.vector_store %arg9[%92, %c0_54, %c0_55], %91 {strides = array<i32>} : memref<10x18x128xf32, #tpu.memory_space<vmem>>, vector<4x18x128xf32>,
    %c2_i32_56 = arith.constant 2 : i32
    %c4_i32_57 = arith.constant 4 : i32
    %94 = arith.muli %c2_i32_56, %c4_i32_57 : i32
    %c6_i32_58 = arith.constant 6 : i32
    %95 = arith.minsi %94, %c6_i32_58 : i32
    %c0_i32_59 = arith.constant 0 : i32
    %c0_i32_60 = arith.constant 0 : i32
    %c0_i32_61 = arith.constant 0 : i32
    %96 = tpu.memref_slice %arg8[%0, %c0_i32_59, %c0_i32_60, %c0_i32_61] : memref<2x12x18x128xf32, #tpu.memory_space<vmem>> -> memref<1x12x18x128xf32, #tpu.memory_space<vmem>>
    %97 = tpu.memref_squeeze %96 : memref<1x12x18x128xf32, #tpu.memory_space<vmem>> -> memref<12x18x128xf32, #tpu.memory_space<vmem>>
    %98 = arith.index_cast %95 : i32 to index
    %c0_62 = arith.constant 0 : index
    %c0_63 = arith.constant 0 : index
    %99 = vector.load %97[%98, %c0_62, %c0_63] : memref<12x18x128xf32, #tpu.memory_space<vmem>>, vector<6x18x128xf32>
    %100 = vector.extract_strided_slice %99 {offsets = [0, 0, 0], sizes = [6, 16, 128], strides = [1, 1, 1]} : vector<6x18x128xf32> to vector<6x16x128xf32>
    %101 = vector.extract_strided_slice %99 {offsets = [0, 1, 0], sizes = [6, 16, 128], strides = [1, 1, 1]} : vector<6x18x128xf32> to vector<6x16x128xf32>
    %102 = vector.extract_strided_slice %99 {offsets = [0, 2, 0], sizes = [6, 16, 128], strides = [1, 1, 1]} : vector<6x18x128xf32> to vector<6x16x128xf32>
    %103 = tpu.concatenate %100, %101, %102 in 2 : vector<6x16x128xf32>, vector<6x16x128xf32>, vector<6x16x128xf32> -> vector<6x16x384xf32>
    %cst_64 = arith.constant 0.000000e+00 : f32
    %104 = vector.broadcast %cst_64 : f32 to vector<64x128xf32>
    %105 = vector.extract_strided_slice %103 {offsets = [0, 0, 0], sizes = [4, 16, 384], strides = [1, 1, 1]} : vector<6x16x384xf32> to vector<4x16x384xf32>
    %106 = vector.shape_cast %105 : vector<4x16x384xf32> to vector<64x384xf32>
    %c0_65 = arith.constant 0 : index
    %c0_66 = arith.constant 0 : index
    %c0_67 = arith.constant 0 : index
    %107 = vector.load %arg3[%c0_65, %c0_66, %c0_67] : memref<3x384x128xf32, #tpu.memory_space<vmem>>, vector<1x384x128xf32>
    %108 = vector.shape_cast %107 : vector<1x384x128xf32> to vector<384x128xf32>
    %cst_68 = arith.constant dense<0.000000e+00> : vector<64x128xf32>
    %109 = tpu.matmul %106, %108, %cst_68 {dimension_numbers = #tpu.dot_dimension_numbers<[1], [0], [0], [1], [0, 0, 1, 1], [], []>} : vector<64x384xf32>, vector<384x128xf32>, vector<64x128xf32> -> vector<64x128xf32>
    %110 = arith.addf %104, %109 : vector<64x128xf32>
    %111 = vector.extract_strided_slice %103 {offsets = [1, 0, 0], sizes = [4, 16, 384], strides = [1, 1, 1]} : vector<6x16x384xf32> to vector<4x16x384xf32>
    %112 = vector.shape_cast %111 : vector<4x16x384xf32> to vector<64x384xf32>
    %c1_69 = arith.constant 1 : index
    %c0_70 = arith.constant 0 : index
    %c0_71 = arith.constant 0 : index
    %113 = vector.load %arg3[%c1_69, %c0_70, %c0_71] : memref<3x384x128xf32, #tpu.memory_space<vmem>>, vector<1x384x128xf32>
    %114 = vector.shape_cast %113 : vector<1x384x128xf32> to vector<384x128xf32>
    %cst_72 = arith.constant dense<0.000000e+00> : vector<64x128xf32>
    %115 = tpu.matmul %112, %114, %cst_72 {dimension_numbers = #tpu.dot_dimension_numbers<[1], [0], [0], [1], [0, 0, 1, 1], [], []>} : vector<64x384xf32>, vector<384x128xf32>, vector<64x128xf32> -> vector<64x128xf32>
    %116 = arith.addf %110, %115 : vector<64x128xf32>
    %117 = vector.extract_strided_slice %103 {offsets = [2, 0, 0], sizes = [4, 16, 384], strides = [1, 1, 1]} : vector<6x16x384xf32> to vector<4x16x384xf32>
    %118 = vector.shape_cast %117 : vector<4x16x384xf32> to vector<64x384xf32>
    %c2_73 = arith.constant 2 : index
    %c0_74 = arith.constant 0 : index
    %c0_75 = arith.constant 0 : index
    %119 = vector.load %arg3[%c2_73, %c0_74, %c0_75] : memref<3x384x128xf32, #tpu.memory_space<vmem>>, vector<1x384x128xf32>
    %120 = vector.shape_cast %119 : vector<1x384x128xf32> to vector<384x128xf32>
    %cst_76 = arith.constant dense<0.000000e+00> : vector<64x128xf32>
    %121 = tpu.matmul %118, %120, %cst_76 {dimension_numbers = #tpu.dot_dimension_numbers<[1], [0], [0], [1], [0, 0, 1, 1], [], []>} : vector<64x384xf32>, vector<384x128xf32>, vector<64x128xf32> -> vector<64x128xf32>
    %122 = arith.addf %116, %121 : vector<64x128xf32>
    %123 = vector.broadcast %16 : vector<1x128xf32> to vector<64x128xf32>
    %124 = arith.addf %122, %123 : vector<64x128xf32>
    %cst_77 = arith.constant 0.000000e+00 : f32
    %125 = vector.broadcast %cst_77 : f32 to vector<64x128xf32>
    %126 = arith.maximumf %124, %125 : vector<64x128xf32>
    %127 = vector.shape_cast %126 : vector<64x128xf32> to vector<4x16x128xf32>
    %cst_78 = arith.constant 0.000000e+00 : f32
    %128 = vector.broadcast %cst_78 : f32 to vector<4x1x128xf32>
    %129 = tpu.concatenate %128, %127, %128 in 1 : vector<4x1x128xf32>, vector<4x16x128xf32>, vector<4x1x128xf32> -> vector<4x18x128xf32>
    %130 = arith.index_cast %95 : i32 to index
    %c0_79 = arith.constant 0 : index
    %c0_80 = arith.constant 0 : index
    %131 = vector.load %arg9[%130, %c0_79, %c0_80] : memref<10x18x128xf32, #tpu.memory_space<vmem>>, vector<4x18x128xf32>
    tpu.vector_store %arg9[%130, %c0_79, %c0_80], %129 {strides = array<i32>} : memref<10x18x128xf32, #tpu.memory_space<vmem>>, vector<4x18x128xf32>,
    %c3_i32 = arith.constant 3 : i32
    %c0_i32_81 = arith.constant 0 : i32
    %132 = arith.cmpi eq, %arg1, %c0_i32_81 : i32
    %133 = arith.extui %132 : i1 to i32
    %c0_i32_82 = arith.constant 0 : i32
    %134 = arith.cmpi ne, %133, %c0_i32_82 : i32
    scf.if %134 {
      %cst_130 = arith.constant 0.000000e+00 : f32
      %206 = vector.broadcast %cst_130 : f32 to vector<18x128xf32>
      %c0_131 = arith.constant 0 : index
      %c0_132 = arith.constant 0 : index
      %c0_133 = arith.constant 0 : index
      %207 = vector.load %arg9[%c0_131, %c0_132, %c0_133] : memref<10x18x128xf32, #tpu.memory_space<vmem>>, vector<1x18x128xf32>
      %208 = vector.shape_cast %207 : vector<1x18x128xf32> to vector<18x128xf32>
      %209 = vector.shape_cast %206 : vector<18x128xf32> to vector<1x18x128xf32>
      tpu.vector_store %arg9[%c0_131, %c0_132, %c0_133], %209 {strides = array<i32>} : memref<10x18x128xf32, #tpu.memory_space<vmem>>, vector<1x18x128xf32>,
    } else {
    }
    %c1_i32_83 = arith.constant 1 : i32
    %135 = arith.cmpi eq, %arg1, %c1_i32_83 : i32
    %136 = arith.extui %135 : i1 to i32
    %c0_i32_84 = arith.constant 0 : i32
    %137 = arith.cmpi ne, %136, %c0_i32_84 : i32
    scf.if %137 {
      %cst_130 = arith.constant 0.000000e+00 : f32
      %206 = vector.broadcast %cst_130 : f32 to vector<18x128xf32>
      %c9 = arith.constant 9 : index
      %c0_131 = arith.constant 0 : index
      %c0_132 = arith.constant 0 : index
      %207 = vector.load %arg9[%c9, %c0_131, %c0_132] : memref<10x18x128xf32, #tpu.memory_space<vmem>>, vector<1x18x128xf32>
      %208 = vector.shape_cast %207 : vector<1x18x128xf32> to vector<18x128xf32>
      %209 = vector.shape_cast %206 : vector<18x128xf32> to vector<1x18x128xf32>
      tpu.vector_store %arg9[%c9, %c0_131, %c0_132], %209 {strides = array<i32>} : memref<10x18x128xf32, #tpu.memory_space<vmem>>, vector<1x18x128xf32>,
    } else {
    }
    %c0_i32_85 = arith.constant 0 : i32
    %c4_i32_86 = arith.constant 4 : i32
    %138 = arith.muli %c0_i32_85, %c4_i32_86 : i32
    %c4_i32_87 = arith.constant 4 : i32
    %139 = arith.minsi %138, %c4_i32_87 : i32
    %140 = arith.index_cast %139 : i32 to index
    %c0_88 = arith.constant 0 : index
    %c0_89 = arith.constant 0 : index
    %141 = vector.load %arg9[%140, %c0_88, %c0_89] : memref<10x18x128xf32, #tpu.memory_space<vmem>>, vector<6x18x128xf32>
    %142 = vector.extract_strided_slice %141 {offsets = [0, 0, 0], sizes = [6, 16, 128], strides = [1, 1, 1]} : vector<6x18x128xf32> to vector<6x16x128xf32>
    %143 = vector.extract_strided_slice %141 {offsets = [0, 1, 0], sizes = [6, 16, 128], strides = [1, 1, 1]} : vector<6x18x128xf32> to vector<6x16x128xf32>
    %144 = vector.extract_strided_slice %141 {offsets = [0, 2, 0], sizes = [6, 16, 128], strides = [1, 1, 1]} : vector<6x18x128xf32> to vector<6x16x128xf32>
    %145 = tpu.concatenate %142, %143, %144 in 2 : vector<6x16x128xf32>, vector<6x16x128xf32>, vector<6x16x128xf32> -> vector<6x16x384xf32>
    %cst_90 = arith.constant 0.000000e+00 : f32
    %146 = vector.broadcast %cst_90 : f32 to vector<64x128xf32>
    %147 = vector.extract_strided_slice %145 {offsets = [0, 0, 0], sizes = [4, 16, 384], strides = [1, 1, 1]} : vector<6x16x384xf32> to vector<4x16x384xf32>
    %148 = vector.shape_cast %147 : vector<4x16x384xf32> to vector<64x384xf32>
    %c0_91 = arith.constant 0 : index
    %c0_92 = arith.constant 0 : index
    %c0_93 = arith.constant 0 : index
    %149 = vector.load %arg5[%c0_91, %c0_92, %c0_93] : memref<3x384x128xf32, #tpu.memory_space<vmem>>, vector<1x384x128xf32>
    %150 = vector.shape_cast %149 : vector<1x384x128xf32> to vector<384x128xf32>
    %cst_94 = arith.constant dense<0.000000e+00> : vector<64x128xf32>
    %151 = tpu.matmul %148, %150, %cst_94 {dimension_numbers = #tpu.dot_dimension_numbers<[1], [0], [0], [1], [0, 0, 1, 1], [], []>} : vector<64x384xf32>, vector<384x128xf32>, vector<64x128xf32> -> vector<64x128xf32>
    %152 = arith.addf %146, %151 : vector<64x128xf32>
    %153 = vector.extract_strided_slice %145 {offsets = [1, 0, 0], sizes = [4, 16, 384], strides = [1, 1, 1]} : vector<6x16x384xf32> to vector<4x16x384xf32>
    %154 = vector.shape_cast %153 : vector<4x16x384xf32> to vector<64x384xf32>
    %c1_95 = arith.constant 1 : index
    %c0_96 = arith.constant 0 : index
    %c0_97 = arith.constant 0 : index
    %155 = vector.load %arg5[%c1_95, %c0_96, %c0_97] : memref<3x384x128xf32, #tpu.memory_space<vmem>>, vector<1x384x128xf32>
    %156 = vector.shape_cast %155 : vector<1x384x128xf32> to vector<384x128xf32>
    %cst_98 = arith.constant dense<0.000000e+00> : vector<64x128xf32>
    %157 = tpu.matmul %154, %156, %cst_98 {dimension_numbers = #tpu.dot_dimension_numbers<[1], [0], [0], [1], [0, 0, 1, 1], [], []>} : vector<64x384xf32>, vector<384x128xf32>, vector<64x128xf32> -> vector<64x128xf32>
    %158 = arith.addf %152, %157 : vector<64x128xf32>
    %159 = vector.extract_strided_slice %145 {offsets = [2, 0, 0], sizes = [4, 16, 384], strides = [1, 1, 1]} : vector<6x16x384xf32> to vector<4x16x384xf32>
    %160 = vector.shape_cast %159 : vector<4x16x384xf32> to vector<64x384xf32>
    %c2_99 = arith.constant 2 : index
    %c0_100 = arith.constant 0 : index
    %c0_101 = arith.constant 0 : index
    %161 = vector.load %arg5[%c2_99, %c0_100, %c0_101] : memref<3x384x128xf32, #tpu.memory_space<vmem>>, vector<1x384x128xf32>
    %162 = vector.shape_cast %161 : vector<1x384x128xf32> to vector<384x128xf32>
    %cst_102 = arith.constant dense<0.000000e+00> : vector<64x128xf32>
    %163 = tpu.matmul %160, %162, %cst_102 {dimension_numbers = #tpu.dot_dimension_numbers<[1], [0], [0], [1], [0, 0, 1, 1], [], []>} : vector<64x384xf32>, vector<384x128xf32>, vector<64x128xf32> -> vector<64x128xf32>
    %164 = arith.addf %158, %163 : vector<64x128xf32>
    %165 = vector.broadcast %17 : vector<1x128xf32> to vector<64x128xf32>
    %166 = arith.addf %164, %165 : vector<64x128xf32>
    %cst_103 = arith.constant 0.000000e+00 : f32
    %167 = vector.broadcast %cst_103 : f32 to vector<64x128xf32>
    %168 = arith.maximumf %166, %167 : vector<64x128xf32>
    %169 = vector.shape_cast %168 : vector<64x128xf32> to vector<1x4x16x128xf32>
    %c0_104 = arith.constant 0 : index
    %170 = arith.index_cast %139 : i32 to index
    %c0_105 = arith.constant 0 : index
    %c0_106 = arith.constant 0 : index
    %171 = vector.load %arg7[%c0_104, %170, %c0_105, %c0_106] : memref<1x8x16x128xf32, #tpu.memory_space<vmem>>, vector<1x4x16x128xf32>
    tpu.vector_store %arg7[%c0_104, %170, %c0_105, %c0_106], %169 {strides = array<i32>} : memref<1x8x16x128xf32, #tpu.memory_space<vmem>>, vector<1x4x16x128xf32>,
    %c1_i32_107 = arith.constant 1 : i32
    %c4_i32_108 = arith.constant 4 : i32
    %172 = arith.muli %c1_i32_107, %c4_i32_108 : i32
    %c4_i32_109 = arith.constant 4 : i32
    %173 = arith.minsi %172, %c4_i32_109 : i32
    %174 = arith.index_cast %173 : i32 to index
    %c0_110 = arith.constant 0 : index
    %c0_111 = arith.constant 0 : index
    %175 = vector.load %arg9[%174, %c0_110, %c0_111] : memref<10x18x128xf32, #tpu.memory_space<vmem>>, vector<6x18x128xf32>
    %176 = vector.extract_strided_slice %175 {offsets = [0, 0, 0], sizes = [6, 16, 128], strides = [1, 1, 1]} : vector<6x18x128xf32> to vector<6x16x128xf32>
    %177 = vector.extract_strided_slice %175 {offsets = [0, 1, 0], sizes = [6, 16, 128], strides = [1, 1, 1]} : vector<6x18x128xf32> to vector<6x16x128xf32>
    %178 = vector.extract_strided_slice %175 {offsets = [0, 2, 0], sizes = [6, 16, 128], strides = [1, 1, 1]} : vector<6x18x128xf32> to vector<6x16x128xf32>
    %179 = tpu.concatenate %176, %177, %178 in 2 : vector<6x16x128xf32>, vector<6x16x128xf32>, vector<6x16x128xf32> -> vector<6x16x384xf32>
    %cst_112 = arith.constant 0.000000e+00 : f32
    %180 = vector.broadcast %cst_112 : f32 to vector<64x128xf32>
    %181 = vector.extract_strided_slice %179 {offsets = [0, 0, 0], sizes = [4, 16, 384], strides = [1, 1, 1]} : vector<6x16x384xf32> to vector<4x16x384xf32>
    %182 = vector.shape_cast %181 : vector<4x16x384xf32> to vector<64x384xf32>
    %c0_113 = arith.constant 0 : index
    %c0_114 = arith.constant 0 : index
    %c0_115 = arith.constant 0 : index
    %183 = vector.load %arg5[%c0_113, %c0_114, %c0_115] : memref<3x384x128xf32, #tpu.memory_space<vmem>>, vector<1x384x128xf32>
    %184 = vector.shape_cast %183 : vector<1x384x128xf32> to vector<384x128xf32>
    %cst_116 = arith.constant dense<0.000000e+00> : vector<64x128xf32>
    %185 = tpu.matmul %182, %184, %cst_116 {dimension_numbers = #tpu.dot_dimension_numbers<[1], [0], [0], [1], [0, 0, 1, 1], [], []>} : vector<64x384xf32>, vector<384x128xf32>, vector<64x128xf32> -> vector<64x128xf32>
    %186 = arith.addf %180, %185 : vector<64x128xf32>
    %187 = vector.extract_strided_slice %179 {offsets = [1, 0, 0], sizes = [4, 16, 384], strides = [1, 1, 1]} : vector<6x16x384xf32> to vector<4x16x384xf32>
    %188 = vector.shape_cast %187 : vector<4x16x384xf32> to vector<64x384xf32>
    %c1_117 = arith.constant 1 : index
    %c0_118 = arith.constant 0 : index
    %c0_119 = arith.constant 0 : index
    %189 = vector.load %arg5[%c1_117, %c0_118, %c0_119] : memref<3x384x128xf32, #tpu.memory_space<vmem>>, vector<1x384x128xf32>
    %190 = vector.shape_cast %189 : vector<1x384x128xf32> to vector<384x128xf32>
    %cst_120 = arith.constant dense<0.000000e+00> : vector<64x128xf32>
    %191 = tpu.matmul %188, %190, %cst_120 {dimension_numbers = #tpu.dot_dimension_numbers<[1], [0], [0], [1], [0, 0, 1, 1], [], []>} : vector<64x384xf32>, vector<384x128xf32>, vector<64x128xf32> -> vector<64x128xf32>
    %192 = arith.addf %186, %191 : vector<64x128xf32>
    %193 = vector.extract_strided_slice %179 {offsets = [2, 0, 0], sizes = [4, 16, 384], strides = [1, 1, 1]} : vector<6x16x384xf32> to vector<4x16x384xf32>
    %194 = vector.shape_cast %193 : vector<4x16x384xf32> to vector<64x384xf32>
    %c2_121 = arith.constant 2 : index
    %c0_122 = arith.constant 0 : index
    %c0_123 = arith.constant 0 : index
    %195 = vector.load %arg5[%c2_121, %c0_122, %c0_123] : memref<3x384x128xf32, #tpu.memory_space<vmem>>, vector<1x384x128xf32>
    %196 = vector.shape_cast %195 : vector<1x384x128xf32> to vector<384x128xf32>
    %cst_124 = arith.constant dense<0.000000e+00> : vector<64x128xf32>
    %197 = tpu.matmul %194, %196, %cst_124 {dimension_numbers = #tpu.dot_dimension_numbers<[1], [0], [0], [1], [0, 0, 1, 1], [], []>} : vector<64x384xf32>, vector<384x128xf32>, vector<64x128xf32> -> vector<64x128xf32>
    %198 = arith.addf %192, %197 : vector<64x128xf32>
    %199 = vector.broadcast %17 : vector<1x128xf32> to vector<64x128xf32>
    %200 = arith.addf %198, %199 : vector<64x128xf32>
    %cst_125 = arith.constant 0.000000e+00 : f32
    %201 = vector.broadcast %cst_125 : f32 to vector<64x128xf32>
    %202 = arith.maximumf %200, %201 : vector<64x128xf32>
    %203 = vector.shape_cast %202 : vector<64x128xf32> to vector<1x4x16x128xf32>
    %c0_126 = arith.constant 0 : index
    %204 = arith.index_cast %173 : i32 to index
    %c0_127 = arith.constant 0 : index
    %c0_128 = arith.constant 0 : index
    %205 = vector.load %arg7[%c0_126, %204, %c0_127, %c0_128] : memref<1x8x16x128xf32, #tpu.memory_space<vmem>>, vector<1x4x16x128xf32>
    tpu.vector_store %arg7[%c0_126, %204, %c0_127, %c0_128], %203 {strides = array<i32>} : memref<1x8x16x128xf32, #tpu.memory_space<vmem>>, vector<1x4x16x128xf32>,
    %c2_i32_129 = arith.constant 2 : i32
    return
  }
  func.func @transform_1(%arg0: i32, %arg1: i32) -> (i32, i32, i32) {
    %c0_i32 = arith.constant 0 : i32
    %c0_i32_0 = arith.constant 0 : i32
    %c0_i32_1 = arith.constant 0 : i32
    %c0_i32_2 = arith.constant 0 : i32
    return %c0_i32, %c0_i32_0, %c0_i32_1 : i32, i32, i32
  }
  func.func @transform_2(%arg0: i32, %arg1: i32) -> (i32, i32) {
    %c0_i32 = arith.constant 0 : i32
    %c0_i32_0 = arith.constant 0 : i32
    %c0_i32_1 = arith.constant 0 : i32
    return %c0_i32, %c0_i32_0 : i32, i32
  }
  func.func @transform_3(%arg0: i32, %arg1: i32) -> (i32, i32, i32) {
    %c0_i32 = arith.constant 0 : i32
    %c0_i32_0 = arith.constant 0 : i32
    %c0_i32_1 = arith.constant 0 : i32
    %c0_i32_2 = arith.constant 0 : i32
    return %c0_i32, %c0_i32_0, %c0_i32_1 : i32, i32, i32
  }
  func.func @transform_4(%arg0: i32, %arg1: i32) -> (i32, i32) {
    %c0_i32 = arith.constant 0 : i32
    %c0_i32_0 = arith.constant 0 : i32
    %c0_i32_1 = arith.constant 0 : i32
    return %c0_i32, %c0_i32_0 : i32, i32
  }
  func.func @transform_5(%arg0: i32, %arg1: i32) -> (i32, i32, i32, i32) {
    %c0_i32 = arith.constant 0 : i32
    %c0_i32_0 = arith.constant 0 : i32
    %c0_i32_1 = arith.constant 0 : i32
    return %arg0, %arg1, %c0_i32, %c0_i32_0 : i32, i32, i32, i32
  }
}

</mosaic_0001>

<llo_original>
// kernel: tpu_custom_call.1
$region0: #{tpu_custom_call.1}
  #allocation0 [shape = 'u32[]', space=smem, size = 0x4, offset = 0x4, fixed_abs, tag = 'smem constant byte address 0x4 - core index']
  #allocation1 [shape = 'u32[72,128]{1,0:T(1,128)}', space=vmem, size = 0x9000, scoped, tag = 'internal scratch']
  #allocation2 [shape = 'f32[2,12,18,128]{3,2,1,0:T(8,128)}', space=vmem, size = 0x48000, scoped, tag = 'scratch operand']
  #allocation3 [shape = 'f32[10,18,128]{2,1,0:T(8,128)}', space=vmem, size = 0x1e000, scoped, tag = 'scratch operand']
  #allocation4 [shape = 's32[2]{0}', space=sflag, size = 0x8, scoped, tag = 'scratch operand']
  #allocation9 [shape = 's32[]', space=sflag, size = 0x4, offset = 0, fixed_abs, tag = 'sflag constant byte address 0x0 - dummy sync flag']
  #allocation10 [shape = 's32[]', space=sflag, size = 0x4, offset = 0, fixed_abs, tag = 'sflag constant byte address 0x0 - dummy sync flag']
  %s0 = inlined_call_operand.vmem [shape: f32[2,20,18,128], index: 0, kind: input, shape index: {}]
  %s1 = inlined_call_operand.vmem [shape: f32[3,384,128], index: 1, kind: input, shape index: {}]
  %s2 = inlined_call_operand.vmem [shape: f32[1,128], index: 2, kind: input, shape index: {}]
  %s3 = inlined_call_operand.hbm [shape: f32[3,384,128], index: 3, kind: input, shape index: {}]
  %s4 = inlined_call_operand.vmem [shape: f32[1,128], index: 4, kind: input, shape index: {}]
  %s5 = inlined_call_operand.hbm [shape: f32[2,16,16,128], index: 5, kind: output, shape index: {}]
  %s6 = sld [smem:[#allocation0]]
  $region113: #{tpu_custom_call.1} parent=0
    _
  %s8 = ssub.s32 1, %s6
  %s9 = scalar_select 0, %s8, %s6
  $region1: #{tpu_custom_call.1} parent=0
    #allocation5 [shape = 'u8[589824]{0}', space=vmem, size = 0x90000, scoped, tag = 'input window, operand 3, single buffered']
    #allocation6 [shape = 's32[2]{0}', space=sflag, size = 0x8, scoped, tag = 'scoped memory for tpu_custom_call.1']
    #allocation7 [shape = 's32[2]{0}', space=sflag, size = 0x8, scoped, tag = 'scoped memory for tpu_custom_call.1']
    #allocation8 [shape = 'u8[131072]{0}', space=vmem, size = 0x20000, scoped, tag = 'output window, operand 0']
    %10 = vsyncpa [#allocation6], 0
    %11 = vsyncpa [#allocation7], 0
    %s12 = scalar_lea.sflag [#allocation7], 1
    %13 = vsyncpa %s12, 0
    loop: start=0, step=1, limit=6
    $region2: #{tpu_custom_call.1} parent=1 // loop_pre_header
      _
    $region3: #{tpu_custom_call.1} parent=1 // loop_header
      %s15 = sphi 0, %s19
      %p16 = scmp.ge.s32.totalorder %s15, 6
      %s22 = sphi 0, %s34
      %s23 = sphi 0, %s30
      %s24 = sphi 0, %s22
      %s25 = sphi 0, %s23
      %s26 = sphi 0, %s24
      %s27 = sphi 0, %s25
      %s35 = sphi 0, %s35
      %s37 = sphi 0, %s35
      %s38 = sphi 0, %s37
      %s52 = sphi 0, %s38
      %s56 = sphi 0, %s56
      %s58 = sphi 0, %s56
      %s59 = sphi 0, %s58
      %s73 = sphi 0, %s59
      %s77 = sphi 0, %s77
      %s79 = sphi 0, %s77
      %s80 = sphi 0, %s79
      %s94 = sphi 0, %s80
      %s98 = sphi 0, %s98
      %s100 = sphi 0, %s98
      %s101 = sphi 0, %s100
      %s115 = sphi 0, %s101
      %s123 = sphi 0, %s125
      %s126 = sphi 0, %s123
      %s127 = sphi 0, %s126
      %s143 = sphi 0, %s127
    $region4: #{tpu_custom_call.1} parent=1 // loop_header_branch
      %18 = sbr.rel (%p16) target = $region8
    $region5: #{tpu_custom_call.1} parent=1 // loop_body
      %s20 = ssub.s32 %s15, 1
      %s21 = ssub.s32 %s15, 2
      %s28 = sadd.s32 1, %s23
      %p29 = scmp.ge.s32.totalorder %s28, 2
      %s30 = scalar_select %p29, 0, %s28
      %s31 = sadd.s32 1, %s22
      %s32 = scalar_select %p29, %s31, %s22
      %p33 = scmp.ge.s32.totalorder %s32, 2
      %s34 = scalar_select %p33, 0, %s32
      %s36 = sadd.s32 %s35, 1
      %p39 = scmp.eq.s32.totalorder %s15, 3
      %p40 = scmp.ne.s32.totalorder %s35, %s37
      %p41 = scmp.eq.s32.totalorder %s15, 0
      %p42 = por %p40, %p41
      %p43 = scmp.ne.s32.totalorder %s35, %s37
      %p44 = scmp.eq.s32.totalorder %s20, 3
      %p45 = por %p43, %p44
      %p46 = scmp.ne.s32.totalorder %s37, %s38
      %p47 = scmp.eq.s32.totalorder %s20, 0
      %p48 = por %p46, %p47
      %p49 = scmp.ne.s32.totalorder %s37, %s38
      %p50 = scmp.eq.s32.totalorder %s21, 3
      %p51 = por %p49, %p50
      %p53 = scmp.ne.s32.totalorder %s38, %s52
      %p54 = scmp.eq.s32.totalorder %s21, 0
      %p55 = por %p53, %p54
      %s57 = sadd.s32 %s56, 1
      %p60 = scmp.eq.s32.totalorder %s15, 3
      %p61 = scmp.ne.s32.totalorder %s56, %s58
      %p62 = scmp.eq.s32.totalorder %s15, 0
      %p63 = por %p61, %p62
      %p64 = scmp.ne.s32.totalorder %s56, %s58
      %p65 = scmp.eq.s32.totalorder %s20, 3
      %p66 = por %p64, %p65
      %p67 = scmp.ne.s32.totalorder %s58, %s59
      %p68 = scmp.eq.s32.totalorder %s20, 0
      %p69 = por %p67, %p68
      %p70 = scmp.ne.s32.totalorder %s58, %s59
      %p71 = scmp.eq.s32.totalorder %s21, 3
      %p72 = por %p70, %p71
      %p74 = scmp.ne.s32.totalorder %s59, %s73
      %p75 = scmp.eq.s32.totalorder %s21, 0
      %p76 = por %p74, %p75
      %s78 = sadd.s32 %s77, 1
      %p81 = scmp.eq.s32.totalorder %s15, 3
      %p82 = scmp.ne.s32.totalorder %s77, %s79
      %p83 = scmp.eq.s32.totalorder %s15, 0
      %p84 = por %p82, %p83
      %p85 = scmp.ne.s32.totalorder %s77, %s79
      %p86 = scmp.eq.s32.totalorder %s20, 3
      %p87 = por %p85, %p86
      %p88 = scmp.ne.s32.totalorder %s79, %s80
      %p89 = scmp.eq.s32.totalorder %s20, 0
      %p90 = por %p88, %p89
      %p91 = scmp.ne.s32.totalorder %s79, %s80
      %p92 = scmp.eq.s32.totalorder %s21, 3
      %p93 = por %p91, %p92
      %p95 = scmp.ne.s32.totalorder %s80, %s94
      %p96 = scmp.eq.s32.totalorder %s21, 0
      %p97 = por %p95, %p96
      %s99 = sadd.s32 %s98, 1
      %p102 = scmp.eq.s32.totalorder %s15, 3
      %p103 = scmp.ne.s32.totalorder %s98, %s100
      %p104 = scmp.eq.s32.totalorder %s15, 0
      %p105 = por %p103, %p104
      %p106 = scmp.ne.s32.totalorder %s98, %s100
      %p107 = scmp.eq.s32.totalorder %s20, 3
      %p108 = por %p106, %p107
      %p109 = scmp.ne.s32.totalorder %s100, %s101
      %p110 = scmp.eq.s32.totalorder %s20, 0
      %p111 = por %p109, %p110
      %p112 = scmp.ne.s32.totalorder %s100, %s101
      %p113 = scmp.eq.s32.totalorder %s21, 3
      %p114 = por %p112, %p113
      %p116 = scmp.ne.s32.totalorder %s101, %s115
      %p117 = scmp.eq.s32.totalorder %s21, 0
      %p118 = por %p116, %p117
      %s119 = ssub.s32 %s22, %s34
      %s120 = ssub.s32 %s23, %s30
      %s121 = sor.u32 %s119, %s120
      %p122 = scmp.eq.s32.totalorder %s121, 0
      %s124 = sadd.s32 %s123, 1
      %s125 = scalar_select %p122, %s123, %s124
      %p128 = pneg %p122
      %p129 = scmp.eq.s32.totalorder %s15, 3
      %p130 = por %p128, %p129
      %p131 = scmp.ne.s32.totalorder %s123, %s126
      %p132 = scmp.eq.s32.totalorder %s15, 0
      %p133 = por %p131, %p132
      %p134 = scmp.ne.s32.totalorder %s123, %s126
      %p135 = scmp.eq.s32.totalorder %s20, 3
      %p136 = por %p134, %p135
      %p137 = scmp.ne.s32.totalorder %s126, %s127
      %p138 = scmp.eq.s32.totalorder %s20, 0
      %p139 = por %p137, %p138
      %p140 = scmp.ne.s32.totalorder %s126, %s127
      %p141 = scmp.eq.s32.totalorder %s21, 3
      %p142 = por %p140, %p141
      %p144 = scmp.ne.s32.totalorder %s127, %s143
      %p145 = scmp.eq.s32.totalorder %s21, 0
      %p146 = por %p144, %p145
      %p147 = scmp.le.s32.totalorder 1, %s15
      %p148 = scmp.lt.s32.totalorder %s15, 5
      %p149 = pnand %p147, %p148
      %p150 = pneg %p149
      // Predicated region
      $region9: #{tpu_custom_call.1} parent=5 // pred_check
        _
      $region10: #{tpu_custom_call.1} parent=5 // pred_check_branch
        %152 = sbr.rel (%p149) target = $region12
      $region11: #{tpu_custom_call.1} parent=5 // pred_region
        %s153 = ssub.s32 %s15, 1
        // Predicated region
        $region13: #{tpu_custom_call.1} parent=11 // pred_check
          %p154 = pneg %p48
        $region14: #{tpu_custom_call.1} parent=11 // pred_check_branch
          %156 = sbr.rel (%p154) target = $region16
        $region15: #{tpu_custom_call.1} parent=11 // pred_region
          _
        $region16: #{tpu_custom_call.1} parent=11 // pred_fallthru
          _
        // Predicated region
        $region17: #{tpu_custom_call.1} parent=11 // pred_check
          %p157 = pneg %p69
        $region18: #{tpu_custom_call.1} parent=11 // pred_check_branch
          %159 = sbr.rel (%p157) target = $region20
        $region19: #{tpu_custom_call.1} parent=11 // pred_region
          _
        $region20: #{tpu_custom_call.1} parent=11 // pred_fallthru
          _
        // Predicated region
        $region21: #{tpu_custom_call.1} parent=11 // pred_check
          %p160 = pneg %p90
        $region22: #{tpu_custom_call.1} parent=11 // pred_check_branch
          %162 = sbr.rel (%p160) target = $region24
        $region23: #{tpu_custom_call.1} parent=11 // pred_region
          %164 = vsyncadd [#allocation6], 0
          %s165 = sshll.u32 %s3, 4
          %s166 = int_to_ptr.hbm [resolvable:$true] %s165
          %s167 = sshll.u32 [#allocation5], 4
          %s168 = int_to_ptr.vmem [resolvable:$true] %s167
          %173 = dma.hbm_to_vmem [thread:$0]  %s166, 18432, %s168, [#allocation6], 128, 128, 8
        $region24: #{tpu_custom_call.1} parent=11 // pred_fallthru
          _
        // Predicated region
        $region25: #{tpu_custom_call.1} parent=11 // pred_check
          %p174 = pneg %p111
        $region26: #{tpu_custom_call.1} parent=11 // pred_check_branch
          %176 = sbr.rel (%p174) target = $region28
        $region27: #{tpu_custom_call.1} parent=11 // pred_region
          _
        $region28: #{tpu_custom_call.1} parent=11 // pred_fallthru
          _
      $region12: #{tpu_custom_call.1} parent=5 // pred_fallthru
        _
      %p177 = scmp.lt.s32.totalorder %s15, 4
      // Predicated region
      $region29: #{tpu_custom_call.1} parent=5 // pred_check
        %p178 = pneg %p177
      $region30: #{tpu_custom_call.1} parent=5 // pred_check_branch
        %180 = sbr.rel (%p178) target = $region32
      $region31: #{tpu_custom_call.1} parent=5 // pred_region
        _
      $region32: #{tpu_custom_call.1} parent=5 // pred_fallthru
        _
      %p181 = scmp.le.s32.totalorder 1, %s15
      %p182 = scmp.lt.s32.totalorder %s15, 5
      %p183 = pnand %p181, %p182
      %p184 = pneg %p183
      // Predicated region
      $region33: #{tpu_custom_call.1} parent=5 // pred_check
        _
      $region34: #{tpu_custom_call.1} parent=5 // pred_check_branch
        %186 = sbr.rel (%p183) target = $region36
      $region35: #{tpu_custom_call.1} parent=5 // pred_region
        %s187 = ssub.s32 %s15, 1
        // Predicated region
        $region37: #{tpu_custom_call.1} parent=35 // pred_check
          %p188 = pneg %p90
        $region38: #{tpu_custom_call.1} parent=35 // pred_check_branch
          %190 = sbr.rel (%p188) target = $region40
        $region39: #{tpu_custom_call.1} parent=35 // pred_region
          %192 = dma.done [#allocation6], 18432
        $region40: #{tpu_custom_call.1} parent=35 // pred_fallthru
          _
        %p193 = pneg %p48
        %p194 = pneg %p45
        %p195 = pneg %p69
        %p196 = pneg %p66
        %p197 = pneg %p90
        %p198 = pneg %p87
        %p199 = pneg %p111
        %p200 = pneg %p108
        %p201 = pneg %p139
        %p202 = pneg %p136
        %s203 = sand.u32 %s126, 1
        %s204 = scalar_lea.sflag [#allocation7], %s203
        %s205 = sand.u32 %s126, 1
        %s206 = smul.addr %s205, 128
        %s207 = scalar_lea.vmem [#allocation8], %s206
        %s208 = smul.u32 8, %s25
        %p209 = scmp.lt.s32.totalorder %s25, 0
        %s210 = ssub.s32 0, %s25
        %s211 = scalar_select %p209, %s210, %s25
        %s212 = sand.u32 %s211, 1
        %s213 = ssub.s32 0, %s212
        %s214 = scalar_select %p209, %s213, %s212
        %p215 = scmp.eq.s32.totalorder %s25, 0
        // Predicated region
        $region41: #{tpu_custom_call.1} parent=35 // pred_check
          %p216 = pneg %p215
        $region42: #{tpu_custom_call.1} parent=35 // pred_check_branch
          %218 = sbr.rel (%p216) target = $region44
        $region43: #{tpu_custom_call.1} parent=35 // pred_region
          %s219 = smul.u32 0, 24
          %s220 = smul.u32 %s24, 480
          %s221 = sadd.s32 %s219, %s220
          %s222 = scalar_lea.vmem %s0, %s221
          // Predicated region
          $region45: #{tpu_custom_call.1} parent=43 // pred_check
            _
          $region46: #{tpu_custom_call.1} parent=43 // pred_check_branch
            %224 = sbr.rel (0) target = $region48
          $region47: #{tpu_custom_call.1} parent=43 // pred_region
            %s225 = scalar_lea.vmem %s222, 16
            %s226 = scalar_lea.vmem [#allocation2], 16
            loop: start=0, step=1, limit=1
            $region49: #{tpu_custom_call.1} parent=47 // loop_pre_header
              _
            $region50: #{tpu_custom_call.1} parent=47 // loop_header
              %s228 = sphi 0, %s232
              %p229 = scmp.ge.s32.totalorder %s228, 1
              %s233 = sphi %s222, %s222
              %s234 = sphi [#allocation2], [#allocation2]
            $region51: #{tpu_custom_call.1} parent=47 // loop_header_branch
              %231 = sbr.rel (%p229) target = $region55
            $region52: #{tpu_custom_call.1} parent=47 // loop_body
              %v235 = vld [vmem:[%s233] sm:$0xff]
              %236 = vst [vmem:[%s234] sm:$0xff] %v235
              %v237 = vld [vmem:[%s233 + $0x8] sm:$0xff]
              %238 = vst [vmem:[%s234 + $0x8] sm:$0xff] %v237
              %v239 = vld [vmem:[%s233 + $0x18] sm:$0xff]
              %240 = vst [vmem:[%s234 + $0x18] sm:$0xff] %v239
              %v241 = vld [vmem:[%s233 + $0x20] sm:$0xff]
              %242 = vst [vmem:[%s234 + $0x20] sm:$0xff] %v241
              %v243 = vld [vmem:[%s233 + $0x30] sm:$0xff]
              %244 = vst [vmem:[%s234 + $0x30] sm:$0xff] %v243
              %v245 = vld [vmem:[%s233 + $0x38] sm:$0xff]
              %246 = vst [vmem:[%s234 + $0x38] sm:$0xff] %v245
              %v247 = vld [vmem:[%s233 + $0x48] sm:$0xff]
              %248 = vst [vmem:[%s234 + $0x48] sm:$0xff] %v247
              %v249 = vld [vmem:[%s233 + $0x50] sm:$0xff]
              %250 = vst [vmem:[%s234 + $0x50] sm:$0xff] %v249
              %v251 = vld [vmem:[%s233 + $0x60] sm:$0xff]
              %252 = vst [vmem:[%s234 + $0x60] sm:$0xff] %v251
              %v253 = vld [vmem:[%s233 + $0x68] sm:$0xff]
              %254 = vst [vmem:[%s234 + $0x68] sm:$0xff] %v253
              %v255 = vld [vmem:[%s233 + $0x78] sm:$0xff]
              %256 = vst [vmem:[%s234 + $0x78] sm:$0xff] %v255
              %v257 = vld [vmem:[%s233 + $0x80] sm:$0xff]
              %258 = vst [vmem:[%s234 + $0x80] sm:$0xff] %v257
              %v259 = vld [vmem:[%s233 + $0x90] sm:$0xff]
              %260 = vst [vmem:[%s234 + $0x90] sm:$0xff] %v259
              %v261 = vld [vmem:[%s233 + $0x98] sm:$0xff]
              %262 = vst [vmem:[%s234 + $0x98] sm:$0xff] %v261
              %v263 = vld [vmem:[%s233 + $0xa8] sm:$0xff]
              %264 = vst [vmem:[%s234 + $0xa8] sm:$0xff] %v263
              %v265 = vld [vmem:[%s233 + $0xb0] sm:$0xff]
              %266 = vst [vmem:[%s234 + $0xb0] sm:$0xff] %v265
              %v267 = vld [vmem:[%s233 + $0xc0] sm:$0xff]
              %268 = vst [vmem:[%s234 + $0xc0] sm:$0xff] %v267
              %v269 = vld [vmem:[%s233 + $0xc8] sm:$0xff]
              %270 = vst [vmem:[%s234 + $0xc8] sm:$0xff] %v269
              %v271 = vld [vmem:[%s233 + $0xd8] sm:$0xff]
              %272 = vst [vmem:[%s234 + $0xd8] sm:$0xff] %v271
              %v273 = vld [vmem:[%s233 + $0xe0] sm:$0xff]
              %274 = vst [vmem:[%s234 + $0xe0] sm:$0xff] %v273
              %v275 = vld [vmem:[%s233 + $0xf0] sm:$0xff]
              %276 = vst [vmem:[%s234 + $0xf0] sm:$0xff] %v275
              %v277 = vld [vmem:[%s233 + $0xf8] sm:$0xff]
              %278 = vst [vmem:[%s234 + $0xf8] sm:$0xff] %v277
              %v279 = vld [vmem:[%s233 + $0x108] sm:$0xff]
              %280 = vst [vmem:[%s234 + $0x108] sm:$0xff] %v279
              %v281 = vld [vmem:[%s233 + $0x110] sm:$0xff]
              %282 = vst [vmem:[%s234 + $0x110] sm:$0xff] %v281
            $region53: #{tpu_custom_call.1} parent=47 // loop_footer
              %s232 = sadd.s32 1, %s228
            $region54: #{tpu_custom_call.1} parent=47 // loop_footer_branch
              %227 = sbr.rel target = $region50
            $region55: #{tpu_custom_call.1} parent=47 // loop_exit
              _
            %s284 = ssub.s32 4, 1
            loop: start=0, step=1, limit=1
            $region56: #{tpu_custom_call.1} parent=47 // loop_pre_header
              _
            $region57: #{tpu_custom_call.1} parent=47 // loop_header
              %s286 = sphi 0, %s290
              %p287 = scmp.ge.s32.totalorder %s286, 1
              %s291 = sphi %s225, %s225
              %s292 = sphi %s226, %s226
            $region58: #{tpu_custom_call.1} parent=47 // loop_header_branch
              %289 = sbr.rel (%p287) target = $region62
            $region59: #{tpu_custom_call.1} parent=47 // loop_body
              %v293 = vld [vmem:[%s291] sm:%s284]
              %294 = vst [vmem:[%s292] sm:%s284] %v293
              %v295 = vld [vmem:[%s291 + $0x18] sm:%s284]
              %296 = vst [vmem:[%s292 + $0x18] sm:%s284] %v295
              %v297 = vld [vmem:[%s291 + $0x30] sm:%s284]
              %298 = vst [vmem:[%s292 + $0x30] sm:%s284] %v297
              %v299 = vld [vmem:[%s291 + $0x48] sm:%s284]
              %300 = vst [vmem:[%s292 + $0x48] sm:%s284] %v299
              %v301 = vld [vmem:[%s291 + $0x60] sm:%s284]
              %302 = vst [vmem:[%s292 + $0x60] sm:%s284] %v301
              %v303 = vld [vmem:[%s291 + $0x78] sm:%s284]
              %304 = vst [vmem:[%s292 + $0x78] sm:%s284] %v303
              %v305 = vld [vmem:[%s291 + $0x90] sm:%s284]
              %306 = vst [vmem:[%s292 + $0x90] sm:%s284] %v305
              %v307 = vld [vmem:[%s291 + $0xa8] sm:%s284]
              %308 = vst [vmem:[%s292 + $0xa8] sm:%s284] %v307
              %v309 = vld [vmem:[%s291 + $0xc0] sm:%s284]
              %310 = vst [vmem:[%s292 + $0xc0] sm:%s284] %v309
              %v311 = vld [vmem:[%s291 + $0xd8] sm:%s284]
              %312 = vst [vmem:[%s292 + $0xd8] sm:%s284] %v311
              %v313 = vld [vmem:[%s291 + $0xf0] sm:%s284]
              %314 = vst [vmem:[%s292 + $0xf0] sm:%s284] %v313
              %v315 = vld [vmem:[%s291 + $0x108] sm:%s284]
              %316 = vst [vmem:[%s292 + $0x108] sm:%s284] %v315
            $region60: #{tpu_custom_call.1} parent=47 // loop_footer
              %s290 = sadd.s32 1, %s286
            $region61: #{tpu_custom_call.1} parent=47 // loop_footer_branch
              %285 = sbr.rel target = $region57
            $region62: #{tpu_custom_call.1} parent=47 // loop_exit
              _
          $region48: #{tpu_custom_call.1} parent=43 // pred_fallthru
            _
          // Predicated region
          $region63: #{tpu_custom_call.1} parent=43 // pred_check
            _
          $region64: #{tpu_custom_call.1} parent=43 // pred_check_branch
            %319 = sbr.rel (0) target = $region66
          $region65: #{tpu_custom_call.1} parent=43 // pred_region
            %320 = vsyncadd [#allocation4], 3456
          $region66: #{tpu_custom_call.1} parent=43 // pred_fallthru
            _
        $region44: #{tpu_custom_call.1} parent=35 // pred_fallthru
          _
        %s321 = sadd.s32 %s25, 1
        %p322 = scmp.lt.s32.totalorder %s321, 2
        // Predicated region
        $region67: #{tpu_custom_call.1} parent=35 // pred_check
          %p323 = pneg %p322
        $region68: #{tpu_custom_call.1} parent=35 // pred_check_branch
          %325 = sbr.rel (%p323) target = $region70
        $region69: #{tpu_custom_call.1} parent=35 // pred_region
          %s326 = ssub.s32 1, %s214
          %s327 = smul.u32 %s321, 8
          %s328 = smul.u32 %s327, 24
          %s329 = smul.u32 %s24, 480
          %s330 = sadd.s32 %s328, %s329
          %s331 = scalar_lea.vmem %s0, %s330
          %s332 = smul.u32 %s326, 288
          %s333 = scalar_lea.vmem [#allocation2], %s332
          %s334 = scalar_lea.sflag [#allocation4], %s326
          // Predicated region
          $region71: #{tpu_custom_call.1} parent=69 // pred_check
            _
          $region72: #{tpu_custom_call.1} parent=69 // pred_check_branch
            %336 = sbr.rel (0) target = $region74
          $region73: #{tpu_custom_call.1} parent=69 // pred_region
            %s337 = scalar_lea.vmem %s331, 16
            %s338 = scalar_lea.vmem %s333, 16 [#allocation2]
            loop: start=0, step=1, limit=1
            $region75: #{tpu_custom_call.1} parent=73 // loop_pre_header
              _
            $region76: #{tpu_custom_call.1} parent=73 // loop_header
              %s340 = sphi 0, %s344
              %p341 = scmp.ge.s32.totalorder %s340, 1
              %s345 = sphi %s331, %s331
              %s346 = sphi %s333, %s333
            $region77: #{tpu_custom_call.1} parent=73 // loop_header_branch
              %343 = sbr.rel (%p341) target = $region81
            $region78: #{tpu_custom_call.1} parent=73 // loop_body
              %v347 = vld [vmem:[%s345] sm:$0xff]
              %348 = vst [vmem:[%s346] sm:$0xff] %v347
              %v349 = vld [vmem:[%s345 + $0x8] sm:$0xff]
              %350 = vst [vmem:[%s346 + $0x8] sm:$0xff] %v349
              %v351 = vld [vmem:[%s345 + $0x18] sm:$0xff]
              %352 = vst [vmem:[%s346 + $0x18] sm:$0xff] %v351
              %v353 = vld [vmem:[%s345 + $0x20] sm:$0xff]
              %354 = vst [vmem:[%s346 + $0x20] sm:$0xff] %v353
              %v355 = vld [vmem:[%s345 + $0x30] sm:$0xff]
              %356 = vst [vmem:[%s346 + $0x30] sm:$0xff] %v355
              %v357 = vld [vmem:[%s345 + $0x38] sm:$0xff]
              %358 = vst [vmem:[%s346 + $0x38] sm:$0xff] %v357
              %v359 = vld [vmem:[%s345 + $0x48] sm:$0xff]
              %360 = vst [vmem:[%s346 + $0x48] sm:$0xff] %v359
              %v361 = vld [vmem:[%s345 + $0x50] sm:$0xff]
              %362 = vst [vmem:[%s346 + $0x50] sm:$0xff] %v361
              %v363 = vld [vmem:[%s345 + $0x60] sm:$0xff]
              %364 = vst [vmem:[%s346 + $0x60] sm:$0xff] %v363
              %v365 = vld [vmem:[%s345 + $0x68] sm:$0xff]
              %366 = vst [vmem:[%s346 + $0x68] sm:$0xff] %v365
              %v367 = vld [vmem:[%s345 + $0x78] sm:$0xff]
              %368 = vst [vmem:[%s346 + $0x78] sm:$0xff] %v367
              %v369 = vld [vmem:[%s345 + $0x80] sm:$0xff]
              %370 = vst [vmem:[%s346 + $0x80] sm:$0xff] %v369
              %v371 = vld [vmem:[%s345 + $0x90] sm:$0xff]
              %372 = vst [vmem:[%s346 + $0x90] sm:$0xff] %v371
              %v373 = vld [vmem:[%s345 + $0x98] sm:$0xff]
              %374 = vst [vmem:[%s346 + $0x98] sm:$0xff] %v373
              %v375 = vld [vmem:[%s345 + $0xa8] sm:$0xff]
              %376 = vst [vmem:[%s346 + $0xa8] sm:$0xff] %v375
              %v377 = vld [vmem:[%s345 + $0xb0] sm:$0xff]
              %378 = vst [vmem:[%s346 + $0xb0] sm:$0xff] %v377
              %v379 = vld [vmem:[%s345 + $0xc0] sm:$0xff]
              %380 = vst [vmem:[%s346 + $0xc0] sm:$0xff] %v379
              %v381 = vld [vmem:[%s345 + $0xc8] sm:$0xff]
              %382 = vst [vmem:[%s346 + $0xc8] sm:$0xff] %v381
              %v383 = vld [vmem:[%s345 + $0xd8] sm:$0xff]
              %384 = vst [vmem:[%s346 + $0xd8] sm:$0xff] %v383
              %v385 = vld [vmem:[%s345 + $0xe0] sm:$0xff]
              %386 = vst [vmem:[%s346 + $0xe0] sm:$0xff] %v385
              %v387 = vld [vmem:[%s345 + $0xf0] sm:$0xff]
              %388 = vst [vmem:[%s346 + $0xf0] sm:$0xff] %v387
              %v389 = vld [vmem:[%s345 + $0xf8] sm:$0xff]
              %390 = vst [vmem:[%s346 + $0xf8] sm:$0xff] %v389
              %v391 = vld [vmem:[%s345 + $0x108] sm:$0xff]
              %392 = vst [vmem:[%s346 + $0x108] sm:$0xff] %v391
              %v393 = vld [vmem:[%s345 + $0x110] sm:$0xff]
              %394 = vst [vmem:[%s346 + $0x110] sm:$0xff] %v393
            $region79: #{tpu_custom_call.1} parent=73 // loop_footer
              %s344 = sadd.s32 1, %s340
            $region80: #{tpu_custom_call.1} parent=73 // loop_footer_branch
              %339 = sbr.rel target = $region76
            $region81: #{tpu_custom_call.1} parent=73 // loop_exit
              _
            %s396 = ssub.s32 4, 1
            loop: start=0, step=1, limit=1
            $region82: #{tpu_custom_call.1} parent=73 // loop_pre_header
              _
            $region83: #{tpu_custom_call.1} parent=73 // loop_header
              %s398 = sphi 0, %s402
              %p399 = scmp.ge.s32.totalorder %s398, 1
              %s403 = sphi %s337, %s337
              %s404 = sphi %s338, %s338
            $region84: #{tpu_custom_call.1} parent=73 // loop_header_branch
              %401 = sbr.rel (%p399) target = $region88
            $region85: #{tpu_custom_call.1} parent=73 // loop_body
              %v405 = vld [vmem:[%s403] sm:%s396]
              %406 = vst [vmem:[%s404] sm:%s396] %v405
              %v407 = vld [vmem:[%s403 + $0x18] sm:%s396]
              %408 = vst [vmem:[%s404 + $0x18] sm:%s396] %v407
              %v409 = vld [vmem:[%s403 + $0x30] sm:%s396]
              %410 = vst [vmem:[%s404 + $0x30] sm:%s396] %v409
              %v411 = vld [vmem:[%s403 + $0x48] sm:%s396]
              %412 = vst [vmem:[%s404 + $0x48] sm:%s396] %v411
              %v413 = vld [vmem:[%s403 + $0x60] sm:%s396]
              %414 = vst [vmem:[%s404 + $0x60] sm:%s396] %v413
              %v415 = vld [vmem:[%s403 + $0x78] sm:%s396]
              %416 = vst [vmem:[%s404 + $0x78] sm:%s396] %v415
              %v417 = vld [vmem:[%s403 + $0x90] sm:%s396]
              %418 = vst [vmem:[%s404 + $0x90] sm:%s396] %v417
              %v419 = vld [vmem:[%s403 + $0xa8] sm:%s396]
              %420 = vst [vmem:[%s404 + $0xa8] sm:%s396] %v419
              %v421 = vld [vmem:[%s403 + $0xc0] sm:%s396]
              %422 = vst [vmem:[%s404 + $0xc0] sm:%s396] %v421
              %v423 = vld [vmem:[%s403 + $0xd8] sm:%s396]
              %424 = vst [vmem:[%s404 + $0xd8] sm:%s396] %v423
              %v425 = vld [vmem:[%s403 + $0xf0] sm:%s396]
              %426 = vst [vmem:[%s404 + $0xf0] sm:%s396] %v425
              %v427 = vld [vmem:[%s403 + $0x108] sm:%s396]
              %428 = vst [vmem:[%s404 + $0x108] sm:%s396] %v427
            $region86: #{tpu_custom_call.1} parent=73 // loop_footer
              %s402 = sadd.s32 1, %s398
            $region87: #{tpu_custom_call.1} parent=73 // loop_footer_branch
              %397 = sbr.rel target = $region83
            $region88: #{tpu_custom_call.1} parent=73 // loop_exit
              _
          $region74: #{tpu_custom_call.1} parent=69 // pred_fallthru
            _
          // Predicated region
          $region89: #{tpu_custom_call.1} parent=69 // pred_check
            _
          $region90: #{tpu_custom_call.1} parent=69 // pred_check_branch
            %431 = sbr.rel (0) target = $region92
          $region91: #{tpu_custom_call.1} parent=69 // pred_region
            %432 = vsyncadd %s334, 3456
          $region92: #{tpu_custom_call.1} parent=69 // pred_fallthru
            _
        $region70: #{tpu_custom_call.1} parent=35 // pred_fallthru
          _
        %s433 = smul.u32 %s25, 8
        %s434 = smul.u32 %s214, 288
        %s435 = scalar_lea.vmem [#allocation2], %s434
        %s436 = scalar_lea.sflag [#allocation4], %s214
        %s437 = smul.u32 12, 18
        %s438 = smul.u32 %s437, 1
        %s439 = sshll.u32 %s438, 4
        %440 = dma.done %s436, %s439
        %v441 = vld [vmem:[%s2] sm:$0x1]
        %v442 = vld [vmem:[%s4] sm:$0x1]
        %v443 = vld [vmem:[%s435] sm:$0xff]
        %v444 = vld [vmem:[%s435 + $0x8] sm:$0xff]
        %v445 = vld [vmem:[%s435 + $0x10] sm:$0x3]
        %v446 = vld [vmem:[%s435 + $0x18] sm:$0xff]
        %v447 = vld [vmem:[%s435 + $0x20] sm:$0xff]
        %v448 = vld [vmem:[%s435 + $0x28] sm:$0x3]
        %v449 = vld [vmem:[%s435 + $0x30] sm:$0xff]
        %v450 = vld [vmem:[%s435 + $0x38] sm:$0xff]
        %v451 = vld [vmem:[%s435 + $0x40] sm:$0x3]
        %v452 = vld [vmem:[%s435 + $0x48] sm:$0xff]
        %v453 = vld [vmem:[%s435 + $0x50] sm:$0xff]
        %v454 = vld [vmem:[%s435 + $0x58] sm:$0x3]
        %v455 = vld [vmem:[%s435 + $0x60] sm:$0xff]
        %v456 = vld [vmem:[%s435 + $0x68] sm:$0xff]
        %v457 = vld [vmem:[%s435 + $0x70] sm:$0x3]
        %v458 = vld [vmem:[%s435 + $0x78] sm:$0xff]
        %v459 = vld [vmem:[%s435 + $0x80] sm:$0xff]
        %v460 = vld [vmem:[%s435 + $0x88] sm:$0x3]
        %vm479 = vcmask 1046528
        %v480 = vrot.slane %v443, 1
        %v481 = vrot.slane %v444, 1
        %v482 = vsel %vm479, %v480, %v481
        %v483 = vrot.slane %v445, 1
        %v484 = vsel %vm479, %v481, %v483
        %v485 = vrot.slane %v446, 1
        %v486 = vrot.slane %v447, 1
        %v487 = vsel %vm479, %v485, %v486
        %v488 = vrot.slane %v448, 1
        %v489 = vsel %vm479, %v486, %v488
        %v490 = vrot.slane %v449, 1
        %v491 = vrot.slane %v450, 1
        %v492 = vsel %vm479, %v490, %v491
        %v493 = vrot.slane %v451, 1
        %v494 = vsel %vm479, %v491, %v493
        %v495 = vrot.slane %v452, 1
        %v496 = vrot.slane %v453, 1
        %v497 = vsel %vm479, %v495, %v496
        %v498 = vrot.slane %v454, 1
        %v499 = vsel %vm479, %v496, %v498
        %v500 = vrot.slane %v455, 1
        %v501 = vrot.slane %v456, 1
        %v502 = vsel %vm479, %v500, %v501
        %v503 = vrot.slane %v457, 1
        %v504 = vsel %vm479, %v501, %v503
        %v505 = vrot.slane %v458, 1
        %v506 = vrot.slane %v459, 1
        %v507 = vsel %vm479, %v505, %v506
        %v508 = vrot.slane %v460, 1
        %v509 = vsel %vm479, %v506, %v508
        %vm522 = vcmask 1045504
        %v523 = vrot.slane %v443, 2
        %v524 = vrot.slane %v444, 2
        %v525 = vsel %vm522, %v523, %v524
        %v526 = vrot.slane %v445, 2
        %v527 = vsel %vm522, %v524, %v526
        %v528 = vrot.slane %v446, 2
        %v529 = vrot.slane %v447, 2
        %v530 = vsel %vm522, %v528, %v529
        %v531 = vrot.slane %v448, 2
        %v532 = vsel %vm522, %v529, %v531
        %v533 = vrot.slane %v449, 2
        %v534 = vrot.slane %v450, 2
        %v535 = vsel %vm522, %v533, %v534
        %v536 = vrot.slane %v451, 2
        %v537 = vsel %vm522, %v534, %v536
        %v538 = vrot.slane %v452, 2
        %v539 = vrot.slane %v453, 2
        %v540 = vsel %vm522, %v538, %v539
        %v541 = vrot.slane %v454, 2
        %v542 = vsel %vm522, %v539, %v541
        %v543 = vrot.slane %v455, 2
        %v544 = vrot.slane %v456, 2
        %v545 = vsel %vm522, %v543, %v544
        %v546 = vrot.slane %v457, 2
        %v547 = vsel %vm522, %v544, %v546
        %v548 = vrot.slane %v458, 2
        %v549 = vrot.slane %v459, 2
        %v550 = vsel %vm522, %v548, %v549
        %v551 = vrot.slane %v460, 2
        %v552 = vsel %vm522, %v549, %v551
        %v565 = vld [vmem:[%s1] sm:$0xff]
        %v566 = vld [vmem:[%s1 + $0x8] sm:$0xff]
        %v567 = vld [vmem:[%s1 + $0x10] sm:$0xff]
        %v568 = vld [vmem:[%s1 + $0x18] sm:$0xff]
        %v569 = vld [vmem:[%s1 + $0x20] sm:$0xff]
        %v570 = vld [vmem:[%s1 + $0x28] sm:$0xff]
        %v571 = vld [vmem:[%s1 + $0x30] sm:$0xff]
        %v572 = vld [vmem:[%s1 + $0x38] sm:$0xff]
        %v573 = vld [vmem:[%s1 + $0x40] sm:$0xff]
        %v574 = vld [vmem:[%s1 + $0x48] sm:$0xff]
        %v575 = vld [vmem:[%s1 + $0x50] sm:$0xff]
        %v576 = vld [vmem:[%s1 + $0x58] sm:$0xff]
        %v577 = vld [vmem:[%s1 + $0x60] sm:$0xff]
        %v578 = vld [vmem:[%s1 + $0x68] sm:$0xff]
        %v579 = vld [vmem:[%s1 + $0x70] sm:$0xff]
        %v580 = vld [vmem:[%s1 + $0x78] sm:$0xff]
        %v581 = vld [vmem:[%s1 + $0x80] sm:$0xff]
        %v582 = vld [vmem:[%s1 + $0x88] sm:$0xff]
        %v583 = vld [vmem:[%s1 + $0x90] sm:$0xff]
        %v584 = vld [vmem:[%s1 + $0x98] sm:$0xff]
        %v585 = vld [vmem:[%s1 + $0xa0] sm:$0xff]
        %v586 = vld [vmem:[%s1 + $0xa8] sm:$0xff]
        %v587 = vld [vmem:[%s1 + $0xb0] sm:$0xff]
        %v588 = vld [vmem:[%s1 + $0xb8] sm:$0xff]
        %v589 = vld [vmem:[%s1 + $0xc0] sm:$0xff]
        %v590 = vld [vmem:[%s1 + $0xc8] sm:$0xff]
        %v591 = vld [vmem:[%s1 + $0xd0] sm:$0xff]
        %v592 = vld [vmem:[%s1 + $0xd8] sm:$0xff]
        %v593 = vld [vmem:[%s1 + $0xe0] sm:$0xff]
        %v594 = vld [vmem:[%s1 + $0xe8] sm:$0xff]
        %v595 = vld [vmem:[%s1 + $0xf0] sm:$0xff]
        %v596 = vld [vmem:[%s1 + $0xf8] sm:$0xff]
        %v597 = vld [vmem:[%s1 + $0x100] sm:$0xff]
        %v598 = vld [vmem:[%s1 + $0x108] sm:$0xff]
        %v599 = vld [vmem:[%s1 + $0x110] sm:$0xff]
        %v600 = vld [vmem:[%s1 + $0x118] sm:$0xff]
        %v601 = vld [vmem:[%s1 + $0x120] sm:$0xff]
        %v602 = vld [vmem:[%s1 + $0x128] sm:$0xff]
        %v603 = vld [vmem:[%s1 + $0x130] sm:$0xff]
        %v604 = vld [vmem:[%s1 + $0x138] sm:$0xff]
        %v605 = vld [vmem:[%s1 + $0x140] sm:$0xff]
        %v606 = vld [vmem:[%s1 + $0x148] sm:$0xff]
        %v607 = vld [vmem:[%s1 + $0x150] sm:$0xff]
        %v608 = vld [vmem:[%s1 + $0x158] sm:$0xff]
        %v609 = vld [vmem:[%s1 + $0x160] sm:$0xff]
        %v610 = vld [vmem:[%s1 + $0x168] sm:$0xff]
        %v611 = vld [vmem:[%s1 + $0x170] sm:$0xff]
        %v612 = vld [vmem:[%s1 + $0x178] sm:$0xff]
        %s613 = scalar_lea.vmem %s1, 384
        %v614 = vld [vmem:[%s613] sm:$0xff]
        %v615 = vld [vmem:[%s613 + $0x8] sm:$0xff]
        %v616 = vld [vmem:[%s613 + $0x10] sm:$0xff]
        %v617 = vld [vmem:[%s613 + $0x18] sm:$0xff]
        %v618 = vld [vmem:[%s613 + $0x20] sm:$0xff]
        %v619 = vld [vmem:[%s613 + $0x28] sm:$0xff]
        %v620 = vld [vmem:[%s613 + $0x30] sm:$0xff]
        %v621 = vld [vmem:[%s613 + $0x38] sm:$0xff]
        %v622 = vld [vmem:[%s613 + $0x40] sm:$0xff]
        %v623 = vld [vmem:[%s613 + $0x48] sm:$0xff]
        %v624 = vld [vmem:[%s613 + $0x50] sm:$0xff]
        %v625 = vld [vmem:[%s613 + $0x58] sm:$0xff]
        %v626 = vld [vmem:[%s613 + $0x60] sm:$0xff]
        %v627 = vld [vmem:[%s613 + $0x68] sm:$0xff]
        %v628 = vld [vmem:[%s613 + $0x70] sm:$0xff]
        %v629 = vld [vmem:[%s613 + $0x78] sm:$0xff]
        %v630 = vld [vmem:[%s613 + $0x80] sm:$0xff]
        %v631 = vld [vmem:[%s613 + $0x88] sm:$0xff]
        %v632 = vld [vmem:[%s613 + $0x90] sm:$0xff]
        %v633 = vld [vmem:[%s613 + $0x98] sm:$0xff]
        %v634 = vld [vmem:[%s613 + $0xa0] sm:$0xff]
        %v635 = vld [vmem:[%s613 + $0xa8] sm:$0xff]
        %v636 = vld [vmem:[%s613 + $0xb0] sm:$0xff]
        %v637 = vld [vmem:[%s613 + $0xb8] sm:$0xff]
        %v638 = vld [vmem:[%s613 + $0xc0] sm:$0xff]
        %v639 = vld [vmem:[%s613 + $0xc8] sm:$0xff]
        %v640 = vld [vmem:[%s613 + $0xd0] sm:$0xff]
        %v641 = vld [vmem:[%s613 + $0xd8] sm:$0xff]
        %v642 = vld [vmem:[%s613 + $0xe0] sm:$0xff]
        %v643 = vld [vmem:[%s613 + $0xe8] sm:$0xff]
        %v644 = vld [vmem:[%s613 + $0xf0] sm:$0xff]
        %v645 = vld [vmem:[%s613 + $0xf8] sm:$0xff]
        %v646 = vld [vmem:[%s613 + $0x100] sm:$0xff]
        %v647 = vld [vmem:[%s613 + $0x108] sm:$0xff]
        %v648 = vld [vmem:[%s613 + $0x110] sm:$0xff]
        %v649 = vld [vmem:[%s613 + $0x118] sm:$0xff]
        %v650 = vld [vmem:[%s613 + $0x120] sm:$0xff]
        %v651 = vld [vmem:[%s613 + $0x128] sm:$0xff]
        %v652 = vld [vmem:[%s613 + $0x130] sm:$0xff]
        %v653 = vld [vmem:[%s613 + $0x138] sm:$0xff]
        %v654 = vld [vmem:[%s613 + $0x140] sm:$0xff]
        %v655 = vld [vmem:[%s613 + $0x148] sm:$0xff]
        %v656 = vld [vmem:[%s613 + $0x150] sm:$0xff]
        %v657 = vld [vmem:[%s613 + $0x158] sm:$0xff]
        %v658 = vld [vmem:[%s613 + $0x160] sm:$0xff]
        %v659 = vld [vmem:[%s613 + $0x168] sm:$0xff]
        %v660 = vld [vmem:[%s613 + $0x170] sm:$0xff]
        %v661 = vld [vmem:[%s613 + $0x178] sm:$0xff]
        %662 = vmatpush.msra.mxu0 %v629
        %663 = vmatpush.msra.mxu0 %v628
        %664 = vmatpush.msra.mxu0 %v627
        %665 = vmatpush.msra.mxu0 %v626
        %666 = vmatpush.msra.mxu0 %v625
        %667 = vmatpush.msra.mxu0 %v624
        %668 = vmatpush.msra.mxu0 %v623
        %669 = vmatpush.msra.mxu0 %v622
        %670 = vmatpush.msra.mxu0 %v621
        %671 = vmatpush.msra.mxu0 %v620
        %672 = vmatpush.msra.mxu0 %v619
        %673 = vmatpush.msra.mxu0 %v618
        %674 = vmatpush.msra.mxu0 %v617
        %675 = vmatpush.msra.mxu0 %v616
        %676 = vmatpush.msra.mxu0 %v615
        %677 = vmatpush.msra.mxu0 %v614
        %678 = vmatmul.f32.gmra.mxu0 %v446
        %v679 = vpop.f32.mrf.mxu0
        %v680 = vadd.f32 0.0, %v679
        %681 = vmatmul.f32.gmra.mxu0 %v447
        %v682 = vpop.f32.mrf.mxu0
        %v683 = vadd.f32 0.0, %v682
        %684 = vmatmul.f32.gmra.mxu0 %v449
        %v685 = vpop.f32.mrf.mxu0
        %v686 = vadd.f32 0.0, %v685
        %687 = vmatmul.f32.gmra.mxu0 %v450
        %v688 = vpop.f32.mrf.mxu0
        %v689 = vadd.f32 0.0, %v688
        %690 = vmatmul.f32.gmra.mxu0 %v452
        %v691 = vpop.f32.mrf.mxu0
        %v692 = vadd.f32 0.0, %v691
        %693 = vmatmul.f32.gmra.mxu0 %v453
        %v694 = vpop.f32.mrf.mxu0
        %v695 = vadd.f32 0.0, %v694
        %696 = vmatmul.f32.gmra.mxu0 %v455
        %v697 = vpop.f32.mrf.mxu0
        %v698 = vadd.f32 0.0, %v697
        %699 = vmatmul.f32.gmra.mxu0 %v456
        %v700 = vpop.f32.mrf.mxu0
        %v701 = vadd.f32 0.0, %v700
        %702 = vdwg.mxu0
        %703 = vmatpush.msra.mxu0 %v645
        %704 = vmatpush.msra.mxu0 %v644
        %705 = vmatpush.msra.mxu0 %v643
        %706 = vmatpush.msra.mxu0 %v642
        %707 = vmatpush.msra.mxu0 %v641
        %708 = vmatpush.msra.mxu0 %v640
        %709 = vmatpush.msra.mxu0 %v639
        %710 = vmatpush.msra.mxu0 %v638
        %711 = vmatpush.msra.mxu0 %v637
        %712 = vmatpush.msra.mxu0 %v636
        %713 = vmatpush.msra.mxu0 %v635
        %714 = vmatpush.msra.mxu0 %v634
        %715 = vmatpush.msra.mxu0 %v633
        %716 = vmatpush.msra.mxu0 %v632
        %717 = vmatpush.msra.mxu0 %v631
        %718 = vmatpush.msra.mxu0 %v630
        %719 = vmatmul.f32.gmra.mxu0 %v487
        %v720 = vpop.f32.mrf.mxu0
        %v721 = vadd.f32 %v680, %v720
        %722 = vmatmul.f32.gmra.mxu0 %v489
        %v723 = vpop.f32.mrf.mxu0
        %v724 = vadd.f32 %v683, %v723
        %725 = vmatmul.f32.gmra.mxu0 %v492
        %v726 = vpop.f32.mrf.mxu0
        %v727 = vadd.f32 %v686, %v726
        %728 = vmatmul.f32.gmra.mxu0 %v494
        %v729 = vpop.f32.mrf.mxu0
        %v730 = vadd.f32 %v689, %v729
        %731 = vmatmul.f32.gmra.mxu0 %v497
        %v732 = vpop.f32.mrf.mxu0
        %v733 = vadd.f32 %v692, %v732
        %734 = vmatmul.f32.gmra.mxu0 %v499
        %v735 = vpop.f32.mrf.mxu0
        %v736 = vadd.f32 %v695, %v735
        %737 = vmatmul.f32.gmra.mxu0 %v502
        %v738 = vpop.f32.mrf.mxu0
        %v739 = vadd.f32 %v698, %v738
        %740 = vmatmul.f32.gmra.mxu0 %v504
        %v741 = vpop.f32.mrf.mxu0
        %v742 = vadd.f32 %v701, %v741
        %743 = vdwg.mxu0
        %744 = vmatpush.msra.mxu0 %v661
        %745 = vmatpush.msra.mxu0 %v660
        %746 = vmatpush.msra.mxu0 %v659
        %747 = vmatpush.msra.mxu0 %v658
        %748 = vmatpush.msra.mxu0 %v657
        %749 = vmatpush.msra.mxu0 %v656
        %750 = vmatpush.msra.mxu0 %v655
        %751 = vmatpush.msra.mxu0 %v654
        %752 = vmatpush.msra.mxu0 %v653
        %753 = vmatpush.msra.mxu0 %v652
        %754 = vmatpush.msra.mxu0 %v651
        %755 = vmatpush.msra.mxu0 %v650
        %756 = vmatpush.msra.mxu0 %v649
        %757 = vmatpush.msra.mxu0 %v648
        %758 = vmatpush.msra.mxu0 %v647
        %759 = vmatpush.msra.mxu0 %v646
        %760 = vmatmul.f32.gmra.mxu0 %v530
        %v761 = vpop.f32.mrf.mxu0
        %v762 = vadd.f32 %v721, %v761
        %763 = vmatmul.f32.gmra.mxu0 %v532
        %v764 = vpop.f32.mrf.mxu0
        %v765 = vadd.f32 %v724, %v764
        %766 = vmatmul.f32.gmra.mxu0 %v535
        %v767 = vpop.f32.mrf.mxu0
        %v768 = vadd.f32 %v727, %v767
        %769 = vmatmul.f32.gmra.mxu0 %v537
        %v770 = vpop.f32.mrf.mxu0
        %v771 = vadd.f32 %v730, %v770
        %772 = vmatmul.f32.gmra.mxu0 %v540
        %v773 = vpop.f32.mrf.mxu0
        %v774 = vadd.f32 %v733, %v773
        %775 = vmatmul.f32.gmra.mxu0 %v542
        %v776 = vpop.f32.mrf.mxu0
        %v777 = vadd.f32 %v736, %v776
        %778 = vmatmul.f32.gmra.mxu0 %v545
        %v779 = vpop.f32.mrf.mxu0
        %v780 = vadd.f32 %v739, %v779
        %781 = vmatmul.f32.gmra.mxu0 %v547
        %v782 = vpop.f32.mrf.mxu0
        %v783 = vadd.f32 %v742, %v782
        %784 = vdwg.mxu0
        %785 = vmatpush.msra.mxu0 %v580
        %786 = vmatpush.msra.mxu0 %v579
        %787 = vmatpush.msra.mxu0 %v578
        %788 = vmatpush.msra.mxu0 %v577
        %789 = vmatpush.msra.mxu0 %v576
        %790 = vmatpush.msra.mxu0 %v575
        %791 = vmatpush.msra.mxu0 %v574
        %792 = vmatpush.msra.mxu0 %v573
        %793 = vmatpush.msra.mxu0 %v572
        %794 = vmatpush.msra.mxu0 %v571
        %795 = vmatpush.msra.mxu0 %v570
        %796 = vmatpush.msra.mxu0 %v569
        %797 = vmatpush.msra.mxu0 %v568
        %798 = vmatpush.msra.mxu0 %v567
        %799 = vmatpush.msra.mxu0 %v566
        %800 = vmatpush.msra.mxu0 %v565
        %801 = vmatmul.f32.gmra.mxu0 %v443
        %v802 = vpop.f32.mrf.mxu0
        %v803 = vadd.f32 %v762, %v802
        %804 = vmatmul.f32.gmra.mxu0 %v444
        %v805 = vpop.f32.mrf.mxu0
        %v806 = vadd.f32 %v765, %v805
        %807 = vmatmul.f32.gmra.mxu0 %v446
        %v808 = vpop.f32.mrf.mxu0
        %v809 = vadd.f32 %v768, %v808
        %810 = vmatmul.f32.gmra.mxu0 %v447
        %v811 = vpop.f32.mrf.mxu0
        %v812 = vadd.f32 %v771, %v811
        %813 = vmatmul.f32.gmra.mxu0 %v449
        %v814 = vpop.f32.mrf.mxu0
        %v815 = vadd.f32 %v774, %v814
        %816 = vmatmul.f32.gmra.mxu0 %v450
        %v817 = vpop.f32.mrf.mxu0
        %v818 = vadd.f32 %v777, %v817
        %819 = vmatmul.f32.gmra.mxu0 %v452
        %v820 = vpop.f32.mrf.mxu0
        %v821 = vadd.f32 %v780, %v820
        %822 = vmatmul.f32.gmra.mxu0 %v453
        %v823 = vpop.f32.mrf.mxu0
        %v824 = vadd.f32 %v783, %v823
        %825 = vdwg.mxu0
        %826 = vmatpush.msra.mxu0 %v596
        %827 = vmatpush.msra.mxu0 %v595
        %828 = vmatpush.msra.mxu0 %v594
        %829 = vmatpush.msra.mxu0 %v593
        %830 = vmatpush.msra.mxu0 %v592
        %831 = vmatpush.msra.mxu0 %v591
        %832 = vmatpush.msra.mxu0 %v590
        %833 = vmatpush.msra.mxu0 %v589
        %834 = vmatpush.msra.mxu0 %v588
        %835 = vmatpush.msra.mxu0 %v587
        %836 = vmatpush.msra.mxu0 %v586
        %837 = vmatpush.msra.mxu0 %v585
        %838 = vmatpush.msra.mxu0 %v584
        %839 = vmatpush.msra.mxu0 %v583
        %840 = vmatpush.msra.mxu0 %v582
        %841 = vmatpush.msra.mxu0 %v581
        %842 = vmatmul.f32.gmra.mxu0 %v482
        %v843 = vpop.f32.mrf.mxu0
        %v844 = vadd.f32 %v803, %v843
        %845 = vmatmul.f32.gmra.mxu0 %v484
        %v846 = vpop.f32.mrf.mxu0
        %v847 = vadd.f32 %v806, %v846
        %848 = vmatmul.f32.gmra.mxu0 %v487
        %v849 = vpop.f32.mrf.mxu0
        %v850 = vadd.f32 %v809, %v849
        %851 = vmatmul.f32.gmra.mxu0 %v489
        %v852 = vpop.f32.mrf.mxu0
        %v853 = vadd.f32 %v812, %v852
        %854 = vmatmul.f32.gmra.mxu0 %v492
        %v855 = vpop.f32.mrf.mxu0
        %v856 = vadd.f32 %v815, %v855
        %857 = vmatmul.f32.gmra.mxu0 %v494
        %v858 = vpop.f32.mrf.mxu0
        %v859 = vadd.f32 %v818, %v858
        %860 = vmatmul.f32.gmra.mxu0 %v497
        %v861 = vpop.f32.mrf.mxu0
        %v862 = vadd.f32 %v821, %v861
        %863 = vmatmul.f32.gmra.mxu0 %v499
        %v864 = vpop.f32.mrf.mxu0
        %v865 = vadd.f32 %v824, %v864
        %866 = vdwg.mxu0
        %867 = vmatpush.msra.mxu0 %v612
        %868 = vmatpush.msra.mxu0 %v611
        %869 = vmatpush.msra.mxu0 %v610
        %870 = vmatpush.msra.mxu0 %v609
        %871 = vmatpush.msra.mxu0 %v608
        %872 = vmatpush.msra.mxu0 %v607
        %873 = vmatpush.msra.mxu0 %v606
        %874 = vmatpush.msra.mxu0 %v605
        %875 = vmatpush.msra.mxu0 %v604
        %876 = vmatpush.msra.mxu0 %v603
        %877 = vmatpush.msra.mxu0 %v602
        %878 = vmatpush.msra.mxu0 %v601
        %879 = vmatpush.msra.mxu0 %v600
        %880 = vmatpush.msra.mxu0 %v599
        %881 = vmatpush.msra.mxu0 %v598
        %882 = vmatpush.msra.mxu0 %v597
        %883 = vmatmul.f32.gmra.mxu0 %v525
        %v884 = vpop.f32.mrf.mxu0
        %v885 = vadd.f32 %v844, %v884
        %886 = vmatmul.f32.gmra.mxu0 %v527
        %v887 = vpop.f32.mrf.mxu0
        %v888 = vadd.f32 %v847, %v887
        %889 = vmatmul.f32.gmra.mxu0 %v530
        %v890 = vpop.f32.mrf.mxu0
        %v891 = vadd.f32 %v850, %v890
        %892 = vmatmul.f32.gmra.mxu0 %v532
        %v893 = vpop.f32.mrf.mxu0
        %v894 = vadd.f32 %v853, %v893
        %895 = vmatmul.f32.gmra.mxu0 %v535
        %v896 = vpop.f32.mrf.mxu0
        %v897 = vadd.f32 %v856, %v896
        %898 = vmatmul.f32.gmra.mxu0 %v537
        %v899 = vpop.f32.mrf.mxu0
        %v900 = vadd.f32 %v859, %v899
        %901 = vmatmul.f32.gmra.mxu0 %v540
        %v902 = vpop.f32.mrf.mxu0
        %v903 = vadd.f32 %v862, %v902
        %904 = vmatmul.f32.gmra.mxu0 %v542
        %v905 = vpop.f32.mrf.mxu0
        %v906 = vadd.f32 %v865, %v905
        %907 = vdwg.mxu0
        %s908 = scalar_lea.vmem %s1, 768
        %v909 = vld [vmem:[%s908] sm:$0xff]
        %v910 = vld [vmem:[%s908 + $0x8] sm:$0xff]
        %v911 = vld [vmem:[%s908 + $0x10] sm:$0xff]
        %v912 = vld [vmem:[%s908 + $0x18] sm:$0xff]
        %v913 = vld [vmem:[%s908 + $0x20] sm:$0xff]
        %v914 = vld [vmem:[%s908 + $0x28] sm:$0xff]
        %v915 = vld [vmem:[%s908 + $0x30] sm:$0xff]
        %v916 = vld [vmem:[%s908 + $0x38] sm:$0xff]
        %v917 = vld [vmem:[%s908 + $0x40] sm:$0xff]
        %v918 = vld [vmem:[%s908 + $0x48] sm:$0xff]
        %v919 = vld [vmem:[%s908 + $0x50] sm:$0xff]
        %v920 = vld [vmem:[%s908 + $0x58] sm:$0xff]
        %v921 = vld [vmem:[%s908 + $0x60] sm:$0xff]
        %v922 = vld [vmem:[%s908 + $0x68] sm:$0xff]
        %v923 = vld [vmem:[%s908 + $0x70] sm:$0xff]
        %v924 = vld [vmem:[%s908 + $0x78] sm:$0xff]
        %v925 = vld [vmem:[%s908 + $0x80] sm:$0xff]
        %v926 = vld [vmem:[%s908 + $0x88] sm:$0xff]
        %v927 = vld [vmem:[%s908 + $0x90] sm:$0xff]
        %v928 = vld [vmem:[%s908 + $0x98] sm:$0xff]
        %v929 = vld [vmem:[%s908 + $0xa0] sm:$0xff]
        %v930 = vld [vmem:[%s908 + $0xa8] sm:$0xff]
        %v931 = vld [vmem:[%s908 + $0xb0] sm:$0xff]
        %v932 = vld [vmem:[%s908 + $0xb8] sm:$0xff]
        %v933 = vld [vmem:[%s908 + $0xc0] sm:$0xff]
        %v934 = vld [vmem:[%s908 + $0xc8] sm:$0xff]
        %v935 = vld [vmem:[%s908 + $0xd0] sm:$0xff]
        %v936 = vld [vmem:[%s908 + $0xd8] sm:$0xff]
        %v937 = vld [vmem:[%s908 + $0xe0] sm:$0xff]
        %v938 = vld [vmem:[%s908 + $0xe8] sm:$0xff]
        %v939 = vld [vmem:[%s908 + $0xf0] sm:$0xff]
        %v940 = vld [vmem:[%s908 + $0xf8] sm:$0xff]
        %v941 = vld [vmem:[%s908 + $0x100] sm:$0xff]
        %v942 = vld [vmem:[%s908 + $0x108] sm:$0xff]
        %v943 = vld [vmem:[%s908 + $0x110] sm:$0xff]
        %v944 = vld [vmem:[%s908 + $0x118] sm:$0xff]
        %v945 = vld [vmem:[%s908 + $0x120] sm:$0xff]
        %v946 = vld [vmem:[%s908 + $0x128] sm:$0xff]
        %v947 = vld [vmem:[%s908 + $0x130] sm:$0xff]
        %v948 = vld [vmem:[%s908 + $0x138] sm:$0xff]
        %v949 = vld [vmem:[%s908 + $0x140] sm:$0xff]
        %v950 = vld [vmem:[%s908 + $0x148] sm:$0xff]
        %v951 = vld [vmem:[%s908 + $0x150] sm:$0xff]
        %v952 = vld [vmem:[%s908 + $0x158] sm:$0xff]
        %v953 = vld [vmem:[%s908 + $0x160] sm:$0xff]
        %v954 = vld [vmem:[%s908 + $0x168] sm:$0xff]
        %v955 = vld [vmem:[%s908 + $0x170] sm:$0xff]
        %v956 = vld [vmem:[%s908 + $0x178] sm:$0xff]
        %957 = vmatpush.msra.mxu0 %v924
        %958 = vmatpush.msra.mxu0 %v923
        %959 = vmatpush.msra.mxu0 %v922
        %960 = vmatpush.msra.mxu0 %v921
        %961 = vmatpush.msra.mxu0 %v920
        %962 = vmatpush.msra.mxu0 %v919
        %963 = vmatpush.msra.mxu0 %v918
        %964 = vmatpush.msra.mxu0 %v917
        %965 = vmatpush.msra.mxu0 %v916
        %966 = vmatpush.msra.mxu0 %v915
        %967 = vmatpush.msra.mxu0 %v914
        %968 = vmatpush.msra.mxu0 %v913
        %969 = vmatpush.msra.mxu0 %v912
        %970 = vmatpush.msra.mxu0 %v911
        %971 = vmatpush.msra.mxu0 %v910
        %972 = vmatpush.msra.mxu0 %v909
        %973 = vmatmul.f32.gmra.mxu0 %v449
        %v974 = vpop.f32.mrf.mxu0
        %v975 = vadd.f32 0.0, %v974
        %976 = vmatmul.f32.gmra.mxu0 %v450
        %v977 = vpop.f32.mrf.mxu0
        %v978 = vadd.f32 0.0, %v977
        %979 = vmatmul.f32.gmra.mxu0 %v452
        %v980 = vpop.f32.mrf.mxu0
        %v981 = vadd.f32 0.0, %v980
        %982 = vmatmul.f32.gmra.mxu0 %v453
        %v983 = vpop.f32.mrf.mxu0
        %v984 = vadd.f32 0.0, %v983
        %985 = vmatmul.f32.gmra.mxu0 %v455
        %v986 = vpop.f32.mrf.mxu0
        %v987 = vadd.f32 0.0, %v986
        %988 = vmatmul.f32.gmra.mxu0 %v456
        %v989 = vpop.f32.mrf.mxu0
        %v990 = vadd.f32 0.0, %v989
        %991 = vmatmul.f32.gmra.mxu0 %v458
        %v992 = vpop.f32.mrf.mxu0
        %v993 = vadd.f32 0.0, %v992
        %994 = vmatmul.f32.gmra.mxu0 %v459
        %v995 = vpop.f32.mrf.mxu0
        %v996 = vadd.f32 0.0, %v995
        %997 = vdwg.mxu0
        %998 = vmatpush.msra.mxu0 %v940
        %999 = vmatpush.msra.mxu0 %v939
        %1000 = vmatpush.msra.mxu0 %v938
        %1001 = vmatpush.msra.mxu0 %v937
        %1002 = vmatpush.msra.mxu0 %v936
        %1003 = vmatpush.msra.mxu0 %v935
        %1004 = vmatpush.msra.mxu0 %v934
        %1005 = vmatpush.msra.mxu0 %v933
        %1006 = vmatpush.msra.mxu0 %v932
        %1007 = vmatpush.msra.mxu0 %v931
        %1008 = vmatpush.msra.mxu0 %v930
        %1009 = vmatpush.msra.mxu0 %v929
        %1010 = vmatpush.msra.mxu0 %v928
        %1011 = vmatpush.msra.mxu0 %v927
        %1012 = vmatpush.msra.mxu0 %v926
        %1013 = vmatpush.msra.mxu0 %v925
        %1014 = vmatmul.f32.gmra.mxu0 %v492
        %v1015 = vpop.f32.mrf.mxu0
        %v1016 = vadd.f32 %v975, %v1015
        %1017 = vmatmul.f32.gmra.mxu0 %v494
        %v1018 = vpop.f32.mrf.mxu0
        %v1019 = vadd.f32 %v978, %v1018
        %1020 = vmatmul.f32.gmra.mxu0 %v497
        %v1021 = vpop.f32.mrf.mxu0
        %v1022 = vadd.f32 %v981, %v1021
        %1023 = vmatmul.f32.gmra.mxu0 %v499
        %v1024 = vpop.f32.mrf.mxu0
        %v1025 = vadd.f32 %v984, %v1024
        %1026 = vmatmul.f32.gmra.mxu0 %v502
        %v1027 = vpop.f32.mrf.mxu0
        %v1028 = vadd.f32 %v987, %v1027
        %1029 = vmatmul.f32.gmra.mxu0 %v504
        %v1030 = vpop.f32.mrf.mxu0
        %v1031 = vadd.f32 %v990, %v1030
        %1032 = vmatmul.f32.gmra.mxu0 %v507
        %v1033 = vpop.f32.mrf.mxu0
        %v1034 = vadd.f32 %v993, %v1033
        %1035 = vmatmul.f32.gmra.mxu0 %v509
        %v1036 = vpop.f32.mrf.mxu0
        %v1037 = vadd.f32 %v996, %v1036
        %1038 = vdwg.mxu0
        %1039 = vmatpush.msra.mxu0 %v956
        %1040 = vmatpush.msra.mxu0 %v955
        %1041 = vmatpush.msra.mxu0 %v954
        %1042 = vmatpush.msra.mxu0 %v953
        %1043 = vmatpush.msra.mxu0 %v952
        %1044 = vmatpush.msra.mxu0 %v951
        %1045 = vmatpush.msra.mxu0 %v950
        %1046 = vmatpush.msra.mxu0 %v949
        %1047 = vmatpush.msra.mxu0 %v948
        %1048 = vmatpush.msra.mxu0 %v947
        %1049 = vmatpush.msra.mxu0 %v946
        %1050 = vmatpush.msra.mxu0 %v945
        %1051 = vmatpush.msra.mxu0 %v944
        %1052 = vmatpush.msra.mxu0 %v943
        %1053 = vmatpush.msra.mxu0 %v942
        %1054 = vmatpush.msra.mxu0 %v941
        %1055 = vmatmul.f32.gmra.mxu0 %v535
        %v1056 = vpop.f32.mrf.mxu0
        %v1057 = vadd.f32 %v1016, %v1056
        %1058 = vmatmul.f32.gmra.mxu0 %v537
        %v1059 = vpop.f32.mrf.mxu0
        %v1060 = vadd.f32 %v1019, %v1059
        %1061 = vmatmul.f32.gmra.mxu0 %v540
        %v1062 = vpop.f32.mrf.mxu0
        %v1063 = vadd.f32 %v1022, %v1062
        %1064 = vmatmul.f32.gmra.mxu0 %v542
        %v1065 = vpop.f32.mrf.mxu0
        %v1066 = vadd.f32 %v1025, %v1065
        %1067 = vmatmul.f32.gmra.mxu0 %v545
        %v1068 = vpop.f32.mrf.mxu0
        %v1069 = vadd.f32 %v1028, %v1068
        %1070 = vmatmul.f32.gmra.mxu0 %v547
        %v1071 = vpop.f32.mrf.mxu0
        %v1072 = vadd.f32 %v1031, %v1071
        %1073 = vmatmul.f32.gmra.mxu0 %v550
        %v1074 = vpop.f32.mrf.mxu0
        %v1075 = vadd.f32 %v1034, %v1074
        %1076 = vmatmul.f32.gmra.mxu0 %v552
        %v1077 = vpop.f32.mrf.mxu0
        %v1078 = vadd.f32 %v1037, %v1077
        %1079 = vdwg.mxu0
        %v1080 = vadd.f32 %v885, %v1057
        %v1081 = vadd.f32 %v888, %v1060
        %v1082 = vadd.f32 %v891, %v1063
        %v1083 = vadd.f32 %v894, %v1066
        %v1084 = vadd.f32 %v897, %v1069
        %v1085 = vadd.f32 %v900, %v1072
        %v1086 = vadd.f32 %v903, %v1075
        %v1087 = vadd.f32 %v906, %v1078
        %v1089 = vperm.slane %v441, 0
        %v1091 = vadd.f32 %v1080, %v1089
        %v1092 = vadd.f32 %v1081, %v1089
        %v1093 = vadd.f32 %v1082, %v1089
        %v1094 = vadd.f32 %v1083, %v1089
        %v1095 = vadd.f32 %v1084, %v1089
        %v1096 = vadd.f32 %v1085, %v1089
        %v1097 = vadd.f32 %v1086, %v1089
        %v1098 = vadd.f32 %v1087, %v1089
        %v1099 = vmax.f32 %v1091, 0.0
        %v1100 = vmax.f32 %v1092, 0.0
        %v1101 = vmax.f32 %v1093, 0.0
        %v1102 = vmax.f32 %v1094, 0.0
        %v1103 = vmax.f32 %v1095, 0.0
        %v1104 = vmax.f32 %v1096, 0.0
        %v1105 = vmax.f32 %v1097, 0.0
        %v1106 = vmax.f32 %v1098, 0.0
        %vm1115 = vcmask 1040384
        %v1116 = vrot.slane %v1099, 7
        %v1117 = vrot.slane %v1100, 7
        %v1118 = vsel %vm1115, %v1116, %v1117
        %v1119 = vrot.slane %v1101, 7
        %v1120 = vrot.slane %v1102, 7
        %v1121 = vsel %vm1115, %v1119, %v1120
        %v1122 = vrot.slane %v1103, 7
        %v1123 = vrot.slane %v1104, 7
        %v1124 = vsel %vm1115, %v1122, %v1123
        %v1125 = vrot.slane %v1105, 7
        %v1126 = vrot.slane %v1106, 7
        %v1127 = vsel %vm1115, %v1125, %v1126
        %v1140 = vsel %vm1115, 0.0, %v1116
        %v1141 = vsel %vm1115, 0.0, %v1119
        %v1142 = vsel %vm1115, 0.0, %v1122
        %v1143 = vsel %vm1115, 0.0, %v1125
        %v1144 = vsel %vm1115, %v1117, 0.0
        %v1145 = vsel %vm1115, %v1120, 0.0
        %v1146 = vsel %vm1115, %v1123, 0.0
        %v1147 = vsel %vm1115, %v1126, 0.0
        %1148 = vst [vmem:[#allocation3] sm:$0xff] %v1140
        %1149 = vst [vmem:[#allocation3 + $0x8] sm:$0xff] %v1118
        %1150 = vst [vmem:[#allocation3 + $0x10] sm:$0x3] %v1144
        %1151 = vst [vmem:[#allocation3 + $0x18] sm:$0xff] %v1141
        %1152 = vst [vmem:[#allocation3 + $0x20] sm:$0xff] %v1121
        %1153 = vst [vmem:[#allocation3 + $0x28] sm:$0x3] %v1145
        %1154 = vst [vmem:[#allocation3 + $0x30] sm:$0xff] %v1142
        %1155 = vst [vmem:[#allocation3 + $0x38] sm:$0xff] %v1124
        %1156 = vst [vmem:[#allocation3 + $0x40] sm:$0x3] %v1146
        %1157 = vst [vmem:[#allocation3 + $0x48] sm:$0xff] %v1143
        %1158 = vst [vmem:[#allocation3 + $0x50] sm:$0xff] %v1127
        %1159 = vst [vmem:[#allocation3 + $0x58] sm:$0x3] %v1147
        %s1160 = scalar_lea.vmem %s435, 96 [#allocation2]
        %v1161 = vld [vmem:[%s1160] sm:$0xff]
        %v1162 = vld [vmem:[%s1160 + $0x8] sm:$0xff]
        %v1163 = vld [vmem:[%s1160 + $0x10] sm:$0x3]
        %v1164 = vld [vmem:[%s1160 + $0x18] sm:$0xff]
        %v1165 = vld [vmem:[%s1160 + $0x20] sm:$0xff]
        %v1166 = vld [vmem:[%s1160 + $0x28] sm:$0x3]
        %v1167 = vld [vmem:[%s1160 + $0x30] sm:$0xff]
        %v1168 = vld [vmem:[%s1160 + $0x38] sm:$0xff]
        %v1169 = vld [vmem:[%s1160 + $0x40] sm:$0x3]
        %v1170 = vld [vmem:[%s1160 + $0x48] sm:$0xff]
        %v1171 = vld [vmem:[%s1160 + $0x50] sm:$0xff]
        %v1172 = vld [vmem:[%s1160 + $0x58] sm:$0x3]
        %v1173 = vld [vmem:[%s1160 + $0x60] sm:$0xff]
        %v1174 = vld [vmem:[%s1160 + $0x68] sm:$0xff]
        %v1175 = vld [vmem:[%s1160 + $0x70] sm:$0x3]
        %v1176 = vld [vmem:[%s1160 + $0x78] sm:$0xff]
        %v1177 = vld [vmem:[%s1160 + $0x80] sm:$0xff]
        %v1178 = vld [vmem:[%s1160 + $0x88] sm:$0x3]
        %v1197 = vrot.slane %v1161, 1
        %v1198 = vrot.slane %v1162, 1
        %v1199 = vsel %vm479, %v1197, %v1198
        %v1200 = vrot.slane %v1163, 1
        %v1201 = vsel %vm479, %v1198, %v1200
        %v1202 = vrot.slane %v1164, 1
        %v1203 = vrot.slane %v1165, 1
        %v1204 = vsel %vm479, %v1202, %v1203
        %v1205 = vrot.slane %v1166, 1
        %v1206 = vsel %vm479, %v1203, %v1205
        %v1207 = vrot.slane %v1167, 1
        %v1208 = vrot.slane %v1168, 1
        %v1209 = vsel %vm479, %v1207, %v1208
        %v1210 = vrot.slane %v1169, 1
        %v1211 = vsel %vm479, %v1208, %v1210
        %v1212 = vrot.slane %v1170, 1
        %v1213 = vrot.slane %v1171, 1
        %v1214 = vsel %vm479, %v1212, %v1213
        %v1215 = vrot.slane %v1172, 1
        %v1216 = vsel %vm479, %v1213, %v1215
        %v1217 = vrot.slane %v1173, 1
        %v1218 = vrot.slane %v1174, 1
        %v1219 = vsel %vm479, %v1217, %v1218
        %v1220 = vrot.slane %v1175, 1
        %v1221 = vsel %vm479, %v1218, %v1220
        %v1222 = vrot.slane %v1176, 1
        %v1223 = vrot.slane %v1177, 1
        %v1224 = vsel %vm479, %v1222, %v1223
        %v1225 = vrot.slane %v1178, 1
        %v1226 = vsel %vm479, %v1223, %v1225
        %v1239 = vrot.slane %v1161, 2
        %v1240 = vrot.slane %v1162, 2
        %v1241 = vsel %vm522, %v1239, %v1240
        %v1242 = vrot.slane %v1163, 2
        %v1243 = vsel %vm522, %v1240, %v1242
        %v1244 = vrot.slane %v1164, 2
        %v1245 = vrot.slane %v1165, 2
        %v1246 = vsel %vm522, %v1244, %v1245
        %v1247 = vrot.slane %v1166, 2
        %v1248 = vsel %vm522, %v1245, %v1247
        %v1249 = vrot.slane %v1167, 2
        %v1250 = vrot.slane %v1168, 2
        %v1251 = vsel %vm522, %v1249, %v1250
        %v1252 = vrot.slane %v1169, 2
        %v1253 = vsel %vm522, %v1250, %v1252
        %v1254 = vrot.slane %v1170, 2
        %v1255 = vrot.slane %v1171, 2
        %v1256 = vsel %vm522, %v1254, %v1255
        %v1257 = vrot.slane %v1172, 2
        %v1258 = vsel %vm522, %v1255, %v1257
        %v1259 = vrot.slane %v1173, 2
        %v1260 = vrot.slane %v1174, 2
        %v1261 = vsel %vm522, %v1259, %v1260
        %v1262 = vrot.slane %v1175, 2
        %v1263 = vsel %vm522, %v1260, %v1262
        %v1264 = vrot.slane %v1176, 2
        %v1265 = vrot.slane %v1177, 2
        %v1266 = vsel %vm522, %v1264, %v1265
        %v1267 = vrot.slane %v1178, 2
        %v1268 = vsel %vm522, %v1265, %v1267
        %v1281 = vld [vmem:[%s1] sm:$0xff]
        %v1282 = vld [vmem:[%s1 + $0x8] sm:$0xff]
        %v1283 = vld [vmem:[%s1 + $0x10] sm:$0xff]
        %v1284 = vld [vmem:[%s1 + $0x18] sm:$0xff]
        %v1285 = vld [vmem:[%s1 + $0x20] sm:$0xff]
        %v1286 = vld [vmem:[%s1 + $0x28] sm:$0xff]
        %v1287 = vld [vmem:[%s1 + $0x30] sm:$0xff]
        %v1288 = vld [vmem:[%s1 + $0x38] sm:$0xff]
        %v1289 = vld [vmem:[%s1 + $0x40] sm:$0xff]
        %v1290 = vld [vmem:[%s1 + $0x48] sm:$0xff]
        %v1291 = vld [vmem:[%s1 + $0x50] sm:$0xff]
        %v1292 = vld [vmem:[%s1 + $0x58] sm:$0xff]
        %v1293 = vld [vmem:[%s1 + $0x60] sm:$0xff]
        %v1294 = vld [vmem:[%s1 + $0x68] sm:$0xff]
        %v1295 = vld [vmem:[%s1 + $0x70] sm:$0xff]
        %v1296 = vld [vmem:[%s1 + $0x78] sm:$0xff]
        %v1297 = vld [vmem:[%s1 + $0x80] sm:$0xff]
        %v1298 = vld [vmem:[%s1 + $0x88] sm:$0xff]
        %v1299 = vld [vmem:[%s1 + $0x90] sm:$0xff]
        %v1300 = vld [vmem:[%s1 + $0x98] sm:$0xff]
        %v1301 = vld [vmem:[%s1 + $0xa0] sm:$0xff]
        %v1302 = vld [vmem:[%s1 + $0xa8] sm:$0xff]
        %v1303 = vld [vmem:[%s1 + $0xb0] sm:$0xff]
        %v1304 = vld [vmem:[%s1 + $0xb8] sm:$0xff]
        %v1305 = vld [vmem:[%s1 + $0xc0] sm:$0xff]
        %v1306 = vld [vmem:[%s1 + $0xc8] sm:$0xff]
        %v1307 = vld [vmem:[%s1 + $0xd0] sm:$0xff]
        %v1308 = vld [vmem:[%s1 + $0xd8] sm:$0xff]
        %v1309 = vld [vmem:[%s1 + $0xe0] sm:$0xff]
        %v1310 = vld [vmem:[%s1 + $0xe8] sm:$0xff]
        %v1311 = vld [vmem:[%s1 + $0xf0] sm:$0xff]
        %v1312 = vld [vmem:[%s1 + $0xf8] sm:$0xff]
        %v1313 = vld [vmem:[%s1 + $0x100] sm:$0xff]
        %v1314 = vld [vmem:[%s1 + $0x108] sm:$0xff]
        %v1315 = vld [vmem:[%s1 + $0x110] sm:$0xff]
        %v1316 = vld [vmem:[%s1 + $0x118] sm:$0xff]
        %v1317 = vld [vmem:[%s1 + $0x120] sm:$0xff]
        %v1318 = vld [vmem:[%s1 + $0x128] sm:$0xff]
        %v1319 = vld [vmem:[%s1 + $0x130] sm:$0xff]
        %v1320 = vld [vmem:[%s1 + $0x138] sm:$0xff]
        %v1321 = vld [vmem:[%s1 + $0x140] sm:$0xff]
        %v1322 = vld [vmem:[%s1 + $0x148] sm:$0xff]
        %v1323 = vld [vmem:[%s1 + $0x150] sm:$0xff]
        %v1324 = vld [vmem:[%s1 + $0x158] sm:$0xff]
        %v1325 = vld [vmem:[%s1 + $0x160] sm:$0xff]
        %v1326 = vld [vmem:[%s1 + $0x168] sm:$0xff]
        %v1327 = vld [vmem:[%s1 + $0x170] sm:$0xff]
        %v1328 = vld [vmem:[%s1 + $0x178] sm:$0xff]
        %v1329 = vld [vmem:[%s613] sm:$0xff]
        %v1330 = vld [vmem:[%s613 + $0x8] sm:$0xff]
        %v1331 = vld [vmem:[%s613 + $0x10] sm:$0xff]
        %v1332 = vld [vmem:[%s613 + $0x18] sm:$0xff]
        %v1333 = vld [vmem:[%s613 + $0x20] sm:$0xff]
        %v1334 = vld [vmem:[%s613 + $0x28] sm:$0xff]
        %v1335 = vld [vmem:[%s613 + $0x30] sm:$0xff]
        %v1336 = vld [vmem:[%s613 + $0x38] sm:$0xff]
        %v1337 = vld [vmem:[%s613 + $0x40] sm:$0xff]
        %v1338 = vld [vmem:[%s613 + $0x48] sm:$0xff]
        %v1339 = vld [vmem:[%s613 + $0x50] sm:$0xff]
        %v1340 = vld [vmem:[%s613 + $0x58] sm:$0xff]
        %v1341 = vld [vmem:[%s613 + $0x60] sm:$0xff]
        %v1342 = vld [vmem:[%s613 + $0x68] sm:$0xff]
        %v1343 = vld [vmem:[%s613 + $0x70] sm:$0xff]
        %v1344 = vld [vmem:[%s613 + $0x78] sm:$0xff]
        %v1345 = vld [vmem:[%s613 + $0x80] sm:$0xff]
        %v1346 = vld [vmem:[%s613 + $0x88] sm:$0xff]
        %v1347 = vld [vmem:[%s613 + $0x90] sm:$0xff]
        %v1348 = vld [vmem:[%s613 + $0x98] sm:$0xff]
        %v1349 = vld [vmem:[%s613 + $0xa0] sm:$0xff]
        %v1350 = vld [vmem:[%s613 + $0xa8] sm:$0xff]
        %v1351 = vld [vmem:[%s613 + $0xb0] sm:$0xff]
        %v1352 = vld [vmem:[%s613 + $0xb8] sm:$0xff]
        %v1353 = vld [vmem:[%s613 + $0xc0] sm:$0xff]
        %v1354 = vld [vmem:[%s613 + $0xc8] sm:$0xff]
        %v1355 = vld [vmem:[%s613 + $0xd0] sm:$0xff]
        %v1356 = vld [vmem:[%s613 + $0xd8] sm:$0xff]
        %v1357 = vld [vmem:[%s613 + $0xe0] sm:$0xff]
        %v1358 = vld [vmem:[%s613 + $0xe8] sm:$0xff]
        %v1359 = vld [vmem:[%s613 + $0xf0] sm:$0xff]
        %v1360 = vld [vmem:[%s613 + $0xf8] sm:$0xff]
        %v1361 = vld [vmem:[%s613 + $0x100] sm:$0xff]
        %v1362 = vld [vmem:[%s613 + $0x108] sm:$0xff]
        %v1363 = vld [vmem:[%s613 + $0x110] sm:$0xff]
        %v1364 = vld [vmem:[%s613 + $0x118] sm:$0xff]
        %v1365 = vld [vmem:[%s613 + $0x120] sm:$0xff]
        %v1366 = vld [vmem:[%s613 + $0x128] sm:$0xff]
        %v1367 = vld [vmem:[%s613 + $0x130] sm:$0xff]
        %v1368 = vld [vmem:[%s613 + $0x138] sm:$0xff]
        %v1369 = vld [vmem:[%s613 + $0x140] sm:$0xff]
        %v1370 = vld [vmem:[%s613 + $0x148] sm:$0xff]
        %v1371 = vld [vmem:[%s613 + $0x150] sm:$0xff]
        %v1372 = vld [vmem:[%s613 + $0x158] sm:$0xff]
        %v1373 = vld [vmem:[%s613 + $0x160] sm:$0xff]
        %v1374 = vld [vmem:[%s613 + $0x168] sm:$0xff]
        %v1375 = vld [vmem:[%s613 + $0x170] sm:$0xff]
        %v1376 = vld [vmem:[%s613 + $0x178] sm:$0xff]
        %1377 = vmatpush.msra.mxu0 %v1344
        %1378 = vmatpush.msra.mxu0 %v1343
        %1379 = vmatpush.msra.mxu0 %v1342
        %1380 = vmatpush.msra.mxu0 %v1341
        %1381 = vmatpush.msra.mxu0 %v1340
        %1382 = vmatpush.msra.mxu0 %v1339
        %1383 = vmatpush.msra.mxu0 %v1338
        %1384 = vmatpush.msra.mxu0 %v1337
        %1385 = vmatpush.msra.mxu0 %v1336
        %1386 = vmatpush.msra.mxu0 %v1335
        %1387 = vmatpush.msra.mxu0 %v1334
        %1388 = vmatpush.msra.mxu0 %v1333
        %1389 = vmatpush.msra.mxu0 %v1332
        %1390 = vmatpush.msra.mxu0 %v1331
        %1391 = vmatpush.msra.mxu0 %v1330
        %1392 = vmatpush.msra.mxu0 %v1329
        %1393 = vmatmul.f32.gmra.mxu0 %v1164
        %v1394 = vpop.f32.mrf.mxu0
        %v1395 = vadd.f32 0.0, %v1394
        %1396 = vmatmul.f32.gmra.mxu0 %v1165
        %v1397 = vpop.f32.mrf.mxu0
        %v1398 = vadd.f32 0.0, %v1397
        %1399 = vmatmul.f32.gmra.mxu0 %v1167
        %v1400 = vpop.f32.mrf.mxu0
        %v1401 = vadd.f32 0.0, %v1400
        %1402 = vmatmul.f32.gmra.mxu0 %v1168
        %v1403 = vpop.f32.mrf.mxu0
        %v1404 = vadd.f32 0.0, %v1403
        %1405 = vmatmul.f32.gmra.mxu0 %v1170
        %v1406 = vpop.f32.mrf.mxu0
        %v1407 = vadd.f32 0.0, %v1406
        %1408 = vmatmul.f32.gmra.mxu0 %v1171
        %v1409 = vpop.f32.mrf.mxu0
        %v1410 = vadd.f32 0.0, %v1409
        %1411 = vmatmul.f32.gmra.mxu0 %v1173
        %v1412 = vpop.f32.mrf.mxu0
        %v1413 = vadd.f32 0.0, %v1412
        %1414 = vmatmul.f32.gmra.mxu0 %v1174
        %v1415 = vpop.f32.mrf.mxu0
        %v1416 = vadd.f32 0.0, %v1415
        %1417 = vdwg.mxu0
        %1418 = vmatpush.msra.mxu0 %v1360
        %1419 = vmatpush.msra.mxu0 %v1359
        %1420 = vmatpush.msra.mxu0 %v1358
        %1421 = vmatpush.msra.mxu0 %v1357
        %1422 = vmatpush.msra.mxu0 %v1356
        %1423 = vmatpush.msra.mxu0 %v1355
        %1424 = vmatpush.msra.mxu0 %v1354
        %1425 = vmatpush.msra.mxu0 %v1353
        %1426 = vmatpush.msra.mxu0 %v1352
        %1427 = vmatpush.msra.mxu0 %v1351
        %1428 = vmatpush.msra.mxu0 %v1350
        %1429 = vmatpush.msra.mxu0 %v1349
        %1430 = vmatpush.msra.mxu0 %v1348
        %1431 = vmatpush.msra.mxu0 %v1347
        %1432 = vmatpush.msra.mxu0 %v1346
        %1433 = vmatpush.msra.mxu0 %v1345
        %1434 = vmatmul.f32.gmra.mxu0 %v1204
        %v1435 = vpop.f32.mrf.mxu0
        %v1436 = vadd.f32 %v1395, %v1435
        %1437 = vmatmul.f32.gmra.mxu0 %v1206
        %v1438 = vpop.f32.mrf.mxu0
        %v1439 = vadd.f32 %v1398, %v1438
        %1440 = vmatmul.f32.gmra.mxu0 %v1209
        %v1441 = vpop.f32.mrf.mxu0
        %v1442 = vadd.f32 %v1401, %v1441
        %1443 = vmatmul.f32.gmra.mxu0 %v1211
        %v1444 = vpop.f32.mrf.mxu0
        %v1445 = vadd.f32 %v1404, %v1444
        %1446 = vmatmul.f32.gmra.mxu0 %v1214
        %v1447 = vpop.f32.mrf.mxu0
        %v1448 = vadd.f32 %v1407, %v1447
        %1449 = vmatmul.f32.gmra.mxu0 %v1216
        %v1450 = vpop.f32.mrf.mxu0
        %v1451 = vadd.f32 %v1410, %v1450
        %1452 = vmatmul.f32.gmra.mxu0 %v1219
        %v1453 = vpop.f32.mrf.mxu0
        %v1454 = vadd.f32 %v1413, %v1453
        %1455 = vmatmul.f32.gmra.mxu0 %v1221
        %v1456 = vpop.f32.mrf.mxu0
        %v1457 = vadd.f32 %v1416, %v1456
        %1458 = vdwg.mxu0
        %1459 = vmatpush.msra.mxu0 %v1376
        %1460 = vmatpush.msra.mxu0 %v1375
        %1461 = vmatpush.msra.mxu0 %v1374
        %1462 = vmatpush.msra.mxu0 %v1373
        %1463 = vmatpush.msra.mxu0 %v1372
        %1464 = vmatpush.msra.mxu0 %v1371
        %1465 = vmatpush.msra.mxu0 %v1370
        %1466 = vmatpush.msra.mxu0 %v1369
        %1467 = vmatpush.msra.mxu0 %v1368
        %1468 = vmatpush.msra.mxu0 %v1367
        %1469 = vmatpush.msra.mxu0 %v1366
        %1470 = vmatpush.msra.mxu0 %v1365
        %1471 = vmatpush.msra.mxu0 %v1364
        %1472 = vmatpush.msra.mxu0 %v1363
        %1473 = vmatpush.msra.mxu0 %v1362
        %1474 = vmatpush.msra.mxu0 %v1361
        %1475 = vmatmul.f32.gmra.mxu0 %v1246
        %v1476 = vpop.f32.mrf.mxu0
        %v1477 = vadd.f32 %v1436, %v1476
        %1478 = vmatmul.f32.gmra.mxu0 %v1248
        %v1479 = vpop.f32.mrf.mxu0
        %v1480 = vadd.f32 %v1439, %v1479
        %1481 = vmatmul.f32.gmra.mxu0 %v1251
        %v1482 = vpop.f32.mrf.mxu0
        %v1483 = vadd.f32 %v1442, %v1482
        %1484 = vmatmul.f32.gmra.mxu0 %v1253
        %v1485 = vpop.f32.mrf.mxu0
        %v1486 = vadd.f32 %v1445, %v1485
        %1487 = vmatmul.f32.gmra.mxu0 %v1256
        %v1488 = vpop.f32.mrf.mxu0
        %v1489 = vadd.f32 %v1448, %v1488
        %1490 = vmatmul.f32.gmra.mxu0 %v1258
        %v1491 = vpop.f32.mrf.mxu0
        %v1492 = vadd.f32 %v1451, %v1491
        %1493 = vmatmul.f32.gmra.mxu0 %v1261
        %v1494 = vpop.f32.mrf.mxu0
        %v1495 = vadd.f32 %v1454, %v1494
        %1496 = vmatmul.f32.gmra.mxu0 %v1263
        %v1497 = vpop.f32.mrf.mxu0
        %v1498 = vadd.f32 %v1457, %v1497
        %1499 = vdwg.mxu0
        %1500 = vmatpush.msra.mxu0 %v1296
        %1501 = vmatpush.msra.mxu0 %v1295
        %1502 = vmatpush.msra.mxu0 %v1294
        %1503 = vmatpush.msra.mxu0 %v1293
        %1504 = vmatpush.msra.mxu0 %v1292
        %1505 = vmatpush.msra.mxu0 %v1291
        %1506 = vmatpush.msra.mxu0 %v1290
        %1507 = vmatpush.msra.mxu0 %v1289
        %1508 = vmatpush.msra.mxu0 %v1288
        %1509 = vmatpush.msra.mxu0 %v1287
        %1510 = vmatpush.msra.mxu0 %v1286
        %1511 = vmatpush.msra.mxu0 %v1285
        %1512 = vmatpush.msra.mxu0 %v1284
        %1513 = vmatpush.msra.mxu0 %v1283
        %1514 = vmatpush.msra.mxu0 %v1282
        %1515 = vmatpush.msra.mxu0 %v1281
        %1516 = vmatmul.f32.gmra.mxu0 %v1161
        %v1517 = vpop.f32.mrf.mxu0
        %v1518 = vadd.f32 %v1477, %v1517
        %1519 = vmatmul.f32.gmra.mxu0 %v1162
        %v1520 = vpop.f32.mrf.mxu0
        %v1521 = vadd.f32 %v1480, %v1520
        %1522 = vmatmul.f32.gmra.mxu0 %v1164
        %v1523 = vpop.f32.mrf.mxu0
        %v1524 = vadd.f32 %v1483, %v1523
        %1525 = vmatmul.f32.gmra.mxu0 %v1165
        %v1526 = vpop.f32.mrf.mxu0
        %v1527 = vadd.f32 %v1486, %v1526
        %1528 = vmatmul.f32.gmra.mxu0 %v1167
        %v1529 = vpop.f32.mrf.mxu0
        %v1530 = vadd.f32 %v1489, %v1529
        %1531 = vmatmul.f32.gmra.mxu0 %v1168
        %v1532 = vpop.f32.mrf.mxu0
        %v1533 = vadd.f32 %v1492, %v1532
        %1534 = vmatmul.f32.gmra.mxu0 %v1170
        %v1535 = vpop.f32.mrf.mxu0
        %v1536 = vadd.f32 %v1495, %v1535
        %1537 = vmatmul.f32.gmra.mxu0 %v1171
        %v1538 = vpop.f32.mrf.mxu0
        %v1539 = vadd.f32 %v1498, %v1538
        %1540 = vdwg.mxu0
        %1541 = vmatpush.msra.mxu0 %v1312
        %1542 = vmatpush.msra.mxu0 %v1311
        %1543 = vmatpush.msra.mxu0 %v1310
        %1544 = vmatpush.msra.mxu0 %v1309
        %1545 = vmatpush.msra.mxu0 %v1308
        %1546 = vmatpush.msra.mxu0 %v1307
        %1547 = vmatpush.msra.mxu0 %v1306
        %1548 = vmatpush.msra.mxu0 %v1305
        %1549 = vmatpush.msra.mxu0 %v1304
        %1550 = vmatpush.msra.mxu0 %v1303
        %1551 = vmatpush.msra.mxu0 %v1302
        %1552 = vmatpush.msra.mxu0 %v1301
        %1553 = vmatpush.msra.mxu0 %v1300
        %1554 = vmatpush.msra.mxu0 %v1299
        %1555 = vmatpush.msra.mxu0 %v1298
        %1556 = vmatpush.msra.mxu0 %v1297
        %1557 = vmatmul.f32.gmra.mxu0 %v1199
        %v1558 = vpop.f32.mrf.mxu0
        %v1559 = vadd.f32 %v1518, %v1558
        %1560 = vmatmul.f32.gmra.mxu0 %v1201
        %v1561 = vpop.f32.mrf.mxu0
        %v1562 = vadd.f32 %v1521, %v1561
        %1563 = vmatmul.f32.gmra.mxu0 %v1204
        %v1564 = vpop.f32.mrf.mxu0
        %v1565 = vadd.f32 %v1524, %v1564
        %1566 = vmatmul.f32.gmra.mxu0 %v1206
        %v1567 = vpop.f32.mrf.mxu0
        %v1568 = vadd.f32 %v1527, %v1567
        %1569 = vmatmul.f32.gmra.mxu0 %v1209
        %v1570 = vpop.f32.mrf.mxu0
        %v1571 = vadd.f32 %v1530, %v1570
        %1572 = vmatmul.f32.gmra.mxu0 %v1211
        %v1573 = vpop.f32.mrf.mxu0
        %v1574 = vadd.f32 %v1533, %v1573
        %1575 = vmatmul.f32.gmra.mxu0 %v1214
        %v1576 = vpop.f32.mrf.mxu0
        %v1577 = vadd.f32 %v1536, %v1576
        %1578 = vmatmul.f32.gmra.mxu0 %v1216
        %v1579 = vpop.f32.mrf.mxu0
        %v1580 = vadd.f32 %v1539, %v1579
        %1581 = vdwg.mxu0
        %1582 = vmatpush.msra.mxu0 %v1328
        %1583 = vmatpush.msra.mxu0 %v1327
        %1584 = vmatpush.msra.mxu0 %v1326
        %1585 = vmatpush.msra.mxu0 %v1325
        %1586 = vmatpush.msra.mxu0 %v1324
        %1587 = vmatpush.msra.mxu0 %v1323
        %1588 = vmatpush.msra.mxu0 %v1322
        %1589 = vmatpush.msra.mxu0 %v1321
        %1590 = vmatpush.msra.mxu0 %v1320
        %1591 = vmatpush.msra.mxu0 %v1319
        %1592 = vmatpush.msra.mxu0 %v1318
        %1593 = vmatpush.msra.mxu0 %v1317
        %1594 = vmatpush.msra.mxu0 %v1316
        %1595 = vmatpush.msra.mxu0 %v1315
        %1596 = vmatpush.msra.mxu0 %v1314
        %1597 = vmatpush.msra.mxu0 %v1313
        %1598 = vmatmul.f32.gmra.mxu0 %v1241
        %v1599 = vpop.f32.mrf.mxu0
        %v1600 = vadd.f32 %v1559, %v1599
        %1601 = vmatmul.f32.gmra.mxu0 %v1243
        %v1602 = vpop.f32.mrf.mxu0
        %v1603 = vadd.f32 %v1562, %v1602
        %1604 = vmatmul.f32.gmra.mxu0 %v1246
        %v1605 = vpop.f32.mrf.mxu0
        %v1606 = vadd.f32 %v1565, %v1605
        %1607 = vmatmul.f32.gmra.mxu0 %v1248
        %v1608 = vpop.f32.mrf.mxu0
        %v1609 = vadd.f32 %v1568, %v1608
        %1610 = vmatmul.f32.gmra.mxu0 %v1251
        %v1611 = vpop.f32.mrf.mxu0
        %v1612 = vadd.f32 %v1571, %v1611
        %1613 = vmatmul.f32.gmra.mxu0 %v1253
        %v1614 = vpop.f32.mrf.mxu0
        %v1615 = vadd.f32 %v1574, %v1614
        %1616 = vmatmul.f32.gmra.mxu0 %v1256
        %v1617 = vpop.f32.mrf.mxu0
        %v1618 = vadd.f32 %v1577, %v1617
        %1619 = vmatmul.f32.gmra.mxu0 %v1258
        %v1620 = vpop.f32.mrf.mxu0
        %v1621 = vadd.f32 %v1580, %v1620
        %1622 = vdwg.mxu0
        %v1623 = vld [vmem:[%s908] sm:$0xff]
        %v1624 = vld [vmem:[%s908 + $0x8] sm:$0xff]
        %v1625 = vld [vmem:[%s908 + $0x10] sm:$0xff]
        %v1626 = vld [vmem:[%s908 + $0x18] sm:$0xff]
        %v1627 = vld [vmem:[%s908 + $0x20] sm:$0xff]
        %v1628 = vld [vmem:[%s908 + $0x28] sm:$0xff]
        %v1629 = vld [vmem:[%s908 + $0x30] sm:$0xff]
        %v1630 = vld [vmem:[%s908 + $0x38] sm:$0xff]
        %v1631 = vld [vmem:[%s908 + $0x40] sm:$0xff]
        %v1632 = vld [vmem:[%s908 + $0x48] sm:$0xff]
        %v1633 = vld [vmem:[%s908 + $0x50] sm:$0xff]
        %v1634 = vld [vmem:[%s908 + $0x58] sm:$0xff]
        %v1635 = vld [vmem:[%s908 + $0x60] sm:$0xff]
        %v1636 = vld [vmem:[%s908 + $0x68] sm:$0xff]
        %v1637 = vld [vmem:[%s908 + $0x70] sm:$0xff]
        %v1638 = vld [vmem:[%s908 + $0x78] sm:$0xff]
        %v1639 = vld [vmem:[%s908 + $0x80] sm:$0xff]
        %v1640 = vld [vmem:[%s908 + $0x88] sm:$0xff]
        %v1641 = vld [vmem:[%s908 + $0x90] sm:$0xff]
        %v1642 = vld [vmem:[%s908 + $0x98] sm:$0xff]
        %v1643 = vld [vmem:[%s908 + $0xa0] sm:$0xff]
        %v1644 = vld [vmem:[%s908 + $0xa8] sm:$0xff]
        %v1645 = vld [vmem:[%s908 + $0xb0] sm:$0xff]
        %v1646 = vld [vmem:[%s908 + $0xb8] sm:$0xff]
        %v1647 = vld [vmem:[%s908 + $0xc0] sm:$0xff]
        %v1648 = vld [vmem:[%s908 + $0xc8] sm:$0xff]
        %v1649 = vld [vmem:[%s908 + $0xd0] sm:$0xff]
        %v1650 = vld [vmem:[%s908 + $0xd8] sm:$0xff]
        %v1651 = vld [vmem:[%s908 + $0xe0] sm:$0xff]
        %v1652 = vld [vmem:[%s908 + $0xe8] sm:$0xff]
        %v1653 = vld [vmem:[%s908 + $0xf0] sm:$0xff]
        %v1654 = vld [vmem:[%s908 + $0xf8] sm:$0xff]
        %v1655 = vld [vmem:[%s908 + $0x100] sm:$0xff]
        %v1656 = vld [vmem:[%s908 + $0x108] sm:$0xff]
        %v1657 = vld [vmem:[%s908 + $0x110] sm:$0xff]
        %v1658 = vld [vmem:[%s908 + $0x118] sm:$0xff]
        %v1659 = vld [vmem:[%s908 + $0x120] sm:$0xff]
        %v1660 = vld [vmem:[%s908 + $0x128] sm:$0xff]
        %v1661 = vld [vmem:[%s908 + $0x130] sm:$0xff]
        %v1662 = vld [vmem:[%s908 + $0x138] sm:$0xff]
        %v1663 = vld [vmem:[%s908 + $0x140] sm:$0xff]
        %v1664 = vld [vmem:[%s908 + $0x148] sm:$0xff]
        %v1665 = vld [vmem:[%s908 + $0x150] sm:$0xff]
        %v1666 = vld [vmem:[%s908 + $0x158] sm:$0xff]
        %v1667 = vld [vmem:[%s908 + $0x160] sm:$0xff]
        %v1668 = vld [vmem:[%s908 + $0x168] sm:$0xff]
        %v1669 = vld [vmem:[%s908 + $0x170] sm:$0xff]
        %v1670 = vld [vmem:[%s908 + $0x178] sm:$0xff]
        %1671 = vmatpush.msra.mxu0 %v1638
        %1672 = vmatpush.msra.mxu0 %v1637
        %1673 = vmatpush.msra.mxu0 %v1636
        %1674 = vmatpush.msra.mxu0 %v1635
        %1675 = vmatpush.msra.mxu0 %v1634
        %1676 = vmatpush.msra.mxu0 %v1633
        %1677 = vmatpush.msra.mxu0 %v1632
        %1678 = vmatpush.msra.mxu0 %v1631
        %1679 = vmatpush.msra.mxu0 %v1630
        %1680 = vmatpush.msra.mxu0 %v1629
        %1681 = vmatpush.msra.mxu0 %v1628
        %1682 = vmatpush.msra.mxu0 %v1627
        %1683 = vmatpush.msra.mxu0 %v1626
        %1684 = vmatpush.msra.mxu0 %v1625
        %1685 = vmatpush.msra.mxu0 %v1624
        %1686 = vmatpush.msra.mxu0 %v1623
        %1687 = vmatmul.f32.gmra.mxu0 %v1167
        %v1688 = vpop.f32.mrf.mxu0
        %v1689 = vadd.f32 0.0, %v1688
        %1690 = vmatmul.f32.gmra.mxu0 %v1168
        %v1691 = vpop.f32.mrf.mxu0
        %v1692 = vadd.f32 0.0, %v1691
        %1693 = vmatmul.f32.gmra.mxu0 %v1170
        %v1694 = vpop.f32.mrf.mxu0
        %v1695 = vadd.f32 0.0, %v1694
        %1696 = vmatmul.f32.gmra.mxu0 %v1171
        %v1697 = vpop.f32.mrf.mxu0
        %v1698 = vadd.f32 0.0, %v1697
        %1699 = vmatmul.f32.gmra.mxu0 %v1173
        %v1700 = vpop.f32.mrf.mxu0
        %v1701 = vadd.f32 0.0, %v1700
        %1702 = vmatmul.f32.gmra.mxu0 %v1174
        %v1703 = vpop.f32.mrf.mxu0
        %v1704 = vadd.f32 0.0, %v1703
        %1705 = vmatmul.f32.gmra.mxu0 %v1176
        %v1706 = vpop.f32.mrf.mxu0
        %v1707 = vadd.f32 0.0, %v1706
        %1708 = vmatmul.f32.gmra.mxu0 %v1177
        %v1709 = vpop.f32.mrf.mxu0
        %v1710 = vadd.f32 0.0, %v1709
        %1711 = vdwg.mxu0
        %1712 = vmatpush.msra.mxu0 %v1654
        %1713 = vmatpush.msra.mxu0 %v1653
        %1714 = vmatpush.msra.mxu0 %v1652
        %1715 = vmatpush.msra.mxu0 %v1651
        %1716 = vmatpush.msra.mxu0 %v1650
        %1717 = vmatpush.msra.mxu0 %v1649
        %1718 = vmatpush.msra.mxu0 %v1648
        %1719 = vmatpush.msra.mxu0 %v1647
        %1720 = vmatpush.msra.mxu0 %v1646
        %1721 = vmatpush.msra.mxu0 %v1645
        %1722 = vmatpush.msra.mxu0 %v1644
        %1723 = vmatpush.msra.mxu0 %v1643
        %1724 = vmatpush.msra.mxu0 %v1642
        %1725 = vmatpush.msra.mxu0 %v1641
        %1726 = vmatpush.msra.mxu0 %v1640
        %1727 = vmatpush.msra.mxu0 %v1639
        %1728 = vmatmul.f32.gmra.mxu0 %v1209
        %v1729 = vpop.f32.mrf.mxu0
        %v1730 = vadd.f32 %v1689, %v1729
        %1731 = vmatmul.f32.gmra.mxu0 %v1211
        %v1732 = vpop.f32.mrf.mxu0
        %v1733 = vadd.f32 %v1692, %v1732
        %1734 = vmatmul.f32.gmra.mxu0 %v1214
        %v1735 = vpop.f32.mrf.mxu0
        %v1736 = vadd.f32 %v1695, %v1735
        %1737 = vmatmul.f32.gmra.mxu0 %v1216
        %v1738 = vpop.f32.mrf.mxu0
        %v1739 = vadd.f32 %v1698, %v1738
        %1740 = vmatmul.f32.gmra.mxu0 %v1219
        %v1741 = vpop.f32.mrf.mxu0
        %v1742 = vadd.f32 %v1701, %v1741
        %1743 = vmatmul.f32.gmra.mxu0 %v1221
        %v1744 = vpop.f32.mrf.mxu0
        %v1745 = vadd.f32 %v1704, %v1744
        %1746 = vmatmul.f32.gmra.mxu0 %v1224
        %v1747 = vpop.f32.mrf.mxu0
        %v1748 = vadd.f32 %v1707, %v1747
        %1749 = vmatmul.f32.gmra.mxu0 %v1226
        %v1750 = vpop.f32.mrf.mxu0
        %v1751 = vadd.f32 %v1710, %v1750
        %1752 = vdwg.mxu0
        %1753 = vmatpush.msra.mxu0 %v1670
        %1754 = vmatpush.msra.mxu0 %v1669
        %1755 = vmatpush.msra.mxu0 %v1668
        %1756 = vmatpush.msra.mxu0 %v1667
        %1757 = vmatpush.msra.mxu0 %v1666
        %1758 = vmatpush.msra.mxu0 %v1665
        %1759 = vmatpush.msra.mxu0 %v1664
        %1760 = vmatpush.msra.mxu0 %v1663
        %1761 = vmatpush.msra.mxu0 %v1662
        %1762 = vmatpush.msra.mxu0 %v1661
        %1763 = vmatpush.msra.mxu0 %v1660
        %1764 = vmatpush.msra.mxu0 %v1659
        %1765 = vmatpush.msra.mxu0 %v1658
        %1766 = vmatpush.msra.mxu0 %v1657
        %1767 = vmatpush.msra.mxu0 %v1656
        %1768 = vmatpush.msra.mxu0 %v1655
        %1769 = vmatmul.f32.gmra.mxu0 %v1251
        %v1770 = vpop.f32.mrf.mxu0
        %v1771 = vadd.f32 %v1730, %v1770
        %1772 = vmatmul.f32.gmra.mxu0 %v1253
        %v1773 = vpop.f32.mrf.mxu0
        %v1774 = vadd.f32 %v1733, %v1773
        %1775 = vmatmul.f32.gmra.mxu0 %v1256
        %v1776 = vpop.f32.mrf.mxu0
        %v1777 = vadd.f32 %v1736, %v1776
        %1778 = vmatmul.f32.gmra.mxu0 %v1258
        %v1779 = vpop.f32.mrf.mxu0
        %v1780 = vadd.f32 %v1739, %v1779
        %1781 = vmatmul.f32.gmra.mxu0 %v1261
        %v1782 = vpop.f32.mrf.mxu0
        %v1783 = vadd.f32 %v1742, %v1782
        %1784 = vmatmul.f32.gmra.mxu0 %v1263
        %v1785 = vpop.f32.mrf.mxu0
        %v1786 = vadd.f32 %v1745, %v1785
        %1787 = vmatmul.f32.gmra.mxu0 %v1266
        %v1788 = vpop.f32.mrf.mxu0
        %v1789 = vadd.f32 %v1748, %v1788
        %1790 = vmatmul.f32.gmra.mxu0 %v1268
        %v1791 = vpop.f32.mrf.mxu0
        %v1792 = vadd.f32 %v1751, %v1791
        %1793 = vdwg.mxu0
        %v1794 = vadd.f32 %v1600, %v1771
        %v1795 = vadd.f32 %v1603, %v1774
        %v1796 = vadd.f32 %v1606, %v1777
        %v1797 = vadd.f32 %v1609, %v1780
        %v1798 = vadd.f32 %v1612, %v1783
        %v1799 = vadd.f32 %v1615, %v1786
        %v1800 = vadd.f32 %v1618, %v1789
        %v1801 = vadd.f32 %v1621, %v1792
        %v1802 = vadd.f32 %v1794, %v1089
        %v1803 = vadd.f32 %v1795, %v1089
        %v1804 = vadd.f32 %v1796, %v1089
        %v1805 = vadd.f32 %v1797, %v1089
        %v1806 = vadd.f32 %v1798, %v1089
        %v1807 = vadd.f32 %v1799, %v1089
        %v1808 = vadd.f32 %v1800, %v1089
        %v1809 = vadd.f32 %v1801, %v1089
        %v1810 = vmax.f32 %v1802, 0.0
        %v1811 = vmax.f32 %v1803, 0.0
        %v1812 = vmax.f32 %v1804, 0.0
        %v1813 = vmax.f32 %v1805, 0.0
        %v1814 = vmax.f32 %v1806, 0.0
        %v1815 = vmax.f32 %v1807, 0.0
        %v1816 = vmax.f32 %v1808, 0.0
        %v1817 = vmax.f32 %v1809, 0.0
        %v1826 = vrot.slane %v1810, 7
        %v1827 = vrot.slane %v1811, 7
        %v1828 = vsel %vm1115, %v1826, %v1827
        %v1829 = vrot.slane %v1812, 7
        %v1830 = vrot.slane %v1813, 7
        %v1831 = vsel %vm1115, %v1829, %v1830
        %v1832 = vrot.slane %v1814, 7
        %v1833 = vrot.slane %v1815, 7
        %v1834 = vsel %vm1115, %v1832, %v1833
        %v1835 = vrot.slane %v1816, 7
        %v1836 = vrot.slane %v1817, 7
        %v1837 = vsel %vm1115, %v1835, %v1836
        %v1850 = vsel %vm1115, 0.0, %v1826
        %v1851 = vsel %vm1115, 0.0, %v1829
        %v1852 = vsel %vm1115, 0.0, %v1832
        %v1853 = vsel %vm1115, 0.0, %v1835
        %v1854 = vsel %vm1115, %v1827, 0.0
        %v1855 = vsel %vm1115, %v1830, 0.0
        %v1856 = vsel %vm1115, %v1833, 0.0
        %v1857 = vsel %vm1115, %v1836, 0.0
        %s1858 = scalar_lea.vmem [#allocation3], 96
        %1859 = vst [vmem:[%s1858] sm:$0xff] %v1850
        %1860 = vst [vmem:[%s1858 + $0x8] sm:$0xff] %v1828
        %1861 = vst [vmem:[%s1858 + $0x10] sm:$0x3] %v1854
        %1862 = vst [vmem:[%s1858 + $0x18] sm:$0xff] %v1851
        %1863 = vst [vmem:[%s1858 + $0x20] sm:$0xff] %v1831
        %1864 = vst [vmem:[%s1858 + $0x28] sm:$0x3] %v1855
        %1865 = vst [vmem:[%s1858 + $0x30] sm:$0xff] %v1852
        %1866 = vst [vmem:[%s1858 + $0x38] sm:$0xff] %v1834
        %1867 = vst [vmem:[%s1858 + $0x40] sm:$0x3] %v1856
        %1868 = vst [vmem:[%s1858 + $0x48] sm:$0xff] %v1853
        %1869 = vst [vmem:[%s1858 + $0x50] sm:$0xff] %v1837
        %1870 = vst [vmem:[%s1858 + $0x58] sm:$0x3] %v1857
        %s1871 = scalar_lea.vmem %s435, 144 [#allocation2]
        %v1872 = vld [vmem:[%s1871] sm:$0xff]
        %v1873 = vld [vmem:[%s1871 + $0x8] sm:$0xff]
        %v1874 = vld [vmem:[%s1871 + $0x10] sm:$0x3]
        %v1875 = vld [vmem:[%s1871 + $0x18] sm:$0xff]
        %v1876 = vld [vmem:[%s1871 + $0x20] sm:$0xff]
        %v1877 = vld [vmem:[%s1871 + $0x28] sm:$0x3]
        %v1878 = vld [vmem:[%s1871 + $0x30] sm:$0xff]
        %v1879 = vld [vmem:[%s1871 + $0x38] sm:$0xff]
        %v1880 = vld [vmem:[%s1871 + $0x40] sm:$0x3]
        %v1881 = vld [vmem:[%s1871 + $0x48] sm:$0xff]
        %v1882 = vld [vmem:[%s1871 + $0x50] sm:$0xff]
        %v1883 = vld [vmem:[%s1871 + $0x58] sm:$0x3]
        %v1884 = vld [vmem:[%s1871 + $0x60] sm:$0xff]
        %v1885 = vld [vmem:[%s1871 + $0x68] sm:$0xff]
        %v1886 = vld [vmem:[%s1871 + $0x70] sm:$0x3]
        %v1887 = vld [vmem:[%s1871 + $0x78] sm:$0xff]
        %v1888 = vld [vmem:[%s1871 + $0x80] sm:$0xff]
        %v1889 = vld [vmem:[%s1871 + $0x88] sm:$0x3]
        %v1908 = vrot.slane %v1872, 1
        %v1909 = vrot.slane %v1873, 1
        %v1910 = vsel %vm479, %v1908, %v1909
        %v1911 = vrot.slane %v1874, 1
        %v1912 = vsel %vm479, %v1909, %v1911
        %v1913 = vrot.slane %v1875, 1
        %v1914 = vrot.slane %v1876, 1
        %v1915 = vsel %vm479, %v1913, %v1914
        %v1916 = vrot.slane %v1877, 1
        %v1917 = vsel %vm479, %v1914, %v1916
        %v1918 = vrot.slane %v1878, 1
        %v1919 = vrot.slane %v1879, 1
        %v1920 = vsel %vm479, %v1918, %v1919
        %v1921 = vrot.slane %v1880, 1
        %v1922 = vsel %vm479, %v1919, %v1921
        %v1923 = vrot.slane %v1881, 1
        %v1924 = vrot.slane %v1882, 1
        %v1925 = vsel %vm479, %v1923, %v1924
        %v1926 = vrot.slane %v1883, 1
        %v1927 = vsel %vm479, %v1924, %v1926
        %v1928 = vrot.slane %v1884, 1
        %v1929 = vrot.slane %v1885, 1
        %v1930 = vsel %vm479, %v1928, %v1929
        %v1931 = vrot.slane %v1886, 1
        %v1932 = vsel %vm479, %v1929, %v1931
        %v1933 = vrot.slane %v1887, 1
        %v1934 = vrot.slane %v1888, 1
        %v1935 = vsel %vm479, %v1933, %v1934
        %v1936 = vrot.slane %v1889, 1
        %v1937 = vsel %vm479, %v1934, %v1936
        %v1950 = vrot.slane %v1872, 2
        %v1951 = vrot.slane %v1873, 2
        %v1952 = vsel %vm522, %v1950, %v1951
        %v1953 = vrot.slane %v1874, 2
        %v1954 = vsel %vm522, %v1951, %v1953
        %v1955 = vrot.slane %v1875, 2
        %v1956 = vrot.slane %v1876, 2
        %v1957 = vsel %vm522, %v1955, %v1956
        %v1958 = vrot.slane %v1877, 2
        %v1959 = vsel %vm522, %v1956, %v1958
        %v1960 = vrot.slane %v1878, 2
        %v1961 = vrot.slane %v1879, 2
        %v1962 = vsel %vm522, %v1960, %v1961
        %v1963 = vrot.slane %v1880, 2
        %v1964 = vsel %vm522, %v1961, %v1963
        %v1965 = vrot.slane %v1881, 2
        %v1966 = vrot.slane %v1882, 2
        %v1967 = vsel %vm522, %v1965, %v1966
        %v1968 = vrot.slane %v1883, 2
        %v1969 = vsel %vm522, %v1966, %v1968
        %v1970 = vrot.slane %v1884, 2
        %v1971 = vrot.slane %v1885, 2
        %v1972 = vsel %vm522, %v1970, %v1971
        %v1973 = vrot.slane %v1886, 2
        %v1974 = vsel %vm522, %v1971, %v1973
        %v1975 = vrot.slane %v1887, 2
        %v1976 = vrot.slane %v1888, 2
        %v1977 = vsel %vm522, %v1975, %v1976
        %v1978 = vrot.slane %v1889, 2
        %v1979 = vsel %vm522, %v1976, %v1978
        %v1992 = vld [vmem:[%s1] sm:$0xff]
        %v1993 = vld [vmem:[%s1 + $0x8] sm:$0xff]
        %v1994 = vld [vmem:[%s1 + $0x10] sm:$0xff]
        %v1995 = vld [vmem:[%s1 + $0x18] sm:$0xff]
        %v1996 = vld [vmem:[%s1 + $0x20] sm:$0xff]
        %v1997 = vld [vmem:[%s1 + $0x28] sm:$0xff]
        %v1998 = vld [vmem:[%s1 + $0x30] sm:$0xff]
        %v1999 = vld [vmem:[%s1 + $0x38] sm:$0xff]
        %v2000 = vld [vmem:[%s1 + $0x40] sm:$0xff]
        %v2001 = vld [vmem:[%s1 + $0x48] sm:$0xff]
        %v2002 = vld [vmem:[%s1 + $0x50] sm:$0xff]
        %v2003 = vld [vmem:[%s1 + $0x58] sm:$0xff]
        %v2004 = vld [vmem:[%s1 + $0x60] sm:$0xff]
        %v2005 = vld [vmem:[%s1 + $0x68] sm:$0xff]
        %v2006 = vld [vmem:[%s1 + $0x70] sm:$0xff]
        %v2007 = vld [vmem:[%s1 + $0x78] sm:$0xff]
        %v2008 = vld [vmem:[%s1 + $0x80] sm:$0xff]
        %v2009 = vld [vmem:[%s1 + $0x88] sm:$0xff]
        %v2010 = vld [vmem:[%s1 + $0x90] sm:$0xff]
        %v2011 = vld [vmem:[%s1 + $0x98] sm:$0xff]
        %v2012 = vld [vmem:[%s1 + $0xa0] sm:$0xff]
        %v2013 = vld [vmem:[%s1 + $0xa8] sm:$0xff]
        %v2014 = vld [vmem:[%s1 + $0xb0] sm:$0xff]
        %v2015 = vld [vmem:[%s1 + $0xb8] sm:$0xff]
        %v2016 = vld [vmem:[%s1 + $0xc0] sm:$0xff]
        %v2017 = vld [vmem:[%s1 + $0xc8] sm:$0xff]
        %v2018 = vld [vmem:[%s1 + $0xd0] sm:$0xff]
        %v2019 = vld [vmem:[%s1 + $0xd8] sm:$0xff]
        %v2020 = vld [vmem:[%s1 + $0xe0] sm:$0xff]
        %v2021 = vld [vmem:[%s1 + $0xe8] sm:$0xff]
        %v2022 = vld [vmem:[%s1 + $0xf0] sm:$0xff]
        %v2023 = vld [vmem:[%s1 + $0xf8] sm:$0xff]
        %v2024 = vld [vmem:[%s1 + $0x100] sm:$0xff]
        %v2025 = vld [vmem:[%s1 + $0x108] sm:$0xff]
        %v2026 = vld [vmem:[%s1 + $0x110] sm:$0xff]
        %v2027 = vld [vmem:[%s1 + $0x118] sm:$0xff]
        %v2028 = vld [vmem:[%s1 + $0x120] sm:$0xff]
        %v2029 = vld [vmem:[%s1 + $0x128] sm:$0xff]
        %v2030 = vld [vmem:[%s1 + $0x130] sm:$0xff]
        %v2031 = vld [vmem:[%s1 + $0x138] sm:$0xff]
        %v2032 = vld [vmem:[%s1 + $0x140] sm:$0xff]
        %v2033 = vld [vmem:[%s1 + $0x148] sm:$0xff]
        %v2034 = vld [vmem:[%s1 + $0x150] sm:$0xff]
        %v2035 = vld [vmem:[%s1 + $0x158] sm:$0xff]
        %v2036 = vld [vmem:[%s1 + $0x160] sm:$0xff]
        %v2037 = vld [vmem:[%s1 + $0x168] sm:$0xff]
        %v2038 = vld [vmem:[%s1 + $0x170] sm:$0xff]
        %v2039 = vld [vmem:[%s1 + $0x178] sm:$0xff]
        %v2040 = vld [vmem:[%s613] sm:$0xff]
        %v2041 = vld [vmem:[%s613 + $0x8] sm:$0xff]
        %v2042 = vld [vmem:[%s613 + $0x10] sm:$0xff]
        %v2043 = vld [vmem:[%s613 + $0x18] sm:$0xff]
        %v2044 = vld [vmem:[%s613 + $0x20] sm:$0xff]
        %v2045 = vld [vmem:[%s613 + $0x28] sm:$0xff]
        %v2046 = vld [vmem:[%s613 + $0x30] sm:$0xff]
        %v2047 = vld [vmem:[%s613 + $0x38] sm:$0xff]
        %v2048 = vld [vmem:[%s613 + $0x40] sm:$0xff]
        %v2049 = vld [vmem:[%s613 + $0x48] sm:$0xff]
        %v2050 = vld [vmem:[%s613 + $0x50] sm:$0xff]
        %v2051 = vld [vmem:[%s613 + $0x58] sm:$0xff]
        %v2052 = vld [vmem:[%s613 + $0x60] sm:$0xff]
        %v2053 = vld [vmem:[%s613 + $0x68] sm:$0xff]
        %v2054 = vld [vmem:[%s613 + $0x70] sm:$0xff]
        %v2055 = vld [vmem:[%s613 + $0x78] sm:$0xff]
        %v2056 = vld [vmem:[%s613 + $0x80] sm:$0xff]
        %v2057 = vld [vmem:[%s613 + $0x88] sm:$0xff]
        %v2058 = vld [vmem:[%s613 + $0x90] sm:$0xff]
        %v2059 = vld [vmem:[%s613 + $0x98] sm:$0xff]
        %v2060 = vld [vmem:[%s613 + $0xa0] sm:$0xff]
        %v2061 = vld [vmem:[%s613 + $0xa8] sm:$0xff]
        %v2062 = vld [vmem:[%s613 + $0xb0] sm:$0xff]
        %v2063 = vld [vmem:[%s613 + $0xb8] sm:$0xff]
        %v2064 = vld [vmem:[%s613 + $0xc0] sm:$0xff]
        %v2065 = vld [vmem:[%s613 + $0xc8] sm:$0xff]
        %v2066 = vld [vmem:[%s613 + $0xd0] sm:$0xff]
        %v2067 = vld [vmem:[%s613 + $0xd8] sm:$0xff]
        %v2068 = vld [vmem:[%s613 + $0xe0] sm:$0xff]
        %v2069 = vld [vmem:[%s613 + $0xe8] sm:$0xff]
        %v2070 = vld [vmem:[%s613 + $0xf0] sm:$0xff]
        %v2071 = vld [vmem:[%s613 + $0xf8] sm:$0xff]
        %v2072 = vld [vmem:[%s613 + $0x100] sm:$0xff]
        %v2073 = vld [vmem:[%s613 + $0x108] sm:$0xff]
        %v2074 = vld [vmem:[%s613 + $0x110] sm:$0xff]
        %v2075 = vld [vmem:[%s613 + $0x118] sm:$0xff]
        %v2076 = vld [vmem:[%s613 + $0x120] sm:$0xff]
        %v2077 = vld [vmem:[%s613 + $0x128] sm:$0xff]
        %v2078 = vld [vmem:[%s613 + $0x130] sm:$0xff]
        %v2079 = vld [vmem:[%s613 + $0x138] sm:$0xff]
        %v2080 = vld [vmem:[%s613 + $0x140] sm:$0xff]
        %v2081 = vld [vmem:[%s613 + $0x148] sm:$0xff]
        %v2082 = vld [vmem:[%s613 + $0x150] sm:$0xff]
        %v2083 = vld [vmem:[%s613 + $0x158] sm:$0xff]
        %v2084 = vld [vmem:[%s613 + $0x160] sm:$0xff]
        %v2085 = vld [vmem:[%s613 + $0x168] sm:$0xff]
        %v2086 = vld [vmem:[%s613 + $0x170] sm:$0xff]
        %v2087 = vld [vmem:[%s613 + $0x178] sm:$0xff]
        %2088 = vmatpush.msra.mxu0 %v2055
        %2089 = vmatpush.msra.mxu0 %v2054
        %2090 = vmatpush.msra.mxu0 %v2053
        %2091 = vmatpush.msra.mxu0 %v2052
        %2092 = vmatpush.msra.mxu0 %v2051
        %2093 = vmatpush.msra.mxu0 %v2050
        %2094 = vmatpush.msra.mxu0 %v2049
        %2095 = vmatpush.msra.mxu0 %v2048
        %2096 = vmatpush.msra.mxu0 %v2047
        %2097 = vmatpush.msra.mxu0 %v2046
        %2098 = vmatpush.msra.mxu0 %v2045
        %2099 = vmatpush.msra.mxu0 %v2044
        %2100 = vmatpush.msra.mxu0 %v2043
        %2101 = vmatpush.msra.mxu0 %v2042
        %2102 = vmatpush.msra.mxu0 %v2041
        %2103 = vmatpush.msra.mxu0 %v2040
        %2104 = vmatmul.f32.gmra.mxu0 %v1875
        %v2105 = vpop.f32.mrf.mxu0
        %v2106 = vadd.f32 0.0, %v2105
        %2107 = vmatmul.f32.gmra.mxu0 %v1876
        %v2108 = vpop.f32.mrf.mxu0
        %v2109 = vadd.f32 0.0, %v2108
        %2110 = vmatmul.f32.gmra.mxu0 %v1878
        %v2111 = vpop.f32.mrf.mxu0
        %v2112 = vadd.f32 0.0, %v2111
        %2113 = vmatmul.f32.gmra.mxu0 %v1879
        %v2114 = vpop.f32.mrf.mxu0
        %v2115 = vadd.f32 0.0, %v2114
        %2116 = vmatmul.f32.gmra.mxu0 %v1881
        %v2117 = vpop.f32.mrf.mxu0
        %v2118 = vadd.f32 0.0, %v2117
        %2119 = vmatmul.f32.gmra.mxu0 %v1882
        %v2120 = vpop.f32.mrf.mxu0
        %v2121 = vadd.f32 0.0, %v2120
        %2122 = vmatmul.f32.gmra.mxu0 %v1884
        %v2123 = vpop.f32.mrf.mxu0
        %v2124 = vadd.f32 0.0, %v2123
        %2125 = vmatmul.f32.gmra.mxu0 %v1885
        %v2126 = vpop.f32.mrf.mxu0
        %v2127 = vadd.f32 0.0, %v2126
        %2128 = vdwg.mxu0
        %2129 = vmatpush.msra.mxu0 %v2071
        %2130 = vmatpush.msra.mxu0 %v2070
        %2131 = vmatpush.msra.mxu0 %v2069
        %2132 = vmatpush.msra.mxu0 %v2068
        %2133 = vmatpush.msra.mxu0 %v2067
        %2134 = vmatpush.msra.mxu0 %v2066
        %2135 = vmatpush.msra.mxu0 %v2065
        %2136 = vmatpush.msra.mxu0 %v2064
        %2137 = vmatpush.msra.mxu0 %v2063
        %2138 = vmatpush.msra.mxu0 %v2062
        %2139 = vmatpush.msra.mxu0 %v2061
        %2140 = vmatpush.msra.mxu0 %v2060
        %2141 = vmatpush.msra.mxu0 %v2059
        %2142 = vmatpush.msra.mxu0 %v2058
        %2143 = vmatpush.msra.mxu0 %v2057
        %2144 = vmatpush.msra.mxu0 %v2056
        %2145 = vmatmul.f32.gmra.mxu0 %v1915
        %v2146 = vpop.f32.mrf.mxu0
        %v2147 = vadd.f32 %v2106, %v2146
        %2148 = vmatmul.f32.gmra.mxu0 %v1917
        %v2149 = vpop.f32.mrf.mxu0
        %v2150 = vadd.f32 %v2109, %v2149
        %2151 = vmatmul.f32.gmra.mxu0 %v1920
        %v2152 = vpop.f32.mrf.mxu0
        %v2153 = vadd.f32 %v2112, %v2152
        %2154 = vmatmul.f32.gmra.mxu0 %v1922
        %v2155 = vpop.f32.mrf.mxu0
        %v2156 = vadd.f32 %v2115, %v2155
        %2157 = vmatmul.f32.gmra.mxu0 %v1925
        %v2158 = vpop.f32.mrf.mxu0
        %v2159 = vadd.f32 %v2118, %v2158
        %2160 = vmatmul.f32.gmra.mxu0 %v1927
        %v2161 = vpop.f32.mrf.mxu0
        %v2162 = vadd.f32 %v2121, %v2161
        %2163 = vmatmul.f32.gmra.mxu0 %v1930
        %v2164 = vpop.f32.mrf.mxu0
        %v2165 = vadd.f32 %v2124, %v2164
        %2166 = vmatmul.f32.gmra.mxu0 %v1932
        %v2167 = vpop.f32.mrf.mxu0
        %v2168 = vadd.f32 %v2127, %v2167
        %2169 = vdwg.mxu0
        %2170 = vmatpush.msra.mxu0 %v2087
        %2171 = vmatpush.msra.mxu0 %v2086
        %2172 = vmatpush.msra.mxu0 %v2085
        %2173 = vmatpush.msra.mxu0 %v2084
        %2174 = vmatpush.msra.mxu0 %v2083
        %2175 = vmatpush.msra.mxu0 %v2082
        %2176 = vmatpush.msra.mxu0 %v2081
        %2177 = vmatpush.msra.mxu0 %v2080
        %2178 = vmatpush.msra.mxu0 %v2079
        %2179 = vmatpush.msra.mxu0 %v2078
        %2180 = vmatpush.msra.mxu0 %v2077
        %2181 = vmatpush.msra.mxu0 %v2076
        %2182 = vmatpush.msra.mxu0 %v2075
        %2183 = vmatpush.msra.mxu0 %v2074
        %2184 = vmatpush.msra.mxu0 %v2073
        %2185 = vmatpush.msra.mxu0 %v2072
        %2186 = vmatmul.f32.gmra.mxu0 %v1957
        %v2187 = vpop.f32.mrf.mxu0
        %v2188 = vadd.f32 %v2147, %v2187
        %2189 = vmatmul.f32.gmra.mxu0 %v1959
        %v2190 = vpop.f32.mrf.mxu0
        %v2191 = vadd.f32 %v2150, %v2190
        %2192 = vmatmul.f32.gmra.mxu0 %v1962
        %v2193 = vpop.f32.mrf.mxu0
        %v2194 = vadd.f32 %v2153, %v2193
        %2195 = vmatmul.f32.gmra.mxu0 %v1964
        %v2196 = vpop.f32.mrf.mxu0
        %v2197 = vadd.f32 %v2156, %v2196
        %2198 = vmatmul.f32.gmra.mxu0 %v1967
        %v2199 = vpop.f32.mrf.mxu0
        %v2200 = vadd.f32 %v2159, %v2199
        %2201 = vmatmul.f32.gmra.mxu0 %v1969
        %v2202 = vpop.f32.mrf.mxu0
        %v2203 = vadd.f32 %v2162, %v2202
        %2204 = vmatmul.f32.gmra.mxu0 %v1972
        %v2205 = vpop.f32.mrf.mxu0
        %v2206 = vadd.f32 %v2165, %v2205
        %2207 = vmatmul.f32.gmra.mxu0 %v1974
        %v2208 = vpop.f32.mrf.mxu0
        %v2209 = vadd.f32 %v2168, %v2208
        %2210 = vdwg.mxu0
        %2211 = vmatpush.msra.mxu0 %v2007
        %2212 = vmatpush.msra.mxu0 %v2006
        %2213 = vmatpush.msra.mxu0 %v2005
        %2214 = vmatpush.msra.mxu0 %v2004
        %2215 = vmatpush.msra.mxu0 %v2003
        %2216 = vmatpush.msra.mxu0 %v2002
        %2217 = vmatpush.msra.mxu0 %v2001
        %2218 = vmatpush.msra.mxu0 %v2000
        %2219 = vmatpush.msra.mxu0 %v1999
        %2220 = vmatpush.msra.mxu0 %v1998
        %2221 = vmatpush.msra.mxu0 %v1997
        %2222 = vmatpush.msra.mxu0 %v1996
        %2223 = vmatpush.msra.mxu0 %v1995
        %2224 = vmatpush.msra.mxu0 %v1994
        %2225 = vmatpush.msra.mxu0 %v1993
        %2226 = vmatpush.msra.mxu0 %v1992
        %2227 = vmatmul.f32.gmra.mxu0 %v1872
        %v2228 = vpop.f32.mrf.mxu0
        %v2229 = vadd.f32 %v2188, %v2228
        %2230 = vmatmul.f32.gmra.mxu0 %v1873
        %v2231 = vpop.f32.mrf.mxu0
        %v2232 = vadd.f32 %v2191, %v2231
        %2233 = vmatmul.f32.gmra.mxu0 %v1875
        %v2234 = vpop.f32.mrf.mxu0
        %v2235 = vadd.f32 %v2194, %v2234
        %2236 = vmatmul.f32.gmra.mxu0 %v1876
        %v2237 = vpop.f32.mrf.mxu0
        %v2238 = vadd.f32 %v2197, %v2237
        %2239 = vmatmul.f32.gmra.mxu0 %v1878
        %v2240 = vpop.f32.mrf.mxu0
        %v2241 = vadd.f32 %v2200, %v2240
        %2242 = vmatmul.f32.gmra.mxu0 %v1879
        %v2243 = vpop.f32.mrf.mxu0
        %v2244 = vadd.f32 %v2203, %v2243
        %2245 = vmatmul.f32.gmra.mxu0 %v1881
        %v2246 = vpop.f32.mrf.mxu0
        %v2247 = vadd.f32 %v2206, %v2246
        %2248 = vmatmul.f32.gmra.mxu0 %v1882
        %v2249 = vpop.f32.mrf.mxu0
        %v2250 = vadd.f32 %v2209, %v2249
        %2251 = vdwg.mxu0
        %2252 = vmatpush.msra.mxu0 %v2023
        %2253 = vmatpush.msra.mxu0 %v2022
        %2254 = vmatpush.msra.mxu0 %v2021
        %2255 = vmatpush.msra.mxu0 %v2020
        %2256 = vmatpush.msra.mxu0 %v2019
        %2257 = vmatpush.msra.mxu0 %v2018
        %2258 = vmatpush.msra.mxu0 %v2017
        %2259 = vmatpush.msra.mxu0 %v2016
        %2260 = vmatpush.msra.mxu0 %v2015
        %2261 = vmatpush.msra.mxu0 %v2014
        %2262 = vmatpush.msra.mxu0 %v2013
        %2263 = vmatpush.msra.mxu0 %v2012
        %2264 = vmatpush.msra.mxu0 %v2011
        %2265 = vmatpush.msra.mxu0 %v2010
        %2266 = vmatpush.msra.mxu0 %v2009
        %2267 = vmatpush.msra.mxu0 %v2008
        %2268 = vmatmul.f32.gmra.mxu0 %v1910
        %v2269 = vpop.f32.mrf.mxu0
        %v2270 = vadd.f32 %v2229, %v2269
        %2271 = vmatmul.f32.gmra.mxu0 %v1912
        %v2272 = vpop.f32.mrf.mxu0
        %v2273 = vadd.f32 %v2232, %v2272
        %2274 = vmatmul.f32.gmra.mxu0 %v1915
        %v2275 = vpop.f32.mrf.mxu0
        %v2276 = vadd.f32 %v2235, %v2275
        %2277 = vmatmul.f32.gmra.mxu0 %v1917
        %v2278 = vpop.f32.mrf.mxu0
        %v2279 = vadd.f32 %v2238, %v2278
        %2280 = vmatmul.f32.gmra.mxu0 %v1920
        %v2281 = vpop.f32.mrf.mxu0
        %v2282 = vadd.f32 %v2241, %v2281
        %2283 = vmatmul.f32.gmra.mxu0 %v1922
        %v2284 = vpop.f32.mrf.mxu0
        %v2285 = vadd.f32 %v2244, %v2284
        %2286 = vmatmul.f32.gmra.mxu0 %v1925
        %v2287 = vpop.f32.mrf.mxu0
        %v2288 = vadd.f32 %v2247, %v2287
        %2289 = vmatmul.f32.gmra.mxu0 %v1927
        %v2290 = vpop.f32.mrf.mxu0
        %v2291 = vadd.f32 %v2250, %v2290
        %2292 = vdwg.mxu0
        %2293 = vmatpush.msra.mxu0 %v2039
        %2294 = vmatpush.msra.mxu0 %v2038
        %2295 = vmatpush.msra.mxu0 %v2037
        %2296 = vmatpush.msra.mxu0 %v2036
        %2297 = vmatpush.msra.mxu0 %v2035
        %2298 = vmatpush.msra.mxu0 %v2034
        %2299 = vmatpush.msra.mxu0 %v2033
        %2300 = vmatpush.msra.mxu0 %v2032
        %2301 = vmatpush.msra.mxu0 %v2031
        %2302 = vmatpush.msra.mxu0 %v2030
        %2303 = vmatpush.msra.mxu0 %v2029
        %2304 = vmatpush.msra.mxu0 %v2028
        %2305 = vmatpush.msra.mxu0 %v2027
        %2306 = vmatpush.msra.mxu0 %v2026
        %2307 = vmatpush.msra.mxu0 %v2025
        %2308 = vmatpush.msra.mxu0 %v2024
        %2309 = vmatmul.f32.gmra.mxu0 %v1952
        %v2310 = vpop.f32.mrf.mxu0
        %v2311 = vadd.f32 %v2270, %v2310
        %2312 = vmatmul.f32.gmra.mxu0 %v1954
        %v2313 = vpop.f32.mrf.mxu0
        %v2314 = vadd.f32 %v2273, %v2313
        %2315 = vmatmul.f32.gmra.mxu0 %v1957
        %v2316 = vpop.f32.mrf.mxu0
        %v2317 = vadd.f32 %v2276, %v2316
        %2318 = vmatmul.f32.gmra.mxu0 %v1959
        %v2319 = vpop.f32.mrf.mxu0
        %v2320 = vadd.f32 %v2279, %v2319
        %2321 = vmatmul.f32.gmra.mxu0 %v1962
        %v2322 = vpop.f32.mrf.mxu0
        %v2323 = vadd.f32 %v2282, %v2322
        %2324 = vmatmul.f32.gmra.mxu0 %v1964
        %v2325 = vpop.f32.mrf.mxu0
        %v2326 = vadd.f32 %v2285, %v2325
        %2327 = vmatmul.f32.gmra.mxu0 %v1967
        %v2328 = vpop.f32.mrf.mxu0
        %v2329 = vadd.f32 %v2288, %v2328
        %2330 = vmatmul.f32.gmra.mxu0 %v1969
        %v2331 = vpop.f32.mrf.mxu0
        %v2332 = vadd.f32 %v2291, %v2331
        %2333 = vdwg.mxu0
        %v2334 = vld [vmem:[%s908] sm:$0xff]
        %v2335 = vld [vmem:[%s908 + $0x8] sm:$0xff]
        %v2336 = vld [vmem:[%s908 + $0x10] sm:$0xff]
        %v2337 = vld [vmem:[%s908 + $0x18] sm:$0xff]
        %v2338 = vld [vmem:[%s908 + $0x20] sm:$0xff]
        %v2339 = vld [vmem:[%s908 + $0x28] sm:$0xff]
        %v2340 = vld [vmem:[%s908 + $0x30] sm:$0xff]
        %v2341 = vld [vmem:[%s908 + $0x38] sm:$0xff]
        %v2342 = vld [vmem:[%s908 + $0x40] sm:$0xff]
        %v2343 = vld [vmem:[%s908 + $0x48] sm:$0xff]
        %v2344 = vld [vmem:[%s908 + $0x50] sm:$0xff]
        %v2345 = vld [vmem:[%s908 + $0x58] sm:$0xff]
        %v2346 = vld [vmem:[%s908 + $0x60] sm:$0xff]
        %v2347 = vld [vmem:[%s908 + $0x68] sm:$0xff]
        %v2348 = vld [vmem:[%s908 + $0x70] sm:$0xff]
        %v2349 = vld [vmem:[%s908 + $0x78] sm:$0xff]
        %v2350 = vld [vmem:[%s908 + $0x80] sm:$0xff]
        %v2351 = vld [vmem:[%s908 + $0x88] sm:$0xff]
        %v2352 = vld [vmem:[%s908 + $0x90] sm:$0xff]
        %v2353 = vld [vmem:[%s908 + $0x98] sm:$0xff]
        %v2354 = vld [vmem:[%s908 + $0xa0] sm:$0xff]
        %v2355 = vld [vmem:[%s908 + $0xa8] sm:$0xff]
        %v2356 = vld [vmem:[%s908 + $0xb0] sm:$0xff]
        %v2357 = vld [vmem:[%s908 + $0xb8] sm:$0xff]
        %v2358 = vld [vmem:[%s908 + $0xc0] sm:$0xff]
        %v2359 = vld [vmem:[%s908 + $0xc8] sm:$0xff]
        %v2360 = vld [vmem:[%s908 + $0xd0] sm:$0xff]
        %v2361 = vld [vmem:[%s908 + $0xd8] sm:$0xff]
        %v2362 = vld [vmem:[%s908 + $0xe0] sm:$0xff]
        %v2363 = vld [vmem:[%s908 + $0xe8] sm:$0xff]
        %v2364 = vld [vmem:[%s908 + $0xf0] sm:$0xff]
        %v2365 = vld [vmem:[%s908 + $0xf8] sm:$0xff]
        %v2366 = vld [vmem:[%s908 + $0x100] sm:$0xff]
        %v2367 = vld [vmem:[%s908 + $0x108] sm:$0xff]
        %v2368 = vld [vmem:[%s908 + $0x110] sm:$0xff]
        %v2369 = vld [vmem:[%s908 + $0x118] sm:$0xff]
        %v2370 = vld [vmem:[%s908 + $0x120] sm:$0xff]
        %v2371 = vld [vmem:[%s908 + $0x128] sm:$0xff]
        %v2372 = vld [vmem:[%s908 + $0x130] sm:$0xff]
        %v2373 = vld [vmem:[%s908 + $0x138] sm:$0xff]
        %v2374 = vld [vmem:[%s908 + $0x140] sm:$0xff]
        %v2375 = vld [vmem:[%s908 + $0x148] sm:$0xff]
        %v2376 = vld [vmem:[%s908 + $0x150] sm:$0xff]
        %v2377 = vld [vmem:[%s908 + $0x158] sm:$0xff]
        %v2378 = vld [vmem:[%s908 + $0x160] sm:$0xff]
        %v2379 = vld [vmem:[%s908 + $0x168] sm:$0xff]
        %v2380 = vld [vmem:[%s908 + $0x170] sm:$0xff]
        %v2381 = vld [vmem:[%s908 + $0x178] sm:$0xff]
        %2382 = vmatpush.msra.mxu0 %v2349
        %2383 = vmatpush.msra.mxu0 %v2348
        %2384 = vmatpush.msra.mxu0 %v2347
        %2385 = vmatpush.msra.mxu0 %v2346
        %2386 = vmatpush.msra.mxu0 %v2345
        %2387 = vmatpush.msra.mxu0 %v2344
        %2388 = vmatpush.msra.mxu0 %v2343
        %2389 = vmatpush.msra.mxu0 %v2342
        %2390 = vmatpush.msra.mxu0 %v2341
        %2391 = vmatpush.msra.mxu0 %v2340
        %2392 = vmatpush.msra.mxu0 %v2339
        %2393 = vmatpush.msra.mxu0 %v2338
        %2394 = vmatpush.msra.mxu0 %v2337
        %2395 = vmatpush.msra.mxu0 %v2336
        %2396 = vmatpush.msra.mxu0 %v2335
        %2397 = vmatpush.msra.mxu0 %v2334
        %2398 = vmatmul.f32.gmra.mxu0 %v1878
        %v2399 = vpop.f32.mrf.mxu0
        %v2400 = vadd.f32 0.0, %v2399
        %2401 = vmatmul.f32.gmra.mxu0 %v1879
        %v2402 = vpop.f32.mrf.mxu0
        %v2403 = vadd.f32 0.0, %v2402
        %2404 = vmatmul.f32.gmra.mxu0 %v1881
        %v2405 = vpop.f32.mrf.mxu0
        %v2406 = vadd.f32 0.0, %v2405
        %2407 = vmatmul.f32.gmra.mxu0 %v1882
        %v2408 = vpop.f32.mrf.mxu0
        %v2409 = vadd.f32 0.0, %v2408
        %2410 = vmatmul.f32.gmra.mxu0 %v1884
        %v2411 = vpop.f32.mrf.mxu0
        %v2412 = vadd.f32 0.0, %v2411
        %2413 = vmatmul.f32.gmra.mxu0 %v1885
        %v2414 = vpop.f32.mrf.mxu0
        %v2415 = vadd.f32 0.0, %v2414
        %2416 = vmatmul.f32.gmra.mxu0 %v1887
        %v2417 = vpop.f32.mrf.mxu0
        %v2418 = vadd.f32 0.0, %v2417
        %2419 = vmatmul.f32.gmra.mxu0 %v1888
        %v2420 = vpop.f32.mrf.mxu0
        %v2421 = vadd.f32 0.0, %v2420
        %2422 = vdwg.mxu0
        %2423 = vmatpush.msra.mxu0 %v2365
        %2424 = vmatpush.msra.mxu0 %v2364
        %2425 = vmatpush.msra.mxu0 %v2363
        %2426 = vmatpush.msra.mxu0 %v2362
        %2427 = vmatpush.msra.mxu0 %v2361
        %2428 = vmatpush.msra.mxu0 %v2360
        %2429 = vmatpush.msra.mxu0 %v2359
        %2430 = vmatpush.msra.mxu0 %v2358
        %2431 = vmatpush.msra.mxu0 %v2357
        %2432 = vmatpush.msra.mxu0 %v2356
        %2433 = vmatpush.msra.mxu0 %v2355
        %2434 = vmatpush.msra.mxu0 %v2354
        %2435 = vmatpush.msra.mxu0 %v2353
        %2436 = vmatpush.msra.mxu0 %v2352
        %2437 = vmatpush.msra.mxu0 %v2351
        %2438 = vmatpush.msra.mxu0 %v2350
        %2439 = vmatmul.f32.gmra.mxu0 %v1920
        %v2440 = vpop.f32.mrf.mxu0
        %v2441 = vadd.f32 %v2400, %v2440
        %2442 = vmatmul.f32.gmra.mxu0 %v1922
        %v2443 = vpop.f32.mrf.mxu0
        %v2444 = vadd.f32 %v2403, %v2443
        %2445 = vmatmul.f32.gmra.mxu0 %v1925
        %v2446 = vpop.f32.mrf.mxu0
        %v2447 = vadd.f32 %v2406, %v2446
        %2448 = vmatmul.f32.gmra.mxu0 %v1927
        %v2449 = vpop.f32.mrf.mxu0
        %v2450 = vadd.f32 %v2409, %v2449
        %2451 = vmatmul.f32.gmra.mxu0 %v1930
        %v2452 = vpop.f32.mrf.mxu0
        %v2453 = vadd.f32 %v2412, %v2452
        %2454 = vmatmul.f32.gmra.mxu0 %v1932
        %v2455 = vpop.f32.mrf.mxu0
        %v2456 = vadd.f32 %v2415, %v2455
        %2457 = vmatmul.f32.gmra.mxu0 %v1935
        %v2458 = vpop.f32.mrf.mxu0
        %v2459 = vadd.f32 %v2418, %v2458
        %2460 = vmatmul.f32.gmra.mxu0 %v1937
        %v2461 = vpop.f32.mrf.mxu0
        %v2462 = vadd.f32 %v2421, %v2461
        %2463 = vdwg.mxu0
        %2464 = vmatpush.msra.mxu0 %v2381
        %2465 = vmatpush.msra.mxu0 %v2380
        %2466 = vmatpush.msra.mxu0 %v2379
        %2467 = vmatpush.msra.mxu0 %v2378
        %2468 = vmatpush.msra.mxu0 %v2377
        %2469 = vmatpush.msra.mxu0 %v2376
        %2470 = vmatpush.msra.mxu0 %v2375
        %2471 = vmatpush.msra.mxu0 %v2374
        %2472 = vmatpush.msra.mxu0 %v2373
        %2473 = vmatpush.msra.mxu0 %v2372
        %2474 = vmatpush.msra.mxu0 %v2371
        %2475 = vmatpush.msra.mxu0 %v2370
        %2476 = vmatpush.msra.mxu0 %v2369
        %2477 = vmatpush.msra.mxu0 %v2368
        %2478 = vmatpush.msra.mxu0 %v2367
        %2479 = vmatpush.msra.mxu0 %v2366
        %2480 = vmatmul.f32.gmra.mxu0 %v1962
        %v2481 = vpop.f32.mrf.mxu0
        %v2482 = vadd.f32 %v2441, %v2481
        %2483 = vmatmul.f32.gmra.mxu0 %v1964
        %v2484 = vpop.f32.mrf.mxu0
        %v2485 = vadd.f32 %v2444, %v2484
        %2486 = vmatmul.f32.gmra.mxu0 %v1967
        %v2487 = vpop.f32.mrf.mxu0
        %v2488 = vadd.f32 %v2447, %v2487
        %2489 = vmatmul.f32.gmra.mxu0 %v1969
        %v2490 = vpop.f32.mrf.mxu0
        %v2491 = vadd.f32 %v2450, %v2490
        %2492 = vmatmul.f32.gmra.mxu0 %v1972
        %v2493 = vpop.f32.mrf.mxu0
        %v2494 = vadd.f32 %v2453, %v2493
        %2495 = vmatmul.f32.gmra.mxu0 %v1974
        %v2496 = vpop.f32.mrf.mxu0
        %v2497 = vadd.f32 %v2456, %v2496
        %2498 = vmatmul.f32.gmra.mxu0 %v1977
        %v2499 = vpop.f32.mrf.mxu0
        %v2500 = vadd.f32 %v2459, %v2499
        %2501 = vmatmul.f32.gmra.mxu0 %v1979
        %v2502 = vpop.f32.mrf.mxu0
        %v2503 = vadd.f32 %v2462, %v2502
        %2504 = vdwg.mxu0
        %v2505 = vadd.f32 %v2311, %v2482
        %v2506 = vadd.f32 %v2314, %v2485
        %v2507 = vadd.f32 %v2317, %v2488
        %v2508 = vadd.f32 %v2320, %v2491
        %v2509 = vadd.f32 %v2323, %v2494
        %v2510 = vadd.f32 %v2326, %v2497
        %v2511 = vadd.f32 %v2329, %v2500
        %v2512 = vadd.f32 %v2332, %v2503
        %v2513 = vadd.f32 %v2505, %v1089
        %v2514 = vadd.f32 %v2506, %v1089
        %v2515 = vadd.f32 %v2507, %v1089
        %v2516 = vadd.f32 %v2508, %v1089
        %v2517 = vadd.f32 %v2509, %v1089
        %v2518 = vadd.f32 %v2510, %v1089
        %v2519 = vadd.f32 %v2511, %v1089
        %v2520 = vadd.f32 %v2512, %v1089
        %v2521 = vmax.f32 %v2513, 0.0
        %v2522 = vmax.f32 %v2514, 0.0
        %v2523 = vmax.f32 %v2515, 0.0
        %v2524 = vmax.f32 %v2516, 0.0
        %v2525 = vmax.f32 %v2517, 0.0
        %v2526 = vmax.f32 %v2518, 0.0
        %v2527 = vmax.f32 %v2519, 0.0
        %v2528 = vmax.f32 %v2520, 0.0
        %v2537 = vrot.slane %v2521, 7
        %v2538 = vrot.slane %v2522, 7
        %v2539 = vsel %vm1115, %v2537, %v2538
        %v2540 = vrot.slane %v2523, 7
        %v2541 = vrot.slane %v2524, 7
        %v2542 = vsel %vm1115, %v2540, %v2541
        %v2543 = vrot.slane %v2525, 7
        %v2544 = vrot.slane %v2526, 7
        %v2545 = vsel %vm1115, %v2543, %v2544
        %v2546 = vrot.slane %v2527, 7
        %v2547 = vrot.slane %v2528, 7
        %v2548 = vsel %vm1115, %v2546, %v2547
        %v2561 = vsel %vm1115, 0.0, %v2537
        %v2562 = vsel %vm1115, 0.0, %v2540
        %v2563 = vsel %vm1115, 0.0, %v2543
        %v2564 = vsel %vm1115, 0.0, %v2546
        %v2565 = vsel %vm1115, %v2538, 0.0
        %v2566 = vsel %vm1115, %v2541, 0.0
        %v2567 = vsel %vm1115, %v2544, 0.0
        %v2568 = vsel %vm1115, %v2547, 0.0
        %s2569 = scalar_lea.vmem [#allocation3], 144
        %2570 = vst [vmem:[%s2569] sm:$0xff] %v2561
        %2571 = vst [vmem:[%s2569 + $0x8] sm:$0xff] %v2539
        %2572 = vst [vmem:[%s2569 + $0x10] sm:$0x3] %v2565
        %2573 = vst [vmem:[%s2569 + $0x18] sm:$0xff] %v2562
        %2574 = vst [vmem:[%s2569 + $0x20] sm:$0xff] %v2542
        %2575 = vst [vmem:[%s2569 + $0x28] sm:$0x3] %v2566
        %2576 = vst [vmem:[%s2569 + $0x30] sm:$0xff] %v2563
        %2577 = vst [vmem:[%s2569 + $0x38] sm:$0xff] %v2545
        %2578 = vst [vmem:[%s2569 + $0x40] sm:$0x3] %v2567
        %2579 = vst [vmem:[%s2569 + $0x48] sm:$0xff] %v2564
        %2580 = vst [vmem:[%s2569 + $0x50] sm:$0xff] %v2548
        %2581 = vst [vmem:[%s2569 + $0x58] sm:$0x3] %v2568
        // Predicated region
        $region93: #{tpu_custom_call.1} parent=35 // pred_check
          %p2582 = pneg %p215
        $region94: #{tpu_custom_call.1} parent=35 // pred_check_branch
          %2584 = sbr.rel (%p2582) target = $region96
        $region95: #{tpu_custom_call.1} parent=35 // pred_region
          %2585 = vst [vmem:[#allocation3] sm:$0xff] 0.0
          %2586 = vst [vmem:[#allocation3 + $0x8] sm:$0xff] 0.0
          %2587 = vst [vmem:[#allocation3 + $0x10] sm:$0x3] 0.0
        $region96: #{tpu_custom_call.1} parent=35 // pred_fallthru
          _
        %p2588 = scmp.eq.s32.totalorder %s25, 1
        // Predicated region
        $region97: #{tpu_custom_call.1} parent=35 // pred_check
          %p2589 = pneg %p2588
        $region98: #{tpu_custom_call.1} parent=35 // pred_check_branch
          %2591 = sbr.rel (%p2589) target = $region100
        $region99: #{tpu_custom_call.1} parent=35 // pred_region
          %s2592 = scalar_lea.vmem [#allocation3], 216
          %2593 = vst [vmem:[%s2592] sm:$0xff] 0.0
          %2594 = vst [vmem:[%s2592 + $0x8] sm:$0xff] 0.0
          %2595 = vst [vmem:[%s2592 + $0x10] sm:$0x3] 0.0
        $region100: #{tpu_custom_call.1} parent=35 // pred_fallthru
          _
        %v2596 = vld [vmem:[#allocation3] sm:$0xff]
        %v2597 = vld [vmem:[#allocation3 + $0x8] sm:$0xff]
        %v2598 = vld [vmem:[#allocation3 + $0x10] sm:$0x3]
        %v2599 = vld [vmem:[#allocation3 + $0x18] sm:$0xff]
        %v2600 = vld [vmem:[#allocation3 + $0x20] sm:$0xff]
        %v2601 = vld [vmem:[#allocation3 + $0x28] sm:$0x3]
        %v2602 = vld [vmem:[#allocation3 + $0x30] sm:$0xff]
        %v2603 = vld [vmem:[#allocation3 + $0x38] sm:$0xff]
        %v2604 = vld [vmem:[#allocation3 + $0x40] sm:$0x3]
        %v2605 = vld [vmem:[#allocation3 + $0x48] sm:$0xff]
        %v2606 = vld [vmem:[#allocation3 + $0x50] sm:$0xff]
        %v2607 = vld [vmem:[#allocation3 + $0x58] sm:$0x3]
        %v2608 = vld [vmem:[#allocation3 + $0x60] sm:$0xff]
        %v2609 = vld [vmem:[#allocation3 + $0x68] sm:$0xff]
        %v2610 = vld [vmem:[#allocation3 + $0x70] sm:$0x3]
        %v2611 = vld [vmem:[#allocation3 + $0x78] sm:$0xff]
        %v2612 = vld [vmem:[#allocation3 + $0x80] sm:$0xff]
        %v2613 = vld [vmem:[#allocation3 + $0x88] sm:$0x3]
        %v2632 = vrot.slane %v2596, 1
        %v2633 = vrot.slane %v2597, 1
        %v2634 = vsel %vm479, %v2632, %v2633
        %v2635 = vrot.slane %v2598, 1
        %v2636 = vsel %vm479, %v2633, %v2635
        %v2637 = vrot.slane %v2599, 1
        %v2638 = vrot.slane %v2600, 1
        %v2639 = vsel %vm479, %v2637, %v2638
        %v2640 = vrot.slane %v2601, 1
        %v2641 = vsel %vm479, %v2638, %v2640
        %v2642 = vrot.slane %v2602, 1
        %v2643 = vrot.slane %v2603, 1
        %v2644 = vsel %vm479, %v2642, %v2643
        %v2645 = vrot.slane %v2604, 1
        %v2646 = vsel %vm479, %v2643, %v2645
        %v2647 = vrot.slane %v2605, 1
        %v2648 = vrot.slane %v2606, 1
        %v2649 = vsel %vm479, %v2647, %v2648
        %v2650 = vrot.slane %v2607, 1
        %v2651 = vsel %vm479, %v2648, %v2650
        %v2652 = vrot.slane %v2608, 1
        %v2653 = vrot.slane %v2609, 1
        %v2654 = vsel %vm479, %v2652, %v2653
        %v2655 = vrot.slane %v2610, 1
        %v2656 = vsel %vm479, %v2653, %v2655
        %v2657 = vrot.slane %v2611, 1
        %v2658 = vrot.slane %v2612, 1
        %v2659 = vsel %vm479, %v2657, %v2658
        %v2660 = vrot.slane %v2613, 1
        %v2661 = vsel %vm479, %v2658, %v2660
        %v2674 = vrot.slane %v2596, 2
        %v2675 = vrot.slane %v2597, 2
        %v2676 = vsel %vm522, %v2674, %v2675
        %v2677 = vrot.slane %v2598, 2
        %v2678 = vsel %vm522, %v2675, %v2677
        %v2679 = vrot.slane %v2599, 2
        %v2680 = vrot.slane %v2600, 2
        %v2681 = vsel %vm522, %v2679, %v2680
        %v2682 = vrot.slane %v2601, 2
        %v2683 = vsel %vm522, %v2680, %v2682
        %v2684 = vrot.slane %v2602, 2
        %v2685 = vrot.slane %v2603, 2
        %v2686 = vsel %vm522, %v2684, %v2685
        %v2687 = vrot.slane %v2604, 2
        %v2688 = vsel %vm522, %v2685, %v2687
        %v2689 = vrot.slane %v2605, 2
        %v2690 = vrot.slane %v2606, 2
        %v2691 = vsel %vm522, %v2689, %v2690
        %v2692 = vrot.slane %v2607, 2
        %v2693 = vsel %vm522, %v2690, %v2692
        %v2694 = vrot.slane %v2608, 2
        %v2695 = vrot.slane %v2609, 2
        %v2696 = vsel %vm522, %v2694, %v2695
        %v2697 = vrot.slane %v2610, 2
        %v2698 = vsel %vm522, %v2695, %v2697
        %v2699 = vrot.slane %v2611, 2
        %v2700 = vrot.slane %v2612, 2
        %v2701 = vsel %vm522, %v2699, %v2700
        %v2702 = vrot.slane %v2613, 2
        %v2703 = vsel %vm522, %v2700, %v2702
        %v2716 = vld [vmem:[#allocation5] sm:$0xff]
        %v2717 = vld [vmem:[#allocation5 + $0x8] sm:$0xff]
        %v2718 = vld [vmem:[#allocation5 + $0x10] sm:$0xff]
        %v2719 = vld [vmem:[#allocation5 + $0x18] sm:$0xff]
        %v2720 = vld [vmem:[#allocation5 + $0x20] sm:$0xff]
        %v2721 = vld [vmem:[#allocation5 + $0x28] sm:$0xff]
        %v2722 = vld [vmem:[#allocation5 + $0x30] sm:$0xff]
        %v2723 = vld [vmem:[#allocation5 + $0x38] sm:$0xff]
        %v2724 = vld [vmem:[#allocation5 + $0x40] sm:$0xff]
        %v2725 = vld [vmem:[#allocation5 + $0x48] sm:$0xff]
        %v2726 = vld [vmem:[#allocation5 + $0x50] sm:$0xff]
        %v2727 = vld [vmem:[#allocation5 + $0x58] sm:$0xff]
        %v2728 = vld [vmem:[#allocation5 + $0x60] sm:$0xff]
        %v2729 = vld [vmem:[#allocation5 + $0x68] sm:$0xff]
        %v2730 = vld [vmem:[#allocation5 + $0x70] sm:$0xff]
        %v2731 = vld [vmem:[#allocation5 + $0x78] sm:$0xff]
        %v2732 = vld [vmem:[#allocation5 + $0x80] sm:$0xff]
        %v2733 = vld [vmem:[#allocation5 + $0x88] sm:$0xff]
        %v2734 = vld [vmem:[#allocation5 + $0x90] sm:$0xff]
        %v2735 = vld [vmem:[#allocation5 + $0x98] sm:$0xff]
        %v2736 = vld [vmem:[#allocation5 + $0xa0] sm:$0xff]
        %v2737 = vld [vmem:[#allocation5 + $0xa8] sm:$0xff]
        %v2738 = vld [vmem:[#allocation5 + $0xb0] sm:$0xff]
        %v2739 = vld [vmem:[#allocation5 + $0xb8] sm:$0xff]
        %v2740 = vld [vmem:[#allocation5 + $0xc0] sm:$0xff]
        %v2741 = vld [vmem:[#allocation5 + $0xc8] sm:$0xff]
        %v2742 = vld [vmem:[#allocation5 + $0xd0] sm:$0xff]
        %v2743 = vld [vmem:[#allocation5 + $0xd8] sm:$0xff]
        %v2744 = vld [vmem:[#allocation5 + $0xe0] sm:$0xff]
        %v2745 = vld [vmem:[#allocation5 + $0xe8] sm:$0xff]
        %v2746 = vld [vmem:[#allocation5 + $0xf0] sm:$0xff]
        %v2747 = vld [vmem:[#allocation5 + $0xf8] sm:$0xff]
        %v2748 = vld [vmem:[#allocation5 + $0x100] sm:$0xff]
        %v2749 = vld [vmem:[#allocation5 + $0x108] sm:$0xff]
        %v2750 = vld [vmem:[#allocation5 + $0x110] sm:$0xff]
        %v2751 = vld [vmem:[#allocation5 + $0x118] sm:$0xff]
        %v2752 = vld [vmem:[#allocation5 + $0x120] sm:$0xff]
        %v2753 = vld [vmem:[#allocation5 + $0x128] sm:$0xff]
        %v2754 = vld [vmem:[#allocation5 + $0x130] sm:$0xff]
        %v2755 = vld [vmem:[#allocation5 + $0x138] sm:$0xff]
        %v2756 = vld [vmem:[#allocation5 + $0x140] sm:$0xff]
        %v2757 = vld [vmem:[#allocation5 + $0x148] sm:$0xff]
        %v2758 = vld [vmem:[#allocation5 + $0x150] sm:$0xff]
        %v2759 = vld [vmem:[#allocation5 + $0x158] sm:$0xff]
        %v2760 = vld [vmem:[#allocation5 + $0x160] sm:$0xff]
        %v2761 = vld [vmem:[#allocation5 + $0x168] sm:$0xff]
        %v2762 = vld [vmem:[#allocation5 + $0x170] sm:$0xff]
        %v2763 = vld [vmem:[#allocation5 + $0x178] sm:$0xff]
        %s2764 = scalar_lea.vmem [#allocation5], 384
        %v2765 = vld [vmem:[%s2764] sm:$0xff]
        %v2766 = vld [vmem:[%s2764 + $0x8] sm:$0xff]
        %v2767 = vld [vmem:[%s2764 + $0x10] sm:$0xff]
        %v2768 = vld [vmem:[%s2764 + $0x18] sm:$0xff]
        %v2769 = vld [vmem:[%s2764 + $0x20] sm:$0xff]
        %v2770 = vld [vmem:[%s2764 + $0x28] sm:$0xff]
        %v2771 = vld [vmem:[%s2764 + $0x30] sm:$0xff]
        %v2772 = vld [vmem:[%s2764 + $0x38] sm:$0xff]
        %v2773 = vld [vmem:[%s2764 + $0x40] sm:$0xff]
        %v2774 = vld [vmem:[%s2764 + $0x48] sm:$0xff]
        %v2775 = vld [vmem:[%s2764 + $0x50] sm:$0xff]
        %v2776 = vld [vmem:[%s2764 + $0x58] sm:$0xff]
        %v2777 = vld [vmem:[%s2764 + $0x60] sm:$0xff]
        %v2778 = vld [vmem:[%s2764 + $0x68] sm:$0xff]
        %v2779 = vld [vmem:[%s2764 + $0x70] sm:$0xff]
        %v2780 = vld [vmem:[%s2764 + $0x78] sm:$0xff]
        %v2781 = vld [vmem:[%s2764 + $0x80] sm:$0xff]
        %v2782 = vld [vmem:[%s2764 + $0x88] sm:$0xff]
        %v2783 = vld [vmem:[%s2764 + $0x90] sm:$0xff]
        %v2784 = vld [vmem:[%s2764 + $0x98] sm:$0xff]
        %v2785 = vld [vmem:[%s2764 + $0xa0] sm:$0xff]
        %v2786 = vld [vmem:[%s2764 + $0xa8] sm:$0xff]
        %v2787 = vld [vmem:[%s2764 + $0xb0] sm:$0xff]
        %v2788 = vld [vmem:[%s2764 + $0xb8] sm:$0xff]
        %v2789 = vld [vmem:[%s2764 + $0xc0] sm:$0xff]
        %v2790 = vld [vmem:[%s2764 + $0xc8] sm:$0xff]
        %v2791 = vld [vmem:[%s2764 + $0xd0] sm:$0xff]
        %v2792 = vld [vmem:[%s2764 + $0xd8] sm:$0xff]
        %v2793 = vld [vmem:[%s2764 + $0xe0] sm:$0xff]
        %v2794 = vld [vmem:[%s2764 + $0xe8] sm:$0xff]
        %v2795 = vld [vmem:[%s2764 + $0xf0] sm:$0xff]
        %v2796 = vld [vmem:[%s2764 + $0xf8] sm:$0xff]
        %v2797 = vld [vmem:[%s2764 + $0x100] sm:$0xff]
        %v2798 = vld [vmem:[%s2764 + $0x108] sm:$0xff]
        %v2799 = vld [vmem:[%s2764 + $0x110] sm:$0xff]
        %v2800 = vld [vmem:[%s2764 + $0x118] sm:$0xff]
        %v2801 = vld [vmem:[%s2764 + $0x120] sm:$0xff]
        %v2802 = vld [vmem:[%s2764 + $0x128] sm:$0xff]
        %v2803 = vld [vmem:[%s2764 + $0x130] sm:$0xff]
        %v2804 = vld [vmem:[%s2764 + $0x138] sm:$0xff]
        %v2805 = vld [vmem:[%s2764 + $0x140] sm:$0xff]
        %v2806 = vld [vmem:[%s2764 + $0x148] sm:$0xff]
        %v2807 = vld [vmem:[%s2764 + $0x150] sm:$0xff]
        %v2808 = vld [vmem:[%s2764 + $0x158] sm:$0xff]
        %v2809 = vld [vmem:[%s2764 + $0x160] sm:$0xff]
        %v2810 = vld [vmem:[%s2764 + $0x168] sm:$0xff]
        %v2811 = vld [vmem:[%s2764 + $0x170] sm:$0xff]
        %v2812 = vld [vmem:[%s2764 + $0x178] sm:$0xff]
        %2813 = vmatpush.msra.mxu0 %v2780
        %2814 = vmatpush.msra.mxu0 %v2779
        %2815 = vmatpush.msra.mxu0 %v2778
        %2816 = vmatpush.msra.mxu0 %v2777
        %2817 = vmatpush.msra.mxu0 %v2776
        %2818 = vmatpush.msra.mxu0 %v2775
        %2819 = vmatpush.msra.mxu0 %v2774
        %2820 = vmatpush.msra.mxu0 %v2773
        %2821 = vmatpush.msra.mxu0 %v2772
        %2822 = vmatpush.msra.mxu0 %v2771
        %2823 = vmatpush.msra.mxu0 %v2770
        %2824 = vmatpush.msra.mxu0 %v2769
        %2825 = vmatpush.msra.mxu0 %v2768
        %2826 = vmatpush.msra.mxu0 %v2767
        %2827 = vmatpush.msra.mxu0 %v2766
        %2828 = vmatpush.msra.mxu0 %v2765
        %2829 = vmatmul.f32.gmra.mxu0 %v2599
        %v2830 = vpop.f32.mrf.mxu0
        %v2831 = vadd.f32 0.0, %v2830
        %2832 = vmatmul.f32.gmra.mxu0 %v2600
        %v2833 = vpop.f32.mrf.mxu0
        %v2834 = vadd.f32 0.0, %v2833
        %2835 = vmatmul.f32.gmra.mxu0 %v2602
        %v2836 = vpop.f32.mrf.mxu0
        %v2837 = vadd.f32 0.0, %v2836
        %2838 = vmatmul.f32.gmra.mxu0 %v2603
        %v2839 = vpop.f32.mrf.mxu0
        %v2840 = vadd.f32 0.0, %v2839
        %2841 = vmatmul.f32.gmra.mxu0 %v2605
        %v2842 = vpop.f32.mrf.mxu0
        %v2843 = vadd.f32 0.0, %v2842
        %2844 = vmatmul.f32.gmra.mxu0 %v2606
        %v2845 = vpop.f32.mrf.mxu0
        %v2846 = vadd.f32 0.0, %v2845
        %2847 = vmatmul.f32.gmra.mxu0 %v2608
        %v2848 = vpop.f32.mrf.mxu0
        %v2849 = vadd.f32 0.0, %v2848
        %2850 = vmatmul.f32.gmra.mxu0 %v2609
        %v2851 = vpop.f32.mrf.mxu0
        %v2852 = vadd.f32 0.0, %v2851
        %2853 = vdwg.mxu0
        %2854 = vmatpush.msra.mxu0 %v2796
        %2855 = vmatpush.msra.mxu0 %v2795
        %2856 = vmatpush.msra.mxu0 %v2794
        %2857 = vmatpush.msra.mxu0 %v2793
        %2858 = vmatpush.msra.mxu0 %v2792
        %2859 = vmatpush.msra.mxu0 %v2791
        %2860 = vmatpush.msra.mxu0 %v2790
        %2861 = vmatpush.msra.mxu0 %v2789
        %2862 = vmatpush.msra.mxu0 %v2788
        %2863 = vmatpush.msra.mxu0 %v2787
        %2864 = vmatpush.msra.mxu0 %v2786
        %2865 = vmatpush.msra.mxu0 %v2785
        %2866 = vmatpush.msra.mxu0 %v2784
        %2867 = vmatpush.msra.mxu0 %v2783
        %2868 = vmatpush.msra.mxu0 %v2782
        %2869 = vmatpush.msra.mxu0 %v2781
        %2870 = vmatmul.f32.gmra.mxu0 %v2639
        %v2871 = vpop.f32.mrf.mxu0
        %v2872 = vadd.f32 %v2831, %v2871
        %2873 = vmatmul.f32.gmra.mxu0 %v2641
        %v2874 = vpop.f32.mrf.mxu0
        %v2875 = vadd.f32 %v2834, %v2874
        %2876 = vmatmul.f32.gmra.mxu0 %v2644
        %v2877 = vpop.f32.mrf.mxu0
        %v2878 = vadd.f32 %v2837, %v2877
        %2879 = vmatmul.f32.gmra.mxu0 %v2646
        %v2880 = vpop.f32.mrf.mxu0
        %v2881 = vadd.f32 %v2840, %v2880
        %2882 = vmatmul.f32.gmra.mxu0 %v2649
        %v2883 = vpop.f32.mrf.mxu0
        %v2884 = vadd.f32 %v2843, %v2883
        %2885 = vmatmul.f32.gmra.mxu0 %v2651
        %v2886 = vpop.f32.mrf.mxu0
        %v2887 = vadd.f32 %v2846, %v2886
        %2888 = vmatmul.f32.gmra.mxu0 %v2654
        %v2889 = vpop.f32.mrf.mxu0
        %v2890 = vadd.f32 %v2849, %v2889
        %2891 = vmatmul.f32.gmra.mxu0 %v2656
        %v2892 = vpop.f32.mrf.mxu0
        %v2893 = vadd.f32 %v2852, %v2892
        %2894 = vdwg.mxu0
        %2895 = vmatpush.msra.mxu0 %v2812
        %2896 = vmatpush.msra.mxu0 %v2811
        %2897 = vmatpush.msra.mxu0 %v2810
        %2898 = vmatpush.msra.mxu0 %v2809
        %2899 = vmatpush.msra.mxu0 %v2808
        %2900 = vmatpush.msra.mxu0 %v2807
        %2901 = vmatpush.msra.mxu0 %v2806
        %2902 = vmatpush.msra.mxu0 %v2805
        %2903 = vmatpush.msra.mxu0 %v2804
        %2904 = vmatpush.msra.mxu0 %v2803
        %2905 = vmatpush.msra.mxu0 %v2802
        %2906 = vmatpush.msra.mxu0 %v2801
        %2907 = vmatpush.msra.mxu0 %v2800
        %2908 = vmatpush.msra.mxu0 %v2799
        %2909 = vmatpush.msra.mxu0 %v2798
        %2910 = vmatpush.msra.mxu0 %v2797
        %2911 = vmatmul.f32.gmra.mxu0 %v2681
        %v2912 = vpop.f32.mrf.mxu0
        %v2913 = vadd.f32 %v2872, %v2912
        %2914 = vmatmul.f32.gmra.mxu0 %v2683
        %v2915 = vpop.f32.mrf.mxu0
        %v2916 = vadd.f32 %v2875, %v2915
        %2917 = vmatmul.f32.gmra.mxu0 %v2686
        %v2918 = vpop.f32.mrf.mxu0
        %v2919 = vadd.f32 %v2878, %v2918
        %2920 = vmatmul.f32.gmra.mxu0 %v2688
        %v2921 = vpop.f32.mrf.mxu0
        %v2922 = vadd.f32 %v2881, %v2921
        %2923 = vmatmul.f32.gmra.mxu0 %v2691
        %v2924 = vpop.f32.mrf.mxu0
        %v2925 = vadd.f32 %v2884, %v2924
        %2926 = vmatmul.f32.gmra.mxu0 %v2693
        %v2927 = vpop.f32.mrf.mxu0
        %v2928 = vadd.f32 %v2887, %v2927
        %2929 = vmatmul.f32.gmra.mxu0 %v2696
        %v2930 = vpop.f32.mrf.mxu0
        %v2931 = vadd.f32 %v2890, %v2930
        %2932 = vmatmul.f32.gmra.mxu0 %v2698
        %v2933 = vpop.f32.mrf.mxu0
        %v2934 = vadd.f32 %v2893, %v2933
        %2935 = vdwg.mxu0
        %2936 = vmatpush.msra.mxu0 %v2731
        %2937 = vmatpush.msra.mxu0 %v2730
        %2938 = vmatpush.msra.mxu0 %v2729
        %2939 = vmatpush.msra.mxu0 %v2728
        %2940 = vmatpush.msra.mxu0 %v2727
        %2941 = vmatpush.msra.mxu0 %v2726
        %2942 = vmatpush.msra.mxu0 %v2725
        %2943 = vmatpush.msra.mxu0 %v2724
        %2944 = vmatpush.msra.mxu0 %v2723
        %2945 = vmatpush.msra.mxu0 %v2722
        %2946 = vmatpush.msra.mxu0 %v2721
        %2947 = vmatpush.msra.mxu0 %v2720
        %2948 = vmatpush.msra.mxu0 %v2719
        %2949 = vmatpush.msra.mxu0 %v2718
        %2950 = vmatpush.msra.mxu0 %v2717
        %2951 = vmatpush.msra.mxu0 %v2716
        %2952 = vmatmul.f32.gmra.mxu0 %v2596
        %v2953 = vpop.f32.mrf.mxu0
        %v2954 = vadd.f32 %v2913, %v2953
        %2955 = vmatmul.f32.gmra.mxu0 %v2597
        %v2956 = vpop.f32.mrf.mxu0
        %v2957 = vadd.f32 %v2916, %v2956
        %2958 = vmatmul.f32.gmra.mxu0 %v2599
        %v2959 = vpop.f32.mrf.mxu0
        %v2960 = vadd.f32 %v2919, %v2959
        %2961 = vmatmul.f32.gmra.mxu0 %v2600
        %v2962 = vpop.f32.mrf.mxu0
        %v2963 = vadd.f32 %v2922, %v2962
        %2964 = vmatmul.f32.gmra.mxu0 %v2602
        %v2965 = vpop.f32.mrf.mxu0
        %v2966 = vadd.f32 %v2925, %v2965
        %2967 = vmatmul.f32.gmra.mxu0 %v2603
        %v2968 = vpop.f32.mrf.mxu0
        %v2969 = vadd.f32 %v2928, %v2968
        %2970 = vmatmul.f32.gmra.mxu0 %v2605
        %v2971 = vpop.f32.mrf.mxu0
        %v2972 = vadd.f32 %v2931, %v2971
        %2973 = vmatmul.f32.gmra.mxu0 %v2606
        %v2974 = vpop.f32.mrf.mxu0
        %v2975 = vadd.f32 %v2934, %v2974
        %2976 = vdwg.mxu0
        %2977 = vmatpush.msra.mxu0 %v2747
        %2978 = vmatpush.msra.mxu0 %v2746
        %2979 = vmatpush.msra.mxu0 %v2745
        %2980 = vmatpush.msra.mxu0 %v2744
        %2981 = vmatpush.msra.mxu0 %v2743
        %2982 = vmatpush.msra.mxu0 %v2742
        %2983 = vmatpush.msra.mxu0 %v2741
        %2984 = vmatpush.msra.mxu0 %v2740
        %2985 = vmatpush.msra.mxu0 %v2739
        %2986 = vmatpush.msra.mxu0 %v2738
        %2987 = vmatpush.msra.mxu0 %v2737
        %2988 = vmatpush.msra.mxu0 %v2736
        %2989 = vmatpush.msra.mxu0 %v2735
        %2990 = vmatpush.msra.mxu0 %v2734
        %2991 = vmatpush.msra.mxu0 %v2733
        %2992 = vmatpush.msra.mxu0 %v2732
        %2993 = vmatmul.f32.gmra.mxu0 %v2634
        %v2994 = vpop.f32.mrf.mxu0
        %v2995 = vadd.f32 %v2954, %v2994
        %2996 = vmatmul.f32.gmra.mxu0 %v2636
        %v2997 = vpop.f32.mrf.mxu0
        %v2998 = vadd.f32 %v2957, %v2997
        %2999 = vmatmul.f32.gmra.mxu0 %v2639
        %v3000 = vpop.f32.mrf.mxu0
        %v3001 = vadd.f32 %v2960, %v3000
        %3002 = vmatmul.f32.gmra.mxu0 %v2641
        %v3003 = vpop.f32.mrf.mxu0
        %v3004 = vadd.f32 %v2963, %v3003
        %3005 = vmatmul.f32.gmra.mxu0 %v2644
        %v3006 = vpop.f32.mrf.mxu0
        %v3007 = vadd.f32 %v2966, %v3006
        %3008 = vmatmul.f32.gmra.mxu0 %v2646
        %v3009 = vpop.f32.mrf.mxu0
        %v3010 = vadd.f32 %v2969, %v3009
        %3011 = vmatmul.f32.gmra.mxu0 %v2649
        %v3012 = vpop.f32.mrf.mxu0
        %v3013 = vadd.f32 %v2972, %v3012
        %3014 = vmatmul.f32.gmra.mxu0 %v2651
        %v3015 = vpop.f32.mrf.mxu0
        %v3016 = vadd.f32 %v2975, %v3015
        %3017 = vdwg.mxu0
        %3018 = vmatpush.msra.mxu0 %v2763
        %3019 = vmatpush.msra.mxu0 %v2762
        %3020 = vmatpush.msra.mxu0 %v2761
        %3021 = vmatpush.msra.mxu0 %v2760
        %3022 = vmatpush.msra.mxu0 %v2759
        %3023 = vmatpush.msra.mxu0 %v2758
        %3024 = vmatpush.msra.mxu0 %v2757
        %3025 = vmatpush.msra.mxu0 %v2756
        %3026 = vmatpush.msra.mxu0 %v2755
        %3027 = vmatpush.msra.mxu0 %v2754
        %3028 = vmatpush.msra.mxu0 %v2753
        %3029 = vmatpush.msra.mxu0 %v2752
        %3030 = vmatpush.msra.mxu0 %v2751
        %3031 = vmatpush.msra.mxu0 %v2750
        %3032 = vmatpush.msra.mxu0 %v2749
        %3033 = vmatpush.msra.mxu0 %v2748
        %3034 = vmatmul.f32.gmra.mxu0 %v2676
        %v3035 = vpop.f32.mrf.mxu0
        %v3036 = vadd.f32 %v2995, %v3035
        %3037 = vmatmul.f32.gmra.mxu0 %v2678
        %v3038 = vpop.f32.mrf.mxu0
        %v3039 = vadd.f32 %v2998, %v3038
        %3040 = vmatmul.f32.gmra.mxu0 %v2681
        %v3041 = vpop.f32.mrf.mxu0
        %v3042 = vadd.f32 %v3001, %v3041
        %3043 = vmatmul.f32.gmra.mxu0 %v2683
        %v3044 = vpop.f32.mrf.mxu0
        %v3045 = vadd.f32 %v3004, %v3044
        %3046 = vmatmul.f32.gmra.mxu0 %v2686
        %v3047 = vpop.f32.mrf.mxu0
        %v3048 = vadd.f32 %v3007, %v3047
        %3049 = vmatmul.f32.gmra.mxu0 %v2688
        %v3050 = vpop.f32.mrf.mxu0
        %v3051 = vadd.f32 %v3010, %v3050
        %3052 = vmatmul.f32.gmra.mxu0 %v2691
        %v3053 = vpop.f32.mrf.mxu0
        %v3054 = vadd.f32 %v3013, %v3053
        %3055 = vmatmul.f32.gmra.mxu0 %v2693
        %v3056 = vpop.f32.mrf.mxu0
        %v3057 = vadd.f32 %v3016, %v3056
        %3058 = vdwg.mxu0
        %s3059 = scalar_lea.vmem [#allocation5], 768
        %v3060 = vld [vmem:[%s3059] sm:$0xff]
        %v3061 = vld [vmem:[%s3059 + $0x8] sm:$0xff]
        %v3062 = vld [vmem:[%s3059 + $0x10] sm:$0xff]
        %v3063 = vld [vmem:[%s3059 + $0x18] sm:$0xff]
        %v3064 = vld [vmem:[%s3059 + $0x20] sm:$0xff]
        %v3065 = vld [vmem:[%s3059 + $0x28] sm:$0xff]
        %v3066 = vld [vmem:[%s3059 + $0x30] sm:$0xff]
        %v3067 = vld [vmem:[%s3059 + $0x38] sm:$0xff]
        %v3068 = vld [vmem:[%s3059 + $0x40] sm:$0xff]
        %v3069 = vld [vmem:[%s3059 + $0x48] sm:$0xff]
        %v3070 = vld [vmem:[%s3059 + $0x50] sm:$0xff]
        %v3071 = vld [vmem:[%s3059 + $0x58] sm:$0xff]
        %v3072 = vld [vmem:[%s3059 + $0x60] sm:$0xff]
        %v3073 = vld [vmem:[%s3059 + $0x68] sm:$0xff]
        %v3074 = vld [vmem:[%s3059 + $0x70] sm:$0xff]
        %v3075 = vld [vmem:[%s3059 + $0x78] sm:$0xff]
        %v3076 = vld [vmem:[%s3059 + $0x80] sm:$0xff]
        %v3077 = vld [vmem:[%s3059 + $0x88] sm:$0xff]
        %v3078 = vld [vmem:[%s3059 + $0x90] sm:$0xff]
        %v3079 = vld [vmem:[%s3059 + $0x98] sm:$0xff]
        %v3080 = vld [vmem:[%s3059 + $0xa0] sm:$0xff]
        %v3081 = vld [vmem:[%s3059 + $0xa8] sm:$0xff]
        %v3082 = vld [vmem:[%s3059 + $0xb0] sm:$0xff]
        %v3083 = vld [vmem:[%s3059 + $0xb8] sm:$0xff]
        %v3084 = vld [vmem:[%s3059 + $0xc0] sm:$0xff]
        %v3085 = vld [vmem:[%s3059 + $0xc8] sm:$0xff]
        %v3086 = vld [vmem:[%s3059 + $0xd0] sm:$0xff]
        %v3087 = vld [vmem:[%s3059 + $0xd8] sm:$0xff]
        %v3088 = vld [vmem:[%s3059 + $0xe0] sm:$0xff]
        %v3089 = vld [vmem:[%s3059 + $0xe8] sm:$0xff]
        %v3090 = vld [vmem:[%s3059 + $0xf0] sm:$0xff]
        %v3091 = vld [vmem:[%s3059 + $0xf8] sm:$0xff]
        %v3092 = vld [vmem:[%s3059 + $0x100] sm:$0xff]
        %v3093 = vld [vmem:[%s3059 + $0x108] sm:$0xff]
        %v3094 = vld [vmem:[%s3059 + $0x110] sm:$0xff]
        %v3095 = vld [vmem:[%s3059 + $0x118] sm:$0xff]
        %v3096 = vld [vmem:[%s3059 + $0x120] sm:$0xff]
        %v3097 = vld [vmem:[%s3059 + $0x128] sm:$0xff]
        %v3098 = vld [vmem:[%s3059 + $0x130] sm:$0xff]
        %v3099 = vld [vmem:[%s3059 + $0x138] sm:$0xff]
        %v3100 = vld [vmem:[%s3059 + $0x140] sm:$0xff]
        %v3101 = vld [vmem:[%s3059 + $0x148] sm:$0xff]
        %v3102 = vld [vmem:[%s3059 + $0x150] sm:$0xff]
        %v3103 = vld [vmem:[%s3059 + $0x158] sm:$0xff]
        %v3104 = vld [vmem:[%s3059 + $0x160] sm:$0xff]
        %v3105 = vld [vmem:[%s3059 + $0x168] sm:$0xff]
        %v3106 = vld [vmem:[%s3059 + $0x170] sm:$0xff]
        %v3107 = vld [vmem:[%s3059 + $0x178] sm:$0xff]
        %3108 = vmatpush.msra.mxu0 %v3075
        %3109 = vmatpush.msra.mxu0 %v3074
        %3110 = vmatpush.msra.mxu0 %v3073
        %3111 = vmatpush.msra.mxu0 %v3072
        %3112 = vmatpush.msra.mxu0 %v3071
        %3113 = vmatpush.msra.mxu0 %v3070
        %3114 = vmatpush.msra.mxu0 %v3069
        %3115 = vmatpush.msra.mxu0 %v3068
        %3116 = vmatpush.msra.mxu0 %v3067
        %3117 = vmatpush.msra.mxu0 %v3066
        %3118 = vmatpush.msra.mxu0 %v3065
        %3119 = vmatpush.msra.mxu0 %v3064
        %3120 = vmatpush.msra.mxu0 %v3063
        %3121 = vmatpush.msra.mxu0 %v3062
        %3122 = vmatpush.msra.mxu0 %v3061
        %3123 = vmatpush.msra.mxu0 %v3060
        %3124 = vmatmul.f32.gmra.mxu0 %v2602
        %v3125 = vpop.f32.mrf.mxu0
        %v3126 = vadd.f32 0.0, %v3125
        %3127 = vmatmul.f32.gmra.mxu0 %v2603
        %v3128 = vpop.f32.mrf.mxu0
        %v3129 = vadd.f32 0.0, %v3128
        %3130 = vmatmul.f32.gmra.mxu0 %v2605
        %v3131 = vpop.f32.mrf.mxu0
        %v3132 = vadd.f32 0.0, %v3131
        %3133 = vmatmul.f32.gmra.mxu0 %v2606
        %v3134 = vpop.f32.mrf.mxu0
        %v3135 = vadd.f32 0.0, %v3134
        %3136 = vmatmul.f32.gmra.mxu0 %v2608
        %v3137 = vpop.f32.mrf.mxu0
        %v3138 = vadd.f32 0.0, %v3137
        %3139 = vmatmul.f32.gmra.mxu0 %v2609
        %v3140 = vpop.f32.mrf.mxu0
        %v3141 = vadd.f32 0.0, %v3140
        %3142 = vmatmul.f32.gmra.mxu0 %v2611
        %v3143 = vpop.f32.mrf.mxu0
        %v3144 = vadd.f32 0.0, %v3143
        %3145 = vmatmul.f32.gmra.mxu0 %v2612
        %v3146 = vpop.f32.mrf.mxu0
        %v3147 = vadd.f32 0.0, %v3146
        %3148 = vdwg.mxu0
        %3149 = vmatpush.msra.mxu0 %v3091
        %3150 = vmatpush.msra.mxu0 %v3090
        %3151 = vmatpush.msra.mxu0 %v3089
        %3152 = vmatpush.msra.mxu0 %v3088
        %3153 = vmatpush.msra.mxu0 %v3087
        %3154 = vmatpush.msra.mxu0 %v3086
        %3155 = vmatpush.msra.mxu0 %v3085
        %3156 = vmatpush.msra.mxu0 %v3084
        %3157 = vmatpush.msra.mxu0 %v3083
        %3158 = vmatpush.msra.mxu0 %v3082
        %3159 = vmatpush.msra.mxu0 %v3081
        %3160 = vmatpush.msra.mxu0 %v3080
        %3161 = vmatpush.msra.mxu0 %v3079
        %3162 = vmatpush.msra.mxu0 %v3078
        %3163 = vmatpush.msra.mxu0 %v3077
        %3164 = vmatpush.msra.mxu0 %v3076
        %3165 = vmatmul.f32.gmra.mxu0 %v2644
        %v3166 = vpop.f32.mrf.mxu0
        %v3167 = vadd.f32 %v3126, %v3166
        %3168 = vmatmul.f32.gmra.mxu0 %v2646
        %v3169 = vpop.f32.mrf.mxu0
        %v3170 = vadd.f32 %v3129, %v3169
        %3171 = vmatmul.f32.gmra.mxu0 %v2649
        %v3172 = vpop.f32.mrf.mxu0
        %v3173 = vadd.f32 %v3132, %v3172
        %3174 = vmatmul.f32.gmra.mxu0 %v2651
        %v3175 = vpop.f32.mrf.mxu0
        %v3176 = vadd.f32 %v3135, %v3175
        %3177 = vmatmul.f32.gmra.mxu0 %v2654
        %v3178 = vpop.f32.mrf.mxu0
        %v3179 = vadd.f32 %v3138, %v3178
        %3180 = vmatmul.f32.gmra.mxu0 %v2656
        %v3181 = vpop.f32.mrf.mxu0
        %v3182 = vadd.f32 %v3141, %v3181
        %3183 = vmatmul.f32.gmra.mxu0 %v2659
        %v3184 = vpop.f32.mrf.mxu0
        %v3185 = vadd.f32 %v3144, %v3184
        %3186 = vmatmul.f32.gmra.mxu0 %v2661
        %v3187 = vpop.f32.mrf.mxu0
        %v3188 = vadd.f32 %v3147, %v3187
        %3189 = vdwg.mxu0
        %3190 = vmatpush.msra.mxu0 %v3107
        %3191 = vmatpush.msra.mxu0 %v3106
        %3192 = vmatpush.msra.mxu0 %v3105
        %3193 = vmatpush.msra.mxu0 %v3104
        %3194 = vmatpush.msra.mxu0 %v3103
        %3195 = vmatpush.msra.mxu0 %v3102
        %3196 = vmatpush.msra.mxu0 %v3101
        %3197 = vmatpush.msra.mxu0 %v3100
        %3198 = vmatpush.msra.mxu0 %v3099
        %3199 = vmatpush.msra.mxu0 %v3098
        %3200 = vmatpush.msra.mxu0 %v3097
        %3201 = vmatpush.msra.mxu0 %v3096
        %3202 = vmatpush.msra.mxu0 %v3095
        %3203 = vmatpush.msra.mxu0 %v3094
        %3204 = vmatpush.msra.mxu0 %v3093
        %3205 = vmatpush.msra.mxu0 %v3092
        %3206 = vmatmul.f32.gmra.mxu0 %v2686
        %v3207 = vpop.f32.mrf.mxu0
        %v3208 = vadd.f32 %v3167, %v3207
        %3209 = vmatmul.f32.gmra.mxu0 %v2688
        %v3210 = vpop.f32.mrf.mxu0
        %v3211 = vadd.f32 %v3170, %v3210
        %3212 = vmatmul.f32.gmra.mxu0 %v2691
        %v3213 = vpop.f32.mrf.mxu0
        %v3214 = vadd.f32 %v3173, %v3213
        %3215 = vmatmul.f32.gmra.mxu0 %v2693
        %v3216 = vpop.f32.mrf.mxu0
        %v3217 = vadd.f32 %v3176, %v3216
        %3218 = vmatmul.f32.gmra.mxu0 %v2696
        %v3219 = vpop.f32.mrf.mxu0
        %v3220 = vadd.f32 %v3179, %v3219
        %3221 = vmatmul.f32.gmra.mxu0 %v2698
        %v3222 = vpop.f32.mrf.mxu0
        %v3223 = vadd.f32 %v3182, %v3222
        %3224 = vmatmul.f32.gmra.mxu0 %v2701
        %v3225 = vpop.f32.mrf.mxu0
        %v3226 = vadd.f32 %v3185, %v3225
        %3227 = vmatmul.f32.gmra.mxu0 %v2703
        %v3228 = vpop.f32.mrf.mxu0
        %v3229 = vadd.f32 %v3188, %v3228
        %3230 = vdwg.mxu0
        %v3231 = vadd.f32 %v3036, %v3208
        %v3232 = vadd.f32 %v3039, %v3211
        %v3233 = vadd.f32 %v3042, %v3214
        %v3234 = vadd.f32 %v3045, %v3217
        %v3235 = vadd.f32 %v3048, %v3220
        %v3236 = vadd.f32 %v3051, %v3223
        %v3237 = vadd.f32 %v3054, %v3226
        %v3238 = vadd.f32 %v3057, %v3229
        %v3240 = vperm.slane %v442, 0
        %v3242 = vadd.f32 %v3231, %v3240
        %v3243 = vadd.f32 %v3232, %v3240
        %v3244 = vadd.f32 %v3233, %v3240
        %v3245 = vadd.f32 %v3234, %v3240
        %v3246 = vadd.f32 %v3235, %v3240
        %v3247 = vadd.f32 %v3236, %v3240
        %v3248 = vadd.f32 %v3237, %v3240
        %v3249 = vadd.f32 %v3238, %v3240
        %v3250 = vmax.f32 %v3242, 0.0
        %v3251 = vmax.f32 %v3243, 0.0
        %v3252 = vmax.f32 %v3244, 0.0
        %v3253 = vmax.f32 %v3245, 0.0
        %v3254 = vmax.f32 %v3246, 0.0
        %v3255 = vmax.f32 %v3247, 0.0
        %v3256 = vmax.f32 %v3248, 0.0
        %v3257 = vmax.f32 %v3249, 0.0
        %3258 = vst [vmem:[%s207] sm:$0xff] %v3250
        %3259 = vst [vmem:[%s207 + $0x8] sm:$0xff] %v3251
        %3260 = vst [vmem:[%s207 + $0x10] sm:$0xff] %v3252
        %3261 = vst [vmem:[%s207 + $0x18] sm:$0xff] %v3253
        %3262 = vst [vmem:[%s207 + $0x20] sm:$0xff] %v3254
        %3263 = vst [vmem:[%s207 + $0x28] sm:$0xff] %v3255
        %3264 = vst [vmem:[%s207 + $0x30] sm:$0xff] %v3256
        %3265 = vst [vmem:[%s207 + $0x38] sm:$0xff] %v3257
        %v3266 = vld [vmem:[%s1858] sm:$0xff]
        %v3267 = vld [vmem:[%s1858 + $0x8] sm:$0xff]
        %v3268 = vld [vmem:[%s1858 + $0x10] sm:$0x3]
        %v3269 = vld [vmem:[%s1858 + $0x18] sm:$0xff]
        %v3270 = vld [vmem:[%s1858 + $0x20] sm:$0xff]
        %v3271 = vld [vmem:[%s1858 + $0x28] sm:$0x3]
        %v3272 = vld [vmem:[%s1858 + $0x30] sm:$0xff]
        %v3273 = vld [vmem:[%s1858 + $0x38] sm:$0xff]
        %v3274 = vld [vmem:[%s1858 + $0x40] sm:$0x3]
        %v3275 = vld [vmem:[%s1858 + $0x48] sm:$0xff]
        %v3276 = vld [vmem:[%s1858 + $0x50] sm:$0xff]
        %v3277 = vld [vmem:[%s1858 + $0x58] sm:$0x3]
        %v3278 = vld [vmem:[%s1858 + $0x60] sm:$0xff]
        %v3279 = vld [vmem:[%s1858 + $0x68] sm:$0xff]
        %v3280 = vld [vmem:[%s1858 + $0x70] sm:$0x3]
        %v3281 = vld [vmem:[%s1858 + $0x78] sm:$0xff]
        %v3282 = vld [vmem:[%s1858 + $0x80] sm:$0xff]
        %v3283 = vld [vmem:[%s1858 + $0x88] sm:$0x3]
        %v3302 = vrot.slane %v3266, 1
        %v3303 = vrot.slane %v3267, 1
        %v3304 = vsel %vm479, %v3302, %v3303
        %v3305 = vrot.slane %v3268, 1
        %v3306 = vsel %vm479, %v3303, %v3305
        %v3307 = vrot.slane %v3269, 1
        %v3308 = vrot.slane %v3270, 1
        %v3309 = vsel %vm479, %v3307, %v3308
        %v3310 = vrot.slane %v3271, 1
        %v3311 = vsel %vm479, %v3308, %v3310
        %v3312 = vrot.slane %v3272, 1
        %v3313 = vrot.slane %v3273, 1
        %v3314 = vsel %vm479, %v3312, %v3313
        %v3315 = vrot.slane %v3274, 1
        %v3316 = vsel %vm479, %v3313, %v3315
        %v3317 = vrot.slane %v3275, 1
        %v3318 = vrot.slane %v3276, 1
        %v3319 = vsel %vm479, %v3317, %v3318
        %v3320 = vrot.slane %v3277, 1
        %v3321 = vsel %vm479, %v3318, %v3320
        %v3322 = vrot.slane %v3278, 1
        %v3323 = vrot.slane %v3279, 1
        %v3324 = vsel %vm479, %v3322, %v3323
        %v3325 = vrot.slane %v3280, 1
        %v3326 = vsel %vm479, %v3323, %v3325
        %v3327 = vrot.slane %v3281, 1
        %v3328 = vrot.slane %v3282, 1
        %v3329 = vsel %vm479, %v3327, %v3328
        %v3330 = vrot.slane %v3283, 1
        %v3331 = vsel %vm479, %v3328, %v3330
        %v3344 = vrot.slane %v3266, 2
        %v3345 = vrot.slane %v3267, 2
        %v3346 = vsel %vm522, %v3344, %v3345
        %v3347 = vrot.slane %v3268, 2
        %v3348 = vsel %vm522, %v3345, %v3347
        %v3349 = vrot.slane %v3269, 2
        %v3350 = vrot.slane %v3270, 2
        %v3351 = vsel %vm522, %v3349, %v3350
        %v3352 = vrot.slane %v3271, 2
        %v3353 = vsel %vm522, %v3350, %v3352
        %v3354 = vrot.slane %v3272, 2
        %v3355 = vrot.slane %v3273, 2
        %v3356 = vsel %vm522, %v3354, %v3355
        %v3357 = vrot.slane %v3274, 2
        %v3358 = vsel %vm522, %v3355, %v3357
        %v3359 = vrot.slane %v3275, 2
        %v3360 = vrot.slane %v3276, 2
        %v3361 = vsel %vm522, %v3359, %v3360
        %v3362 = vrot.slane %v3277, 2
        %v3363 = vsel %vm522, %v3360, %v3362
        %v3364 = vrot.slane %v3278, 2
        %v3365 = vrot.slane %v3279, 2
        %v3366 = vsel %vm522, %v3364, %v3365
        %v3367 = vrot.slane %v3280, 2
        %v3368 = vsel %vm522, %v3365, %v3367
        %v3369 = vrot.slane %v3281, 2
        %v3370 = vrot.slane %v3282, 2
        %v3371 = vsel %vm522, %v3369, %v3370
        %v3372 = vrot.slane %v3283, 2
        %v3373 = vsel %vm522, %v3370, %v3372
        %v3386 = vld [vmem:[#allocation5] sm:$0xff]
        %v3387 = vld [vmem:[#allocation5 + $0x8] sm:$0xff]
        %v3388 = vld [vmem:[#allocation5 + $0x10] sm:$0xff]
        %v3389 = vld [vmem:[#allocation5 + $0x18] sm:$0xff]
        %v3390 = vld [vmem:[#allocation5 + $0x20] sm:$0xff]
        %v3391 = vld [vmem:[#allocation5 + $0x28] sm:$0xff]
        %v3392 = vld [vmem:[#allocation5 + $0x30] sm:$0xff]
        %v3393 = vld [vmem:[#allocation5 + $0x38] sm:$0xff]
        %v3394 = vld [vmem:[#allocation5 + $0x40] sm:$0xff]
        %v3395 = vld [vmem:[#allocation5 + $0x48] sm:$0xff]
        %v3396 = vld [vmem:[#allocation5 + $0x50] sm:$0xff]
        %v3397 = vld [vmem:[#allocation5 + $0x58] sm:$0xff]
        %v3398 = vld [vmem:[#allocation5 + $0x60] sm:$0xff]
        %v3399 = vld [vmem:[#allocation5 + $0x68] sm:$0xff]
        %v3400 = vld [vmem:[#allocation5 + $0x70] sm:$0xff]
        %v3401 = vld [vmem:[#allocation5 + $0x78] sm:$0xff]
        %v3402 = vld [vmem:[#allocation5 + $0x80] sm:$0xff]
        %v3403 = vld [vmem:[#allocation5 + $0x88] sm:$0xff]
        %v3404 = vld [vmem:[#allocation5 + $0x90] sm:$0xff]
        %v3405 = vld [vmem:[#allocation5 + $0x98] sm:$0xff]
        %v3406 = vld [vmem:[#allocation5 + $0xa0] sm:$0xff]
        %v3407 = vld [vmem:[#allocation5 + $0xa8] sm:$0xff]
        %v3408 = vld [vmem:[#allocation5 + $0xb0] sm:$0xff]
        %v3409 = vld [vmem:[#allocation5 + $0xb8] sm:$0xff]
        %v3410 = vld [vmem:[#allocation5 + $0xc0] sm:$0xff]
        %v3411 = vld [vmem:[#allocation5 + $0xc8] sm:$0xff]
        %v3412 = vld [vmem:[#allocation5 + $0xd0] sm:$0xff]
        %v3413 = vld [vmem:[#allocation5 + $0xd8] sm:$0xff]
        %v3414 = vld [vmem:[#allocation5 + $0xe0] sm:$0xff]
        %v3415 = vld [vmem:[#allocation5 + $0xe8] sm:$0xff]
        %v3416 = vld [vmem:[#allocation5 + $0xf0] sm:$0xff]
        %v3417 = vld [vmem:[#allocation5 + $0xf8] sm:$0xff]
        %v3418 = vld [vmem:[#allocation5 + $0x100] sm:$0xff]
        %v3419 = vld [vmem:[#allocation5 + $0x108] sm:$0xff]
        %v3420 = vld [vmem:[#allocation5 + $0x110] sm:$0xff]
        %v3421 = vld [vmem:[#allocation5 + $0x118] sm:$0xff]
        %v3422 = vld [vmem:[#allocation5 + $0x120] sm:$0xff]
        %v3423 = vld [vmem:[#allocation5 + $0x128] sm:$0xff]
        %v3424 = vld [vmem:[#allocation5 + $0x130] sm:$0xff]
        %v3425 = vld [vmem:[#allocation5 + $0x138] sm:$0xff]
        %v3426 = vld [vmem:[#allocation5 + $0x140] sm:$0xff]
        %v3427 = vld [vmem:[#allocation5 + $0x148] sm:$0xff]
        %v3428 = vld [vmem:[#allocation5 + $0x150] sm:$0xff]
        %v3429 = vld [vmem:[#allocation5 + $0x158] sm:$0xff]
        %v3430 = vld [vmem:[#allocation5 + $0x160] sm:$0xff]
        %v3431 = vld [vmem:[#allocation5 + $0x168] sm:$0xff]
        %v3432 = vld [vmem:[#allocation5 + $0x170] sm:$0xff]
        %v3433 = vld [vmem:[#allocation5 + $0x178] sm:$0xff]
        %v3434 = vld [vmem:[%s2764] sm:$0xff]
        %v3435 = vld [vmem:[%s2764 + $0x8] sm:$0xff]
        %v3436 = vld [vmem:[%s2764 + $0x10] sm:$0xff]
        %v3437 = vld [vmem:[%s2764 + $0x18] sm:$0xff]
        %v3438 = vld [vmem:[%s2764 + $0x20] sm:$0xff]
        %v3439 = vld [vmem:[%s2764 + $0x28] sm:$0xff]
        %v3440 = vld [vmem:[%s2764 + $0x30] sm:$0xff]
        %v3441 = vld [vmem:[%s2764 + $0x38] sm:$0xff]
        %v3442 = vld [vmem:[%s2764 + $0x40] sm:$0xff]
        %v3443 = vld [vmem:[%s2764 + $0x48] sm:$0xff]
        %v3444 = vld [vmem:[%s2764 + $0x50] sm:$0xff]
        %v3445 = vld [vmem:[%s2764 + $0x58] sm:$0xff]
        %v3446 = vld [vmem:[%s2764 + $0x60] sm:$0xff]
        %v3447 = vld [vmem:[%s2764 + $0x68] sm:$0xff]
        %v3448 = vld [vmem:[%s2764 + $0x70] sm:$0xff]
        %v3449 = vld [vmem:[%s2764 + $0x78] sm:$0xff]
        %v3450 = vld [vmem:[%s2764 + $0x80] sm:$0xff]
        %v3451 = vld [vmem:[%s2764 + $0x88] sm:$0xff]
        %v3452 = vld [vmem:[%s2764 + $0x90] sm:$0xff]
        %v3453 = vld [vmem:[%s2764 + $0x98] sm:$0xff]
        %v3454 = vld [vmem:[%s2764 + $0xa0] sm:$0xff]
        %v3455 = vld [vmem:[%s2764 + $0xa8] sm:$0xff]
        %v3456 = vld [vmem:[%s2764 + $0xb0] sm:$0xff]
        %v3457 = vld [vmem:[%s2764 + $0xb8] sm:$0xff]
        %v3458 = vld [vmem:[%s2764 + $0xc0] sm:$0xff]
        %v3459 = vld [vmem:[%s2764 + $0xc8] sm:$0xff]
        %v3460 = vld [vmem:[%s2764 + $0xd0] sm:$0xff]
        %v3461 = vld [vmem:[%s2764 + $0xd8] sm:$0xff]
        %v3462 = vld [vmem:[%s2764 + $0xe0] sm:$0xff]
        %v3463 = vld [vmem:[%s2764 + $0xe8] sm:$0xff]
        %v3464 = vld [vmem:[%s2764 + $0xf0] sm:$0xff]
        %v3465 = vld [vmem:[%s2764 + $0xf8] sm:$0xff]
        %v3466 = vld [vmem:[%s2764 + $0x100] sm:$0xff]
        %v3467 = vld [vmem:[%s2764 + $0x108] sm:$0xff]
        %v3468 = vld [vmem:[%s2764 + $0x110] sm:$0xff]
        %v3469 = vld [vmem:[%s2764 + $0x118] sm:$0xff]
        %v3470 = vld [vmem:[%s2764 + $0x120] sm:$0xff]
        %v3471 = vld [vmem:[%s2764 + $0x128] sm:$0xff]
        %v3472 = vld [vmem:[%s2764 + $0x130] sm:$0xff]
        %v3473 = vld [vmem:[%s2764 + $0x138] sm:$0xff]
        %v3474 = vld [vmem:[%s2764 + $0x140] sm:$0xff]
        %v3475 = vld [vmem:[%s2764 + $0x148] sm:$0xff]
        %v3476 = vld [vmem:[%s2764 + $0x150] sm:$0xff]
        %v3477 = vld [vmem:[%s2764 + $0x158] sm:$0xff]
        %v3478 = vld [vmem:[%s2764 + $0x160] sm:$0xff]
        %v3479 = vld [vmem:[%s2764 + $0x168] sm:$0xff]
        %v3480 = vld [vmem:[%s2764 + $0x170] sm:$0xff]
        %v3481 = vld [vmem:[%s2764 + $0x178] sm:$0xff]
        %3482 = vmatpush.msra.mxu0 %v3449
        %3483 = vmatpush.msra.mxu0 %v3448
        %3484 = vmatpush.msra.mxu0 %v3447
        %3485 = vmatpush.msra.mxu0 %v3446
        %3486 = vmatpush.msra.mxu0 %v3445
        %3487 = vmatpush.msra.mxu0 %v3444
        %3488 = vmatpush.msra.mxu0 %v3443
        %3489 = vmatpush.msra.mxu0 %v3442
        %3490 = vmatpush.msra.mxu0 %v3441
        %3491 = vmatpush.msra.mxu0 %v3440
        %3492 = vmatpush.msra.mxu0 %v3439
        %3493 = vmatpush.msra.mxu0 %v3438
        %3494 = vmatpush.msra.mxu0 %v3437
        %3495 = vmatpush.msra.mxu0 %v3436
        %3496 = vmatpush.msra.mxu0 %v3435
        %3497 = vmatpush.msra.mxu0 %v3434
        %3498 = vmatmul.f32.gmra.mxu0 %v3269
        %v3499 = vpop.f32.mrf.mxu0
        %v3500 = vadd.f32 0.0, %v3499
        %3501 = vmatmul.f32.gmra.mxu0 %v3270
        %v3502 = vpop.f32.mrf.mxu0
        %v3503 = vadd.f32 0.0, %v3502
        %3504 = vmatmul.f32.gmra.mxu0 %v3272
        %v3505 = vpop.f32.mrf.mxu0
        %v3506 = vadd.f32 0.0, %v3505
        %3507 = vmatmul.f32.gmra.mxu0 %v3273
        %v3508 = vpop.f32.mrf.mxu0
        %v3509 = vadd.f32 0.0, %v3508
        %3510 = vmatmul.f32.gmra.mxu0 %v3275
        %v3511 = vpop.f32.mrf.mxu0
        %v3512 = vadd.f32 0.0, %v3511
        %3513 = vmatmul.f32.gmra.mxu0 %v3276
        %v3514 = vpop.f32.mrf.mxu0
        %v3515 = vadd.f32 0.0, %v3514
        %3516 = vmatmul.f32.gmra.mxu0 %v3278
        %v3517 = vpop.f32.mrf.mxu0
        %v3518 = vadd.f32 0.0, %v3517
        %3519 = vmatmul.f32.gmra.mxu0 %v3279
        %v3520 = vpop.f32.mrf.mxu0
        %v3521 = vadd.f32 0.0, %v3520
        %3522 = vdwg.mxu0
        %3523 = vmatpush.msra.mxu0 %v3465
        %3524 = vmatpush.msra.mxu0 %v3464
        %3525 = vmatpush.msra.mxu0 %v3463
        %3526 = vmatpush.msra.mxu0 %v3462
        %3527 = vmatpush.msra.mxu0 %v3461
        %3528 = vmatpush.msra.mxu0 %v3460
        %3529 = vmatpush.msra.mxu0 %v3459
        %3530 = vmatpush.msra.mxu0 %v3458
        %3531 = vmatpush.msra.mxu0 %v3457
        %3532 = vmatpush.msra.mxu0 %v3456
        %3533 = vmatpush.msra.mxu0 %v3455
        %3534 = vmatpush.msra.mxu0 %v3454
        %3535 = vmatpush.msra.mxu0 %v3453
        %3536 = vmatpush.msra.mxu0 %v3452
        %3537 = vmatpush.msra.mxu0 %v3451
        %3538 = vmatpush.msra.mxu0 %v3450
        %3539 = vmatmul.f32.gmra.mxu0 %v3309
        %v3540 = vpop.f32.mrf.mxu0
        %v3541 = vadd.f32 %v3500, %v3540
        %3542 = vmatmul.f32.gmra.mxu0 %v3311
        %v3543 = vpop.f32.mrf.mxu0
        %v3544 = vadd.f32 %v3503, %v3543
        %3545 = vmatmul.f32.gmra.mxu0 %v3314
        %v3546 = vpop.f32.mrf.mxu0
        %v3547 = vadd.f32 %v3506, %v3546
        %3548 = vmatmul.f32.gmra.mxu0 %v3316
        %v3549 = vpop.f32.mrf.mxu0
        %v3550 = vadd.f32 %v3509, %v3549
        %3551 = vmatmul.f32.gmra.mxu0 %v3319
        %v3552 = vpop.f32.mrf.mxu0
        %v3553 = vadd.f32 %v3512, %v3552
        %3554 = vmatmul.f32.gmra.mxu0 %v3321
        %v3555 = vpop.f32.mrf.mxu0
        %v3556 = vadd.f32 %v3515, %v3555
        %3557 = vmatmul.f32.gmra.mxu0 %v3324
        %v3558 = vpop.f32.mrf.mxu0
        %v3559 = vadd.f32 %v3518, %v3558
        %3560 = vmatmul.f32.gmra.mxu0 %v3326
        %v3561 = vpop.f32.mrf.mxu0
        %v3562 = vadd.f32 %v3521, %v3561
        %3563 = vdwg.mxu0
        %3564 = vmatpush.msra.mxu0 %v3481
        %3565 = vmatpush.msra.mxu0 %v3480
        %3566 = vmatpush.msra.mxu0 %v3479
        %3567 = vmatpush.msra.mxu0 %v3478
        %3568 = vmatpush.msra.mxu0 %v3477
        %3569 = vmatpush.msra.mxu0 %v3476
        %3570 = vmatpush.msra.mxu0 %v3475
        %3571 = vmatpush.msra.mxu0 %v3474
        %3572 = vmatpush.msra.mxu0 %v3473
        %3573 = vmatpush.msra.mxu0 %v3472
        %3574 = vmatpush.msra.mxu0 %v3471
        %3575 = vmatpush.msra.mxu0 %v3470
        %3576 = vmatpush.msra.mxu0 %v3469
        %3577 = vmatpush.msra.mxu0 %v3468
        %3578 = vmatpush.msra.mxu0 %v3467
        %3579 = vmatpush.msra.mxu0 %v3466
        %3580 = vmatmul.f32.gmra.mxu0 %v3351
        %v3581 = vpop.f32.mrf.mxu0
        %v3582 = vadd.f32 %v3541, %v3581
        %3583 = vmatmul.f32.gmra.mxu0 %v3353
        %v3584 = vpop.f32.mrf.mxu0
        %v3585 = vadd.f32 %v3544, %v3584
        %3586 = vmatmul.f32.gmra.mxu0 %v3356
        %v3587 = vpop.f32.mrf.mxu0
        %v3588 = vadd.f32 %v3547, %v3587
        %3589 = vmatmul.f32.gmra.mxu0 %v3358
        %v3590 = vpop.f32.mrf.mxu0
        %v3591 = vadd.f32 %v3550, %v3590
        %3592 = vmatmul.f32.gmra.mxu0 %v3361
        %v3593 = vpop.f32.mrf.mxu0
        %v3594 = vadd.f32 %v3553, %v3593
        %3595 = vmatmul.f32.gmra.mxu0 %v3363
        %v3596 = vpop.f32.mrf.mxu0
        %v3597 = vadd.f32 %v3556, %v3596
        %3598 = vmatmul.f32.gmra.mxu0 %v3366
        %v3599 = vpop.f32.mrf.mxu0
        %v3600 = vadd.f32 %v3559, %v3599
        %3601 = vmatmul.f32.gmra.mxu0 %v3368
        %v3602 = vpop.f32.mrf.mxu0
        %v3603 = vadd.f32 %v3562, %v3602
        %3604 = vdwg.mxu0
        %3605 = vmatpush.msra.mxu0 %v3401
        %3606 = vmatpush.msra.mxu0 %v3400
        %3607 = vmatpush.msra.mxu0 %v3399
        %3608 = vmatpush.msra.mxu0 %v3398
        %3609 = vmatpush.msra.mxu0 %v3397
        %3610 = vmatpush.msra.mxu0 %v3396
        %3611 = vmatpush.msra.mxu0 %v3395
        %3612 = vmatpush.msra.mxu0 %v3394
        %3613 = vmatpush.msra.mxu0 %v3393
        %3614 = vmatpush.msra.mxu0 %v3392
        %3615 = vmatpush.msra.mxu0 %v3391
        %3616 = vmatpush.msra.mxu0 %v3390
        %3617 = vmatpush.msra.mxu0 %v3389
        %3618 = vmatpush.msra.mxu0 %v3388
        %3619 = vmatpush.msra.mxu0 %v3387
        %3620 = vmatpush.msra.mxu0 %v3386
        %3621 = vmatmul.f32.gmra.mxu0 %v3266
        %v3622 = vpop.f32.mrf.mxu0
        %v3623 = vadd.f32 %v3582, %v3622
        %3624 = vmatmul.f32.gmra.mxu0 %v3267
        %v3625 = vpop.f32.mrf.mxu0
        %v3626 = vadd.f32 %v3585, %v3625
        %3627 = vmatmul.f32.gmra.mxu0 %v3269
        %v3628 = vpop.f32.mrf.mxu0
        %v3629 = vadd.f32 %v3588, %v3628
        %3630 = vmatmul.f32.gmra.mxu0 %v3270
        %v3631 = vpop.f32.mrf.mxu0
        %v3632 = vadd.f32 %v3591, %v3631
        %3633 = vmatmul.f32.gmra.mxu0 %v3272
        %v3634 = vpop.f32.mrf.mxu0
        %v3635 = vadd.f32 %v3594, %v3634
        %3636 = vmatmul.f32.gmra.mxu0 %v3273
        %v3637 = vpop.f32.mrf.mxu0
        %v3638 = vadd.f32 %v3597, %v3637
        %3639 = vmatmul.f32.gmra.mxu0 %v3275
        %v3640 = vpop.f32.mrf.mxu0
        %v3641 = vadd.f32 %v3600, %v3640
        %3642 = vmatmul.f32.gmra.mxu0 %v3276
        %v3643 = vpop.f32.mrf.mxu0
        %v3644 = vadd.f32 %v3603, %v3643
        %3645 = vdwg.mxu0
        %3646 = vmatpush.msra.mxu0 %v3417
        %3647 = vmatpush.msra.mxu0 %v3416
        %3648 = vmatpush.msra.mxu0 %v3415
        %3649 = vmatpush.msra.mxu0 %v3414
        %3650 = vmatpush.msra.mxu0 %v3413
        %3651 = vmatpush.msra.mxu0 %v3412
        %3652 = vmatpush.msra.mxu0 %v3411
        %3653 = vmatpush.msra.mxu0 %v3410
        %3654 = vmatpush.msra.mxu0 %v3409
        %3655 = vmatpush.msra.mxu0 %v3408
        %3656 = vmatpush.msra.mxu0 %v3407
        %3657 = vmatpush.msra.mxu0 %v3406
        %3658 = vmatpush.msra.mxu0 %v3405
        %3659 = vmatpush.msra.mxu0 %v3404
        %3660 = vmatpush.msra.mxu0 %v3403
        %3661 = vmatpush.msra.mxu0 %v3402
        %3662 = vmatmul.f32.gmra.mxu0 %v3304
        %v3663 = vpop.f32.mrf.mxu0
        %v3664 = vadd.f32 %v3623, %v3663
        %3665 = vmatmul.f32.gmra.mxu0 %v3306
        %v3666 = vpop.f32.mrf.mxu0
        %v3667 = vadd.f32 %v3626, %v3666
        %3668 = vmatmul.f32.gmra.mxu0 %v3309
        %v3669 = vpop.f32.mrf.mxu0
        %v3670 = vadd.f32 %v3629, %v3669
        %3671 = vmatmul.f32.gmra.mxu0 %v3311
        %v3672 = vpop.f32.mrf.mxu0
        %v3673 = vadd.f32 %v3632, %v3672
        %3674 = vmatmul.f32.gmra.mxu0 %v3314
        %v3675 = vpop.f32.mrf.mxu0
        %v3676 = vadd.f32 %v3635, %v3675
        %3677 = vmatmul.f32.gmra.mxu0 %v3316
        %v3678 = vpop.f32.mrf.mxu0
        %v3679 = vadd.f32 %v3638, %v3678
        %3680 = vmatmul.f32.gmra.mxu0 %v3319
        %v3681 = vpop.f32.mrf.mxu0
        %v3682 = vadd.f32 %v3641, %v3681
        %3683 = vmatmul.f32.gmra.mxu0 %v3321
        %v3684 = vpop.f32.mrf.mxu0
        %v3685 = vadd.f32 %v3644, %v3684
        %3686 = vdwg.mxu0
        %3687 = vmatpush.msra.mxu0 %v3433
        %3688 = vmatpush.msra.mxu0 %v3432
        %3689 = vmatpush.msra.mxu0 %v3431
        %3690 = vmatpush.msra.mxu0 %v3430
        %3691 = vmatpush.msra.mxu0 %v3429
        %3692 = vmatpush.msra.mxu0 %v3428
        %3693 = vmatpush.msra.mxu0 %v3427
        %3694 = vmatpush.msra.mxu0 %v3426
        %3695 = vmatpush.msra.mxu0 %v3425
        %3696 = vmatpush.msra.mxu0 %v3424
        %3697 = vmatpush.msra.mxu0 %v3423
        %3698 = vmatpush.msra.mxu0 %v3422
        %3699 = vmatpush.msra.mxu0 %v3421
        %3700 = vmatpush.msra.mxu0 %v3420
        %3701 = vmatpush.msra.mxu0 %v3419
        %3702 = vmatpush.msra.mxu0 %v3418
        %3703 = vmatmul.f32.gmra.mxu0 %v3346
        %v3704 = vpop.f32.mrf.mxu0
        %v3705 = vadd.f32 %v3664, %v3704
        %3706 = vmatmul.f32.gmra.mxu0 %v3348
        %v3707 = vpop.f32.mrf.mxu0
        %v3708 = vadd.f32 %v3667, %v3707
        %3709 = vmatmul.f32.gmra.mxu0 %v3351
        %v3710 = vpop.f32.mrf.mxu0
        %v3711 = vadd.f32 %v3670, %v3710
        %3712 = vmatmul.f32.gmra.mxu0 %v3353
        %v3713 = vpop.f32.mrf.mxu0
        %v3714 = vadd.f32 %v3673, %v3713
        %3715 = vmatmul.f32.gmra.mxu0 %v3356
        %v3716 = vpop.f32.mrf.mxu0
        %v3717 = vadd.f32 %v3676, %v3716
        %3718 = vmatmul.f32.gmra.mxu0 %v3358
        %v3719 = vpop.f32.mrf.mxu0
        %v3720 = vadd.f32 %v3679, %v3719
        %3721 = vmatmul.f32.gmra.mxu0 %v3361
        %v3722 = vpop.f32.mrf.mxu0
        %v3723 = vadd.f32 %v3682, %v3722
        %3724 = vmatmul.f32.gmra.mxu0 %v3363
        %v3725 = vpop.f32.mrf.mxu0
        %v3726 = vadd.f32 %v3685, %v3725
        %3727 = vdwg.mxu0
        %v3728 = vld [vmem:[%s3059] sm:$0xff]
        %v3729 = vld [vmem:[%s3059 + $0x8] sm:$0xff]
        %v3730 = vld [vmem:[%s3059 + $0x10] sm:$0xff]
        %v3731 = vld [vmem:[%s3059 + $0x18] sm:$0xff]
        %v3732 = vld [vmem:[%s3059 + $0x20] sm:$0xff]
        %v3733 = vld [vmem:[%s3059 + $0x28] sm:$0xff]
        %v3734 = vld [vmem:[%s3059 + $0x30] sm:$0xff]
        %v3735 = vld [vmem:[%s3059 + $0x38] sm:$0xff]
        %v3736 = vld [vmem:[%s3059 + $0x40] sm:$0xff]
        %v3737 = vld [vmem:[%s3059 + $0x48] sm:$0xff]
        %v3738 = vld [vmem:[%s3059 + $0x50] sm:$0xff]
        %v3739 = vld [vmem:[%s3059 + $0x58] sm:$0xff]
        %v3740 = vld [vmem:[%s3059 + $0x60] sm:$0xff]
        %v3741 = vld [vmem:[%s3059 + $0x68] sm:$0xff]
        %v3742 = vld [vmem:[%s3059 + $0x70] sm:$0xff]
        %v3743 = vld [vmem:[%s3059 + $0x78] sm:$0xff]
        %v3744 = vld [vmem:[%s3059 + $0x80] sm:$0xff]
        %v3745 = vld [vmem:[%s3059 + $0x88] sm:$0xff]
        %v3746 = vld [vmem:[%s3059 + $0x90] sm:$0xff]
        %v3747 = vld [vmem:[%s3059 + $0x98] sm:$0xff]
        %v3748 = vld [vmem:[%s3059 + $0xa0] sm:$0xff]
        %v3749 = vld [vmem:[%s3059 + $0xa8] sm:$0xff]
        %v3750 = vld [vmem:[%s3059 + $0xb0] sm:$0xff]
        %v3751 = vld [vmem:[%s3059 + $0xb8] sm:$0xff]
        %v3752 = vld [vmem:[%s3059 + $0xc0] sm:$0xff]
        %v3753 = vld [vmem:[%s3059 + $0xc8] sm:$0xff]
        %v3754 = vld [vmem:[%s3059 + $0xd0] sm:$0xff]
        %v3755 = vld [vmem:[%s3059 + $0xd8] sm:$0xff]
        %v3756 = vld [vmem:[%s3059 + $0xe0] sm:$0xff]
        %v3757 = vld [vmem:[%s3059 + $0xe8] sm:$0xff]
        %v3758 = vld [vmem:[%s3059 + $0xf0] sm:$0xff]
        %v3759 = vld [vmem:[%s3059 + $0xf8] sm:$0xff]
        %v3760 = vld [vmem:[%s3059 + $0x100] sm:$0xff]
        %v3761 = vld [vmem:[%s3059 + $0x108] sm:$0xff]
        %v3762 = vld [vmem:[%s3059 + $0x110] sm:$0xff]
        %v3763 = vld [vmem:[%s3059 + $0x118] sm:$0xff]
        %v3764 = vld [vmem:[%s3059 + $0x120] sm:$0xff]
        %v3765 = vld [vmem:[%s3059 + $0x128] sm:$0xff]
        %v3766 = vld [vmem:[%s3059 + $0x130] sm:$0xff]
        %v3767 = vld [vmem:[%s3059 + $0x138] sm:$0xff]
        %v3768 = vld [vmem:[%s3059 + $0x140] sm:$0xff]
        %v3769 = vld [vmem:[%s3059 + $0x148] sm:$0xff]
        %v3770 = vld [vmem:[%s3059 + $0x150] sm:$0xff]
        %v3771 = vld [vmem:[%s3059 + $0x158] sm:$0xff]
        %v3772 = vld [vmem:[%s3059 + $0x160] sm:$0xff]
        %v3773 = vld [vmem:[%s3059 + $0x168] sm:$0xff]
        %v3774 = vld [vmem:[%s3059 + $0x170] sm:$0xff]
        %v3775 = vld [vmem:[%s3059 + $0x178] sm:$0xff]
        %3776 = vmatpush.msra.mxu0 %v3743
        %3777 = vmatpush.msra.mxu0 %v3742
        %3778 = vmatpush.msra.mxu0 %v3741
        %3779 = vmatpush.msra.mxu0 %v3740
        %3780 = vmatpush.msra.mxu0 %v3739
        %3781 = vmatpush.msra.mxu0 %v3738
        %3782 = vmatpush.msra.mxu0 %v3737
        %3783 = vmatpush.msra.mxu0 %v3736
        %3784 = vmatpush.msra.mxu0 %v3735
        %3785 = vmatpush.msra.mxu0 %v3734
        %3786 = vmatpush.msra.mxu0 %v3733
        %3787 = vmatpush.msra.mxu0 %v3732
        %3788 = vmatpush.msra.mxu0 %v3731
        %3789 = vmatpush.msra.mxu0 %v3730
        %3790 = vmatpush.msra.mxu0 %v3729
        %3791 = vmatpush.msra.mxu0 %v3728
        %3792 = vmatmul.f32.gmra.mxu0 %v3272
        %v3793 = vpop.f32.mrf.mxu0
        %v3794 = vadd.f32 0.0, %v3793
        %3795 = vmatmul.f32.gmra.mxu0 %v3273
        %v3796 = vpop.f32.mrf.mxu0
        %v3797 = vadd.f32 0.0, %v3796
        %3798 = vmatmul.f32.gmra.mxu0 %v3275
        %v3799 = vpop.f32.mrf.mxu0
        %v3800 = vadd.f32 0.0, %v3799
        %3801 = vmatmul.f32.gmra.mxu0 %v3276
        %v3802 = vpop.f32.mrf.mxu0
        %v3803 = vadd.f32 0.0, %v3802
        %3804 = vmatmul.f32.gmra.mxu0 %v3278
        %v3805 = vpop.f32.mrf.mxu0
        %v3806 = vadd.f32 0.0, %v3805
        %3807 = vmatmul.f32.gmra.mxu0 %v3279
        %v3808 = vpop.f32.mrf.mxu0
        %v3809 = vadd.f32 0.0, %v3808
        %3810 = vmatmul.f32.gmra.mxu0 %v3281
        %v3811 = vpop.f32.mrf.mxu0
        %v3812 = vadd.f32 0.0, %v3811
        %3813 = vmatmul.f32.gmra.mxu0 %v3282
        %v3814 = vpop.f32.mrf.mxu0
        %v3815 = vadd.f32 0.0, %v3814
        %3816 = vdwg.mxu0
        %3817 = vmatpush.msra.mxu0 %v3759
        %3818 = vmatpush.msra.mxu0 %v3758
        %3819 = vmatpush.msra.mxu0 %v3757
        %3820 = vmatpush.msra.mxu0 %v3756
        %3821 = vmatpush.msra.mxu0 %v3755
        %3822 = vmatpush.msra.mxu0 %v3754
        %3823 = vmatpush.msra.mxu0 %v3753
        %3824 = vmatpush.msra.mxu0 %v3752
        %3825 = vmatpush.msra.mxu0 %v3751
        %3826 = vmatpush.msra.mxu0 %v3750
        %3827 = vmatpush.msra.mxu0 %v3749
        %3828 = vmatpush.msra.mxu0 %v3748
        %3829 = vmatpush.msra.mxu0 %v3747
        %3830 = vmatpush.msra.mxu0 %v3746
        %3831 = vmatpush.msra.mxu0 %v3745
        %3832 = vmatpush.msra.mxu0 %v3744
        %3833 = vmatmul.f32.gmra.mxu0 %v3314
        %v3834 = vpop.f32.mrf.mxu0
        %v3835 = vadd.f32 %v3794, %v3834
        %3836 = vmatmul.f32.gmra.mxu0 %v3316
        %v3837 = vpop.f32.mrf.mxu0
        %v3838 = vadd.f32 %v3797, %v3837
        %3839 = vmatmul.f32.gmra.mxu0 %v3319
        %v3840 = vpop.f32.mrf.mxu0
        %v3841 = vadd.f32 %v3800, %v3840
        %3842 = vmatmul.f32.gmra.mxu0 %v3321
        %v3843 = vpop.f32.mrf.mxu0
        %v3844 = vadd.f32 %v3803, %v3843
        %3845 = vmatmul.f32.gmra.mxu0 %v3324
        %v3846 = vpop.f32.mrf.mxu0
        %v3847 = vadd.f32 %v3806, %v3846
        %3848 = vmatmul.f32.gmra.mxu0 %v3326
        %v3849 = vpop.f32.mrf.mxu0
        %v3850 = vadd.f32 %v3809, %v3849
        %3851 = vmatmul.f32.gmra.mxu0 %v3329
        %v3852 = vpop.f32.mrf.mxu0
        %v3853 = vadd.f32 %v3812, %v3852
        %3854 = vmatmul.f32.gmra.mxu0 %v3331
        %v3855 = vpop.f32.mrf.mxu0
        %v3856 = vadd.f32 %v3815, %v3855
        %3857 = vdwg.mxu0
        %3858 = vmatpush.msra.mxu0 %v3775
        %3859 = vmatpush.msra.mxu0 %v3774
        %3860 = vmatpush.msra.mxu0 %v3773
        %3861 = vmatpush.msra.mxu0 %v3772
        %3862 = vmatpush.msra.mxu0 %v3771
        %3863 = vmatpush.msra.mxu0 %v3770
        %3864 = vmatpush.msra.mxu0 %v3769
        %3865 = vmatpush.msra.mxu0 %v3768
        %3866 = vmatpush.msra.mxu0 %v3767
        %3867 = vmatpush.msra.mxu0 %v3766
        %3868 = vmatpush.msra.mxu0 %v3765
        %3869 = vmatpush.msra.mxu0 %v3764
        %3870 = vmatpush.msra.mxu0 %v3763
        %3871 = vmatpush.msra.mxu0 %v3762
        %3872 = vmatpush.msra.mxu0 %v3761
        %3873 = vmatpush.msra.mxu0 %v3760
        %3874 = vmatmul.f32.gmra.mxu0 %v3356
        %v3875 = vpop.f32.mrf.mxu0
        %v3876 = vadd.f32 %v3835, %v3875
        %3877 = vmatmul.f32.gmra.mxu0 %v3358
        %v3878 = vpop.f32.mrf.mxu0
        %v3879 = vadd.f32 %v3838, %v3878
        %3880 = vmatmul.f32.gmra.mxu0 %v3361
        %v3881 = vpop.f32.mrf.mxu0
        %v3882 = vadd.f32 %v3841, %v3881
        %3883 = vmatmul.f32.gmra.mxu0 %v3363
        %v3884 = vpop.f32.mrf.mxu0
        %v3885 = vadd.f32 %v3844, %v3884
        %3886 = vmatmul.f32.gmra.mxu0 %v3366
        %v3887 = vpop.f32.mrf.mxu0
        %v3888 = vadd.f32 %v3847, %v3887
        %3889 = vmatmul.f32.gmra.mxu0 %v3368
        %v3890 = vpop.f32.mrf.mxu0
        %v3891 = vadd.f32 %v3850, %v3890
        %3892 = vmatmul.f32.gmra.mxu0 %v3371
        %v3893 = vpop.f32.mrf.mxu0
        %v3894 = vadd.f32 %v3853, %v3893
        %3895 = vmatmul.f32.gmra.mxu0 %v3373
        %v3896 = vpop.f32.mrf.mxu0
        %v3897 = vadd.f32 %v3856, %v3896
        %3898 = vdwg.mxu0
        %v3899 = vadd.f32 %v3705, %v3876
        %v3900 = vadd.f32 %v3708, %v3879
        %v3901 = vadd.f32 %v3711, %v3882
        %v3902 = vadd.f32 %v3714, %v3885
        %v3903 = vadd.f32 %v3717, %v3888
        %v3904 = vadd.f32 %v3720, %v3891
        %v3905 = vadd.f32 %v3723, %v3894
        %v3906 = vadd.f32 %v3726, %v3897
        %v3907 = vadd.f32 %v3899, %v3240
        %v3908 = vadd.f32 %v3900, %v3240
        %v3909 = vadd.f32 %v3901, %v3240
        %v3910 = vadd.f32 %v3902, %v3240
        %v3911 = vadd.f32 %v3903, %v3240
        %v3912 = vadd.f32 %v3904, %v3240
        %v3913 = vadd.f32 %v3905, %v3240
        %v3914 = vadd.f32 %v3906, %v3240
        %v3915 = vmax.f32 %v3907, 0.0
        %v3916 = vmax.f32 %v3908, 0.0
        %v3917 = vmax.f32 %v3909, 0.0
        %v3918 = vmax.f32 %v3910, 0.0
        %v3919 = vmax.f32 %v3911, 0.0
        %v3920 = vmax.f32 %v3912, 0.0
        %v3921 = vmax.f32 %v3913, 0.0
        %v3922 = vmax.f32 %v3914, 0.0
        %s3923 = scalar_lea.vmem %s207, 64 [#allocation8]
        %3924 = vst [vmem:[%s3923] sm:$0xff] %v3915
        %3925 = vst [vmem:[%s3923 + $0x8] sm:$0xff] %v3916
        %3926 = vst [vmem:[%s3923 + $0x10] sm:$0xff] %v3917
        %3927 = vst [vmem:[%s3923 + $0x18] sm:$0xff] %v3918
        %3928 = vst [vmem:[%s3923 + $0x20] sm:$0xff] %v3919
        %3929 = vst [vmem:[%s3923 + $0x28] sm:$0xff] %v3920
        %3930 = vst [vmem:[%s3923 + $0x30] sm:$0xff] %v3921
        %3931 = vst [vmem:[%s3923 + $0x38] sm:$0xff] %v3922
        %s3932 = sand.u32 %s126, 1
        %s3933 = scalar_lea.sflag [#allocation7], %s3932
        %s3934 = sand.u32 %s126, 1
        %s3935 = smul.addr %s3934, 128
        %s3936 = scalar_lea.vmem [#allocation8], %s3935
        // Predicated region
        $region101: #{tpu_custom_call.1} parent=35 // pred_check
          %p3937 = pneg %p136
        $region102: #{tpu_custom_call.1} parent=35 // pred_check_branch
          %3939 = sbr.rel (%p3937) target = $region104
        $region103: #{tpu_custom_call.1} parent=35 // pred_region
          %s3940 = smul.u32 8, %s25
          %3942 = vsyncadd %s3933, 0
          %s3943 = smul.addr %s3940, 2
          %s3944 = smul.addr %s24, 32
          %s3945 = sadd.s32 %s3943, %s3944
          %s3946 = smul.addr %s3945, 8
          %s3947 = scalar_lea.hbm %s5, %s3946
          %s3948 = sshll.u32 %s3936, 4
          %s3949 = int_to_ptr.vmem [resolvable:$true] %s3948
          %s3950 = sshll.u32 %s3947, 4
          %s3951 = int_to_ptr.hbm [resolvable:$true] %s3950
          %3956 = dma.vmem_to_hbm [thread:$0]  %s3949, 2048, %s3951, %s3933, 128, 128, 8
        $region104: #{tpu_custom_call.1} parent=35 // pred_fallthru
          _
      $region36: #{tpu_custom_call.1} parent=5 // pred_fallthru
        _
      %p3957 = scmp.le.s32.totalorder 2, %s15
      // Predicated region
      $region105: #{tpu_custom_call.1} parent=5 // pred_check
        %p3958 = pneg %p3957
      $region106: #{tpu_custom_call.1} parent=5 // pred_check_branch
        %3960 = sbr.rel (%p3958) target = $region108
      $region107: #{tpu_custom_call.1} parent=5 // pred_region
        %s3961 = ssub.s32 %s15, 2
        // Predicated region
        $region109: #{tpu_custom_call.1} parent=107 // pred_check
          %p3962 = pneg %p142
        $region110: #{tpu_custom_call.1} parent=107 // pred_check_branch
          %3964 = sbr.rel (%p3962) target = $region112
        $region111: #{tpu_custom_call.1} parent=107 // pred_region
          %s3965 = sand.u32 %s127, 1
          %s3966 = scalar_lea.sflag [#allocation7], %s3965
          %s3967 = sand.u32 %s127, 1
          %s3968 = smul.addr %s3967, 128
          %s3969 = scalar_lea.vmem [#allocation8], %s3968
          %3971 = dma.done %s3966, 2048
        $region112: #{tpu_custom_call.1} parent=107 // pred_fallthru
          _
      $region108: #{tpu_custom_call.1} parent=5 // pred_fallthru
        _
    $region6: #{tpu_custom_call.1} parent=1 // loop_footer
      %s19 = sadd.s32 1, %s15
    $region7: #{tpu_custom_call.1} parent=1 // loop_footer_branch
      %14 = sbr.rel target = $region3
    $region8: #{tpu_custom_call.1} parent=1 // loop_exit
      _
    %3972 = vsyncpa [#allocation6], 1
    %s3973 = scalar_lea.sflag [#allocation6], 1
    %3974 = vsyncpa %s3973, 1
    %3975 = vsyncpa [#allocation7], 1
    %s3976 = scalar_lea.sflag [#allocation7], 1
    %3977 = vsyncpa %s3976, 1
  %3978 = vsyncmov [#allocation4]
  %s3979 = vpop.sfrf %3978
  %p3980 = scmp.eq.s32.totalorder %s3979, 0
  %p3981 = pneg %p3980
  %3983 = shalt.err (%p3981)
  %s3984 = scalar_lea.sflag [#allocation4], 1
  %3985 = vsyncmov %s3984
  %s3986 = vpop.sfrf %3985
  %p3987 = scmp.eq.s32.totalorder %s3986, 0
  %p3988 = pneg %p3987
  %3990 = shalt.err (%p3988)

</llo_original>
